<compile_context>
chip_gen: v7x
topology: tpu7x:2x2x1
jax: 0.10.0
libtpu: 0.0.40
codegen_flags: <defaults>
</compile_context>

<pallas_src>
import functools
import math

import jax
import jax.numpy as jnp
from jax.experimental import pallas as pl
from jax.experimental.pallas import tpu as pltpu


# ----------------------------------------------------------------------------
# helpers
# ----------------------------------------------------------------------------
def _row_tile(n, target=512):
    """Largest row tile (multiple of 8, <= target) that strictly divides n; else n."""
    # TODO(synk): cdiv + masked tail path for very large N with no aligned divisor
    #             (falling back to tn=N keeps correctness but loses pipelining).
    for t in (512, 256, 128, 64, 32, 16, 8):
        if t <= target and t < n and n % t == 0:
            return t
    return n


def _ff_tile(f):
    """d_ff reduction tile: multiple of 128 dividing f (lane-aligned), else full f."""
    for t in (512, 256, 128):
        if t < f and f % t == 0:
            return t
    return f


def _pick_vmem_limit():
    """Explicit VMEM budget: ~3/4 of physical, capped at 100 MiB (v5e/v6e ~96 MiB,
    v7x ~48 MiB) instead of the small scoped defaults."""
    cap = 128 * 1024 * 1024
    try:
        info = pltpu.get_tpu_info()
        cap = int(getattr(info, "vmem_capacity_bytes", cap))
    except Exception:
        pass
    return int(min(100 * 1024 * 1024, cap * 3 // 4))


_VMEM_LIMIT = _pick_vmem_limit()


def _cp(dims):
    return pltpu.CompilerParams(dimension_semantics=dims,
                                vmem_limit_bytes=_VMEM_LIMIT)


# ----------------------------------------------------------------------------
# Pallas kernels
# ----------------------------------------------------------------------------
def _linear_kernel(x_ref, w_ref, b_ref, o_ref):
    # o = x @ w + b     x:(tn,Din) f32, w:(Din,Dout) bf16, b:(1,Dout) f32 -> o bf16
    acc = jnp.dot(x_ref[...].astype(jnp.bfloat16), w_ref[...],
                  preferred_element_type=jnp.float32)
    o_ref[...] = (acc + b_ref[...]).astype(o_ref.dtype)


def _mha_kernel(q_ref, kv_ref, o_ref, *, num_heads, head_dim, q_off, k_off, v_off):
    # One (batch, q-tile) per grid step.
    #   q_ref : (1, tq, Cq) bf16   (Q columns start at q_off)
    #   kv_ref: (1, S,  Ckv) bf16  (K columns at k_off, V columns at v_off)
    #   o_ref : (1, tq, D) bf16
    # 1/sqrt(head_dim) is folded into the Q projection weights (no in-kernel scale).
    # TODO(synk): per-head (B,H,T,Dh) block layout + flash-style KV tiling with
    #             online softmax once S grows (current kernel keeps full (S,Ckv)
    #             and a (tq,S) score matrix per head resident).
    q = q_ref[0]          # (tq, Cq) bf16
    kv = kv_ref[0]        # (S, Ckv) bf16
    outs = []
    for h in range(num_heads):            # static unrolled head loop
        lo = h * head_dim
        qh = q[:, q_off + lo: q_off + lo + head_dim]                  # (tq, Dh)
        kh = kv[:, k_off + lo: k_off + lo + head_dim]                 # (S, Dh)
        vh = kv[:, v_off + lo: v_off + lo + head_dim]                 # (S, Dh)
        # scores = qh @ kh^T (contract last dims; no materialized transpose)
        s = jax.lax.dot_general(qh, kh, (((1,), (1,)), ((), ())),
                                preferred_element_type=jnp.float32)   # (tq, S)
        m = jnp.max(s, axis=-1, keepdims=True)
        p = jnp.exp(s - m)
        p = p * pl.reciprocal(jnp.sum(p, axis=-1, keepdims=True), approx=True)
        outs.append(jnp.dot(p.astype(jnp.bfloat16), vh,
                            preferred_element_type=jnp.float32))      # (tq, Dh)
    # single full-width lane-dense store (no per-head masked sub-lane stores)
    o_ref[0] = jnp.concatenate(outs, axis=-1).astype(o_ref.dtype)


def _proj_add_ln_kernel(y_ref, w_ref, b_ref, res_ref, g_ref, bb_ref, o_ref):
    # out-projection + bias + residual add + LayerNorm (eps=1e-5, biased var)
    # y is bf16 (attention output), residual/LN math in f32.
    proj = jnp.dot(y_ref[...], w_ref[...],
                   preferred_element_type=jnp.float32) + b_ref[...]
    z = res_ref[...] + proj
    mu = jnp.mean(z, axis=-1, keepdims=True)
    var = jnp.mean((z - mu) ** 2, axis=-1, keepdims=True)
    zhat = (z - mu) * jax.lax.rsqrt(var + 1e-5)
    o_ref[...] = (zhat * g_ref[...] + bb_ref[...]).astype(o_ref.dtype)


def _ffn_add_ln_kernel(x_ref, w1_ref, b1_ref, w2_ref, b2_ref, g_ref, bb_ref, o_ref,
                       acc_ref):
    # relu(x@w1+b1)@w2+b2 + residual + LayerNorm, fused; d_ff tiled on grid axis 1
    # with a VMEM f32 accumulator (v7x 64 MiB VMEM friendly).
    j = pl.program_id(1)

    @pl.when(j == 0)
    def _():
        acc_ref[...] = jnp.zeros_like(acc_ref)

    x = x_ref[...]                                                     # (tn, D) f32
    h = jnp.dot(x.astype(jnp.bfloat16), w1_ref[...],
                preferred_element_type=jnp.float32) + b1_ref[...]      # (tn, tf)
    h = jnp.maximum(h, 0.0)
    acc_ref[...] += jnp.dot(h.astype(jnp.bfloat16), w2_ref[...],
                            preferred_element_type=jnp.float32)        # (tn, D)

    @pl.when(j == pl.num_programs(1) - 1)
    def _():
        z = x + acc_ref[...] + b2_ref[...]
        mu = jnp.mean(z, axis=-1, keepdims=True)
        var = jnp.mean((z - mu) ** 2, axis=-1, keepdims=True)
        zhat = (z - mu) * jax.lax.rsqrt(var + 1e-5)
        o_ref[...] = (zhat * g_ref[...] + bb_ref[...]).astype(o_ref.dtype)


# ----------------------------------------------------------------------------
# pallas_call wrappers
# ----------------------------------------------------------------------------
def linear(x2d, w, b):
    """x2d:(N,Din) f32, w:(Din,Dout) bf16, b:(Dout,) f32 -> (N,Dout) bf16, row-tiled."""
    N, Din = x2d.shape
    Dout = w.shape[1]
    tn = _row_tile(N)
    # TODO(synk): single-buffer the constant-index weight/bias blocks
    #             (pipeline_mode=pl.Buffered(1)) to halve resident weight VMEM.
    return pl.pallas_call(
        _linear_kernel,
        out_shape=jax.ShapeDtypeStruct((N, Dout), jnp.bfloat16),
        grid=(N // tn,),
        in_specs=[
            pl.BlockSpec((tn, Din), lambda i: (i, 0)),
            pl.BlockSpec((Din, Dout), lambda i: (0, 0)),
            pl.BlockSpec((1, Dout), lambda i: (0, 0)),
        ],
        out_specs=pl.BlockSpec((tn, Dout), lambda i: (i, 0)),
        compiler_params=_cp(("parallel",)),
    )(x2d, w, b.reshape(1, Dout))


def mha(q_arr, kv_arr, *, d_model, num_heads, q_off, k_off, v_off):
    """q_arr:(B,T,Cq) bf16, kv_arr:(B,S,Ckv) bf16 -> (B,T,D) bf16.

    For self-attention q_arr and kv_arr are the SAME fused (B,T,3D) qkv array
    (no HBM slices); grid is (batch, q-tiles), both parallel."""
    B, T, Cq = q_arr.shape
    S, Ckv = kv_arr.shape[1], kv_arr.shape[2]
    head_dim = d_model // num_heads
    tq = _row_tile(T, target=256)
    kern = functools.partial(_mha_kernel, num_heads=num_heads, head_dim=head_dim,
                             q_off=q_off, k_off=k_off, v_off=v_off)
    return pl.pallas_call(
        kern,
        out_shape=jax.ShapeDtypeStruct((B, T, d_model), jnp.bfloat16),
        grid=(B, T // tq),
        in_specs=[
            pl.BlockSpec((1, tq, Cq), lambda b, i: (b, i, 0)),
            pl.BlockSpec((1, S, Ckv), lambda b, i: (b, 0, 0)),
        ],
        out_specs=pl.BlockSpec((1, tq, d_model), lambda b, i: (b, i, 0)),
        compiler_params=_cp(("parallel", "parallel")),
    )(q_arr, kv_arr)


def proj_add_ln(y2d, w, b, res2d, gamma, beta):
    """(y2d @ w + b) + res2d, then LayerNorm over last dim. Row-tiled, parallel."""
    N, D = res2d.shape
    tn = _row_tile(N)
    return pl.pallas_call(
        _proj_add_ln_kernel,
        out_shape=jax.ShapeDtypeStruct((N, D), jnp.float32),
        grid=(N // tn,),
        in_specs=[
            pl.BlockSpec((tn, D), lambda i: (i, 0)),
            pl.BlockSpec((D, D), lambda i: (0, 0)),
            pl.BlockSpec((1, D), lambda i: (0, 0)),
            pl.BlockSpec((tn, D), lambda i: (i, 0)),
            pl.BlockSpec((1, D), lambda i: (0, 0)),
            pl.BlockSpec((1, D), lambda i: (0, 0)),
        ],
        out_specs=pl.BlockSpec((tn, D), lambda i: (i, 0)),
        compiler_params=_cp(("parallel",)),
    )(y2d, w, b.reshape(1, D), res2d, gamma.reshape(1, D), beta.reshape(1, D))


def ffn_add_ln(x2d, w1, b1, w2, b2, gamma, beta):
    """relu(x@w1+b1)@w2+b2 + x, then LayerNorm. Rows parallel, d_ff axis tiled."""
    N, D = x2d.shape
    F = w1.shape[1]
    tn = _row_tile(N, target=256)
    tf = _ff_tile(F)
    return pl.pallas_call(
        _ffn_add_ln_kernel,
        out_shape=jax.ShapeDtypeStruct((N, D), jnp.float32),
        grid=(N // tn, F // tf),
        in_specs=[
            pl.BlockSpec((tn, D), lambda i, j: (i, 0)),
            pl.BlockSpec((D, tf), lambda i, j: (0, j)),
            pl.BlockSpec((1, tf), lambda i, j: (0, j)),
            pl.BlockSpec((tf, D), lambda i, j: (j, 0)),
            pl.BlockSpec((1, D), lambda i, j: (0, 0)),
            pl.BlockSpec((1, D), lambda i, j: (0, 0)),
            pl.BlockSpec((1, D), lambda i, j: (0, 0)),
        ],
        out_specs=pl.BlockSpec((tn, D), lambda i, j: (i, 0)),
        scratch_shapes=[pltpu.VMEM((tn, D), jnp.float32)],
        compiler_params=_cp(("parallel", "arbitrary")),
    )(x2d, w1, b1.reshape(1, F), w2, b2.reshape(1, D),
      gamma.reshape(1, D), beta.reshape(1, D))


# ----------------------------------------------------------------------------
# DecoderLayer forward (PyTorch semantics: eval mode, no masks)
# ----------------------------------------------------------------------------
def decoder_layer(x, enc_output, params, num_heads):
    # x: (T, B, D), enc_output: (S, B, D)  (seq-major, like nn.MultiheadAttention)
    # TODO(synk): attn_mask / memory_mask support (forward is called with None here).
    # TODO(synk): drop the two layout changes below by reading the seq-major layout
    #             directly in BlockSpecs once d_model is lane-aligned (D % 128 == 0);
    #             a second-minor size-1 block over the batch dim is avoided here for
    #             robustness to small D.
    T, B, D = x.shape
    S = enc_output.shape[0]
    N = B * T

    xb = x.transpose(1, 0, 2)                     # (B, T, D)
    encb = enc_output.transpose(1, 0, 2)          # (B, S, D)
    x2d = xb.reshape(N, D)
    enc2d = encb.reshape(B * S, D)

    # ---- self-attention sublayer (fused QKV; full qkv passed, no HBM slices) ----
    p = params["self_attn"]
    qkv = linear(x2d, p["w_qkv"], p["b_qkv"]).reshape(B, T, 3 * D)     # bf16
    attn = mha(qkv, qkv, d_model=D, num_heads=num_heads,
               q_off=0, k_off=D, v_off=2 * D)                          # (B, T, D) bf16
    x2d = proj_add_ln(attn.reshape(N, D), p["w_out"], p["b_out"], x2d,
                      params["ln1_g"], params["ln1_b"])

    # ---- encoder-decoder attention sublayer (fused KV) ----
    p = params["enc_attn"]
    q = linear(x2d, p["w_q"], p["b_q"]).reshape(B, T, D)               # bf16
    kv = linear(enc2d, p["w_kv"], p["b_kv"]).reshape(B, S, 2 * D)      # bf16
    attn = mha(q, kv, d_model=D, num_heads=num_heads,
               q_off=0, k_off=0, v_off=D)                              # (B, T, D) bf16
    x2d = proj_add_ln(attn.reshape(N, D), p["w_out"], p["b_out"], x2d,
                      params["ln2_g"], params["ln2_b"])

    # ---- feed-forward sublayer (fused FFN + residual + LN, d_ff tiled) ----
    x2d = ffn_add_ln(x2d, params["ff_w1"], params["ff_b1"],
                     params["ff_w2"], params["ff_b2"],
                     params["ln3_g"], params["ln3_b"])

    return x2d.reshape(B, T, D).transpose(1, 0, 2)                     # (T, B, D)


def init_params(key, d_model, num_heads, d_ff):
    ks = jax.random.split(key, 8)
    s = 0.05
    scale = 1.0 / math.sqrt(d_model // num_heads)   # folded into Q projection

    def w(k, shape):  # pre-transposed (Din, Dout)
        return jax.random.normal(k, shape, jnp.float32) * s

    w_qkv = w(ks[0], (d_model, 3 * d_model))
    w_qkv = w_qkv.at[:, :d_model].multiply(scale)          # fold 1/sqrt(dh) into Q
    b_qkv = jnp.zeros((3 * d_model,), jnp.float32)
    b_qkv = b_qkv.at[:d_model].multiply(scale)

    w_q = w(ks[2], (d_model, d_model)) * scale              # fold 1/sqrt(dh) into Q
    b_q = jnp.zeros((d_model,), jnp.float32) * scale

    bf16 = jnp.bfloat16
    return {
        "self_attn": {
            "w_qkv": w_qkv.astype(bf16),
            "b_qkv": b_qkv,
            "w_out": w(ks[1], (d_model, d_model)).astype(bf16),
            "b_out": jnp.zeros((d_model,), jnp.float32),
        },
        "enc_attn": {
            "w_q": w_q.astype(bf16),
            "b_q": b_q,
            "w_kv": w(ks[3], (d_model, 2 * d_model)).astype(bf16),
            "b_kv": jnp.zeros((2 * d_model,), jnp.float32),
            "w_out": w(ks[4], (d_model, d_model)).astype(bf16),
            "b_out": jnp.zeros((d_model,), jnp.float32),
        },
        "ff_w1": w(ks[5], (d_model, d_ff)).astype(bf16),
        "ff_b1": jnp.zeros((d_ff,), jnp.float32),
        "ff_w2": w(ks[6], (d_ff, d_model)).astype(bf16),
        "ff_b2": jnp.zeros((d_model,), jnp.float32),
        "ln1_g": jnp.ones((d_model,), jnp.float32),
        "ln1_b": jnp.zeros((d_model,), jnp.float32),
        "ln2_g": jnp.ones((d_model,), jnp.float32),
        "ln2_b": jnp.zeros((d_model,), jnp.float32),
        "ln3_g": jnp.ones((d_model,), jnp.float32),
        "ln3_b": jnp.zeros((d_model,), jnp.float32),
    }


if __name__ == "__main__":
    d_model, num_heads, d_ff = 64, 4, 128
    tgt_len, src_len, batch = 8, 16, 2

    key = jax.random.PRNGKey(0)
    k_x, k_enc, k_p = jax.random.split(key, 3)

    x = jax.random.normal(k_x, (tgt_len, batch, d_model), jnp.float32)
    enc_output = jax.random.normal(k_enc, (src_len, batch, d_model), jnp.float32)
    params = init_params(k_p, d_model, num_heads, d_ff)

    fwd = jax.jit(functools.partial(decoder_layer, num_heads=num_heads))
    out = fwd(x, enc_output, params)
    out = jax.block_until_ready(out)

    assert out.shape == (tgt_len, batch, d_model)
    assert bool(jnp.all(jnp.isfinite(out)))
    print("KERNEL_OK")
</pallas_src>

<mosaic_0001>
module attributes {stable_mosaic.version = 11 : i64} {
  func.func @_mha_kernel(%arg0: i32, %arg1: i32, %arg2: memref<1x8x192xbf16, #tpu.memory_space<vmem>>, %arg3: memref<1x8x192xbf16, #tpu.memory_space<vmem>>, %arg4: memref<1x8x64xbf16, #tpu.memory_space<vmem>>) attributes {dimension_semantics = [#tpu.dimension_semantics<parallel>, #tpu.dimension_semantics<parallel>], iteration_bounds = array<i64: 2, 1>, scalar_prefetch = 0 : i64, scratch_operands = 0 : i64, tpu.core_type = #tpu.core_type<tc>, window_params = [{transform_indices = @transform_0, window_bounds = array<i64: 1, 8, 192>}, {transform_indices = @transform_1, window_bounds = array<i64: 1, 8, 192>}, {transform_indices = @transform_2, window_bounds = array<i64: 1, 8, 64>}]} {
    %c0 = arith.constant 0 : index
    %c0_0 = arith.constant 0 : index
    %c0_1 = arith.constant 0 : index
    %0 = vector.load %arg2[%c0, %c0_0, %c0_1] : memref<1x8x192xbf16, #tpu.memory_space<vmem>>, vector<1x8x192xbf16>
    %1 = vector.shape_cast %0 : vector<1x8x192xbf16> to vector<8x192xbf16>
    %c0_2 = arith.constant 0 : index
    %c0_3 = arith.constant 0 : index
    %c0_4 = arith.constant 0 : index
    %2 = vector.load %arg3[%c0_2, %c0_3, %c0_4] : memref<1x8x192xbf16, #tpu.memory_space<vmem>>, vector<1x8x192xbf16>
    %3 = vector.shape_cast %2 : vector<1x8x192xbf16> to vector<8x192xbf16>
    %4 = vector.extract_strided_slice %1 {offsets = [0, 0], sizes = [8, 16], strides = [1, 1]} : vector<8x192xbf16> to vector<8x16xbf16>
    %5 = vector.extract_strided_slice %3 {offsets = [0, 64], sizes = [8, 16], strides = [1, 1]} : vector<8x192xbf16> to vector<8x16xbf16>
    %6 = vector.extract_strided_slice %3 {offsets = [0, 128], sizes = [8, 16], strides = [1, 1]} : vector<8x192xbf16> to vector<8x16xbf16>
    %cst = arith.constant dense<0.000000e+00> : vector<8x8xf32>
    %7 = tpu.matmul %4, %5, %cst {dimension_numbers = #tpu.dot_dimension_numbers<[1], [1], [0], [0], [0, 0, 1, 0], [], []>} : vector<8x16xbf16>, vector<8x16xbf16>, vector<8x8xf32> -> vector<8x8xf32>
    %cst_5 = arith.constant dense<0xFF800000> : vector<8xf32>
    %8 = vector.multi_reduction <maximumf>, %7, %cst_5 [1] : vector<8x8xf32> to vector<8xf32>
    %9 = vector.shape_cast %8 : vector<8xf32> to vector<8x1xf32>
    %10 = vector.broadcast %9 : vector<8x1xf32> to vector<8x8xf32>
    %11 = arith.subf %7, %10 : vector<8x8xf32>
    %12 = math.exp %11 : vector<8x8xf32>
    %cst_6 = arith.constant dense<0.000000e+00> : vector<8xf32>
    %13 = vector.multi_reduction <add>, %12, %cst_6 [1] : vector<8x8xf32> to vector<8xf32>
    %14 = vector.shape_cast %13 : vector<8xf32> to vector<8x1xf32>
    %15 = tpu.reciprocal %14 {approx = true} : vector<8x1xf32> -> vector<8x1xf32>
    %16 = vector.broadcast %15 : vector<8x1xf32> to vector<8x8xf32>
    %17 = arith.mulf %12, %16 : vector<8x8xf32>
    %18 = arith.truncf %17 : vector<8x8xf32> to vector<8x8xbf16>
    %cst_7 = arith.constant dense<0.000000e+00> : vector<8x16xf32>
    %19 = tpu.matmul %18, %6, %cst_7 {dimension_numbers = #tpu.dot_dimension_numbers<[1], [0], [0], [1], [0, 0, 1, 1], [], []>} : vector<8x8xbf16>, vector<8x16xbf16>, vector<8x16xf32> -> vector<8x16xf32>
    %20 = vector.extract_strided_slice %1 {offsets = [0, 16], sizes = [8, 16], strides = [1, 1]} : vector<8x192xbf16> to vector<8x16xbf16>
    %21 = vector.extract_strided_slice %3 {offsets = [0, 80], sizes = [8, 16], strides = [1, 1]} : vector<8x192xbf16> to vector<8x16xbf16>
    %22 = vector.extract_strided_slice %3 {offsets = [0, 144], sizes = [8, 16], strides = [1, 1]} : vector<8x192xbf16> to vector<8x16xbf16>
    %cst_8 = arith.constant dense<0.000000e+00> : vector<8x8xf32>
    %23 = tpu.matmul %20, %21, %cst_8 {dimension_numbers = #tpu.dot_dimension_numbers<[1], [1], [0], [0], [0, 0, 1, 0], [], []>} : vector<8x16xbf16>, vector<8x16xbf16>, vector<8x8xf32> -> vector<8x8xf32>
    %cst_9 = arith.constant dense<0xFF800000> : vector<8xf32>
    %24 = vector.multi_reduction <maximumf>, %23, %cst_9 [1] : vector<8x8xf32> to vector<8xf32>
    %25 = vector.shape_cast %24 : vector<8xf32> to vector<8x1xf32>
    %26 = vector.broadcast %25 : vector<8x1xf32> to vector<8x8xf32>
    %27 = arith.subf %23, %26 : vector<8x8xf32>
    %28 = math.exp %27 : vector<8x8xf32>
    %cst_10 = arith.constant dense<0.000000e+00> : vector<8xf32>
    %29 = vector.multi_reduction <add>, %28, %cst_10 [1] : vector<8x8xf32> to vector<8xf32>
    %30 = vector.shape_cast %29 : vector<8xf32> to vector<8x1xf32>
    %31 = tpu.reciprocal %30 {approx = true} : vector<8x1xf32> -> vector<8x1xf32>
    %32 = vector.broadcast %31 : vector<8x1xf32> to vector<8x8xf32>
    %33 = arith.mulf %28, %32 : vector<8x8xf32>
    %34 = arith.truncf %33 : vector<8x8xf32> to vector<8x8xbf16>
    %cst_11 = arith.constant dense<0.000000e+00> : vector<8x16xf32>
    %35 = tpu.matmul %34, %22, %cst_11 {dimension_numbers = #tpu.dot_dimension_numbers<[1], [0], [0], [1], [0, 0, 1, 1], [], []>} : vector<8x8xbf16>, vector<8x16xbf16>, vector<8x16xf32> -> vector<8x16xf32>
    %36 = vector.extract_strided_slice %1 {offsets = [0, 32], sizes = [8, 16], strides = [1, 1]} : vector<8x192xbf16> to vector<8x16xbf16>
    %37 = vector.extract_strided_slice %3 {offsets = [0, 96], sizes = [8, 16], strides = [1, 1]} : vector<8x192xbf16> to vector<8x16xbf16>
    %38 = vector.extract_strided_slice %3 {offsets = [0, 160], sizes = [8, 16], strides = [1, 1]} : vector<8x192xbf16> to vector<8x16xbf16>
    %cst_12 = arith.constant dense<0.000000e+00> : vector<8x8xf32>
    %39 = tpu.matmul %36, %37, %cst_12 {dimension_numbers = #tpu.dot_dimension_numbers<[1], [1], [0], [0], [0, 0, 1, 0], [], []>} : vector<8x16xbf16>, vector<8x16xbf16>, vector<8x8xf32> -> vector<8x8xf32>
    %cst_13 = arith.constant dense<0xFF800000> : vector<8xf32>
    %40 = vector.multi_reduction <maximumf>, %39, %cst_13 [1] : vector<8x8xf32> to vector<8xf32>
    %41 = vector.shape_cast %40 : vector<8xf32> to vector<8x1xf32>
    %42 = vector.broadcast %41 : vector<8x1xf32> to vector<8x8xf32>
    %43 = arith.subf %39, %42 : vector<8x8xf32>
    %44 = math.exp %43 : vector<8x8xf32>
    %cst_14 = arith.constant dense<0.000000e+00> : vector<8xf32>
    %45 = vector.multi_reduction <add>, %44, %cst_14 [1] : vector<8x8xf32> to vector<8xf32>
    %46 = vector.shape_cast %45 : vector<8xf32> to vector<8x1xf32>
    %47 = tpu.reciprocal %46 {approx = true} : vector<8x1xf32> -> vector<8x1xf32>
    %48 = vector.broadcast %47 : vector<8x1xf32> to vector<8x8xf32>
    %49 = arith.mulf %44, %48 : vector<8x8xf32>
    %50 = arith.truncf %49 : vector<8x8xf32> to vector<8x8xbf16>
    %cst_15 = arith.constant dense<0.000000e+00> : vector<8x16xf32>
    %51 = tpu.matmul %50, %38, %cst_15 {dimension_numbers = #tpu.dot_dimension_numbers<[1], [0], [0], [1], [0, 0, 1, 1], [], []>} : vector<8x8xbf16>, vector<8x16xbf16>, vector<8x16xf32> -> vector<8x16xf32>
    %52 = vector.extract_strided_slice %1 {offsets = [0, 48], sizes = [8, 16], strides = [1, 1]} : vector<8x192xbf16> to vector<8x16xbf16>
    %53 = vector.extract_strided_slice %3 {offsets = [0, 112], sizes = [8, 16], strides = [1, 1]} : vector<8x192xbf16> to vector<8x16xbf16>
    %54 = vector.extract_strided_slice %3 {offsets = [0, 176], sizes = [8, 16], strides = [1, 1]} : vector<8x192xbf16> to vector<8x16xbf16>
    %cst_16 = arith.constant dense<0.000000e+00> : vector<8x8xf32>
    %55 = tpu.matmul %52, %53, %cst_16 {dimension_numbers = #tpu.dot_dimension_numbers<[1], [1], [0], [0], [0, 0, 1, 0], [], []>} : vector<8x16xbf16>, vector<8x16xbf16>, vector<8x8xf32> -> vector<8x8xf32>
    %cst_17 = arith.constant dense<0xFF800000> : vector<8xf32>
    %56 = vector.multi_reduction <maximumf>, %55, %cst_17 [1] : vector<8x8xf32> to vector<8xf32>
    %57 = vector.shape_cast %56 : vector<8xf32> to vector<8x1xf32>
    %58 = vector.broadcast %57 : vector<8x1xf32> to vector<8x8xf32>
    %59 = arith.subf %55, %58 : vector<8x8xf32>
    %60 = math.exp %59 : vector<8x8xf32>
    %cst_18 = arith.constant dense<0.000000e+00> : vector<8xf32>
    %61 = vector.multi_reduction <add>, %60, %cst_18 [1] : vector<8x8xf32> to vector<8xf32>
    %62 = vector.shape_cast %61 : vector<8xf32> to vector<8x1xf32>
    %63 = tpu.reciprocal %62 {approx = true} : vector<8x1xf32> -> vector<8x1xf32>
    %64 = vector.broadcast %63 : vector<8x1xf32> to vector<8x8xf32>
    %65 = arith.mulf %60, %64 : vector<8x8xf32>
    %66 = arith.truncf %65 : vector<8x8xf32> to vector<8x8xbf16>
    %cst_19 = arith.constant dense<0.000000e+00> : vector<8x16xf32>
    %67 = tpu.matmul %66, %54, %cst_19 {dimension_numbers = #tpu.dot_dimension_numbers<[1], [0], [0], [1], [0, 0, 1, 1], [], []>} : vector<8x8xbf16>, vector<8x16xbf16>, vector<8x16xf32> -> vector<8x16xf32>
    %68 = tpu.concatenate %19, %35, %51, %67 in 1 : vector<8x16xf32>, vector<8x16xf32>, vector<8x16xf32>, vector<8x16xf32> -> vector<8x64xf32>
    %69 = arith.truncf %68 : vector<8x64xf32> to vector<8x64xbf16>
    %c0_20 = arith.constant 0 : index
    %c0_21 = arith.constant 0 : index
    %c0_22 = arith.constant 0 : index
    %70 = vector.load %arg4[%c0_20, %c0_21, %c0_22] : memref<1x8x64xbf16, #tpu.memory_space<vmem>>, vector<1x8x64xbf16>
    %71 = vector.shape_cast %70 : vector<1x8x64xbf16> to vector<8x64xbf16>
    %72 = vector.shape_cast %69 : vector<8x64xbf16> to vector<1x8x64xbf16>
    tpu.vector_store %arg4[%c0_20, %c0_21, %c0_22], %72 {strides = array<i32>} : memref<1x8x64xbf16, #tpu.memory_space<vmem>>, vector<1x8x64xbf16>,
    return
  }
  func.func @transform_0(%arg0: i32, %arg1: i32) -> (i32, i32, i32) {
    %c0_i32 = arith.constant 0 : i32
    %c0_i32_0 = arith.constant 0 : i32
    return %arg0, %arg1, %c0_i32 : i32, i32, i32
  }
  func.func @transform_1(%arg0: i32, %arg1: i32) -> (i32, i32, i32) {
    %c0_i32 = arith.constant 0 : i32
    %c0_i32_0 = arith.constant 0 : i32
    %c0_i32_1 = arith.constant 0 : i32
    return %arg0, %c0_i32, %c0_i32_0 : i32, i32, i32
  }
  func.func @transform_2(%arg0: i32, %arg1: i32) -> (i32, i32, i32) {
    %c0_i32 = arith.constant 0 : i32
    %c0_i32_0 = arith.constant 0 : i32
    return %arg0, %arg1, %c0_i32 : i32, i32, i32
  }
}

module attributes {stable_mosaic.version = 11 : i64} {
  func.func @_linear_kernel(%arg0: i32, %arg1: memref<8x64xf32, #tpu.memory_space<vmem>>, %arg2: memref<64x192xbf16, #tpu.memory_space<vmem>>, %arg3: memref<1x192xf32, #tpu.memory_space<vmem>>, %arg4: memref<8x192xbf16, #tpu.memory_space<vmem>>) attributes {dimension_semantics = [#tpu.dimension_semantics<parallel>], iteration_bounds = array<i64: 2>, scalar_prefetch = 0 : i64, scratch_operands = 0 : i64, tpu.core_type = #tpu.core_type<tc>, window_params = [{transform_indices = @transform_0, window_bounds = array<i64: 8, 64>}, {pipeline_mode = #tpu.pipeline_mode<synchronous>, transform_indices = @transform_1, window_bounds = array<i64: 64, 192>}, {pipeline_mode = #tpu.pipeline_mode<synchronous>, transform_indices = @transform_2, window_bounds = array<i64: 1, 192>}, {transform_indices = @transform_3, window_bounds = array<i64: 8, 192>}]} {
    %c0 = arith.constant 0 : index
    %c0_0 = arith.constant 0 : index
    %0 = vector.load %arg1[%c0, %c0_0] : memref<8x64xf32, #tpu.memory_space<vmem>>, vector<8x64xf32>
    %1 = arith.truncf %0 : vector<8x64xf32> to vector<8x64xbf16>
    %c0_1 = arith.constant 0 : index
    %c0_2 = arith.constant 0 : index
    %2 = vector.load %arg2[%c0_1, %c0_2] : memref<64x192xbf16, #tpu.memory_space<vmem>>, vector<64x192xbf16>
    %cst = arith.constant dense<0.000000e+00> : vector<8x192xf32>
    %3 = tpu.matmul %1, %2, %cst {dimension_numbers = #tpu.dot_dimension_numbers<[1], [0], [0], [1], [0, 0, 1, 1], [], []>} : vector<8x64xbf16>, vector<64x192xbf16>, vector<8x192xf32> -> vector<8x192xf32>
    %c0_3 = arith.constant 0 : index
    %c0_4 = arith.constant 0 : index
    %4 = vector.load %arg3[%c0_3, %c0_4] : memref<1x192xf32, #tpu.memory_space<vmem>>, vector<1x192xf32>
    %5 = vector.broadcast %4 : vector<1x192xf32> to vector<8x192xf32>
    %6 = arith.addf %3, %5 : vector<8x192xf32>
    %7 = arith.truncf %6 : vector<8x192xf32> to vector<8x192xbf16>
    %c0_5 = arith.constant 0 : index
    %c0_6 = arith.constant 0 : index
    %8 = vector.load %arg4[%c0_5, %c0_6] : memref<8x192xbf16, #tpu.memory_space<vmem>>, vector<8x192xbf16>
    tpu.vector_store %arg4[%c0_5, %c0_6], %7 {strides = array<i32>} : memref<8x192xbf16, #tpu.memory_space<vmem>>, vector<8x192xbf16>,
    return
  }
  func.func @transform_0(%arg0: i32) -> (i32, i32) {
    %c0_i32 = arith.constant 0 : i32
    %c0_i32_0 = arith.constant 0 : i32
    return %arg0, %c0_i32 : i32, i32
  }
  func.func @transform_1(%arg0: i32) -> (i32, i32) {
    %c0_i32 = arith.constant 0 : i32
    %c0_i32_0 = arith.constant 0 : i32
    %c0_i32_1 = arith.constant 0 : i32
    return %c0_i32, %c0_i32_0 : i32, i32
  }
  func.func @transform_2(%arg0: i32) -> (i32, i32) {
    %c0_i32 = arith.constant 0 : i32
    %c0_i32_0 = arith.constant 0 : i32
    %c0_i32_1 = arith.constant 0 : i32
    return %c0_i32, %c0_i32_0 : i32, i32
  }
  func.func @transform_3(%arg0: i32) -> (i32, i32) {
    %c0_i32 = arith.constant 0 : i32
    %c0_i32_0 = arith.constant 0 : i32
    return %arg0, %c0_i32 : i32, i32
  }
}

module attributes {stable_mosaic.version = 11 : i64} {
  func.func @_proj_add_ln_kernel(%arg0: i32, %arg1: memref<8x64xbf16, #tpu.memory_space<vmem>>, %arg2: memref<64x64xbf16, #tpu.memory_space<vmem>>, %arg3: memref<1x64xf32, #tpu.memory_space<vmem>>, %arg4: memref<8x64xf32, #tpu.memory_space<vmem>>, %arg5: memref<1x64xf32, #tpu.memory_space<vmem>>, %arg6: memref<1x64xf32, #tpu.memory_space<vmem>>, %arg7: memref<8x64xf32, #tpu.memory_space<vmem>>) attributes {dimension_semantics = [#tpu.dimension_semantics<parallel>], iteration_bounds = array<i64: 2>, scalar_prefetch = 0 : i64, scratch_operands = 0 : i64, tpu.core_type = #tpu.core_type<tc>, window_params = [{transform_indices = @transform_0, window_bounds = array<i64: 8, 64>}, {pipeline_mode = #tpu.pipeline_mode<synchronous>, transform_indices = @transform_1, window_bounds = array<i64: 64, 64>}, {pipeline_mode = #tpu.pipeline_mode<synchronous>, transform_indices = @transform_2, window_bounds = array<i64: 1, 64>}, {transform_indices = @transform_3, window_bounds = array<i64: 8, 64>}, {pipeline_mode = #tpu.pipeline_mode<synchronous>, transform_indices = @transform_4, window_bounds = array<i64: 1, 64>}, {pipeline_mode = #tpu.pipeline_mode<synchronous>, transform_indices = @transform_5, window_bounds = array<i64: 1, 64>}, {transform_indices = @transform_6, window_bounds = array<i64: 8, 64>}]} {
    %c0 = arith.constant 0 : index
    %c0_0 = arith.constant 0 : index
    %0 = vector.load %arg1[%c0, %c0_0] : memref<8x64xbf16, #tpu.memory_space<vmem>>, vector<8x64xbf16>
    %c0_1 = arith.constant 0 : index
    %c0_2 = arith.constant 0 : index
    %1 = vector.load %arg2[%c0_1, %c0_2] : memref<64x64xbf16, #tpu.memory_space<vmem>>, vector<64x64xbf16>
    %cst = arith.constant dense<0.000000e+00> : vector<8x64xf32>
    %2 = tpu.matmul %0, %1, %cst {dimension_numbers = #tpu.dot_dimension_numbers<[1], [0], [0], [1], [0, 0, 1, 1], [], []>} : vector<8x64xbf16>, vector<64x64xbf16>, vector<8x64xf32> -> vector<8x64xf32>
    %c0_3 = arith.constant 0 : index
    %c0_4 = arith.constant 0 : index
    %3 = vector.load %arg3[%c0_3, %c0_4] : memref<1x64xf32, #tpu.memory_space<vmem>>, vector<1x64xf32>
    %4 = vector.broadcast %3 : vector<1x64xf32> to vector<8x64xf32>
    %5 = arith.addf %2, %4 : vector<8x64xf32>
    %c0_5 = arith.constant 0 : index
    %c0_6 = arith.constant 0 : index
    %6 = vector.load %arg4[%c0_5, %c0_6] : memref<8x64xf32, #tpu.memory_space<vmem>>, vector<8x64xf32>
    %7 = arith.addf %6, %5 : vector<8x64xf32>
    %cst_7 = arith.constant dense<0.000000e+00> : vector<8xf32>
    %8 = vector.multi_reduction <add>, %7, %cst_7 [1] : vector<8x64xf32> to vector<8xf32>
    %9 = vector.shape_cast %8 : vector<8xf32> to vector<8x1xf32>
    %cst_8 = arith.constant 6.400000e+01 : f32
    %10 = vector.broadcast %cst_8 : f32 to vector<8x1xf32>
    %11 = arith.divf %9, %10 : vector<8x1xf32>
    %12 = vector.broadcast %11 : vector<8x1xf32> to vector<8x64xf32>
    %13 = arith.subf %7, %12 : vector<8x64xf32>
    %14 = arith.mulf %13, %13 : vector<8x64xf32>
    %cst_9 = arith.constant dense<0.000000e+00> : vector<8xf32>
    %15 = vector.multi_reduction <add>, %14, %cst_9 [1] : vector<8x64xf32> to vector<8xf32>
    %16 = vector.shape_cast %15 : vector<8xf32> to vector<8x1xf32>
    %cst_10 = arith.constant 6.400000e+01 : f32
    %17 = vector.broadcast %cst_10 : f32 to vector<8x1xf32>
    %18 = arith.divf %16, %17 : vector<8x1xf32>
    %19 = vector.broadcast %11 : vector<8x1xf32> to vector<8x64xf32>
    %20 = arith.subf %7, %19 : vector<8x64xf32>
    %cst_11 = arith.constant 9.99999974E-6 : f32
    %21 = vector.broadcast %cst_11 : f32 to vector<8x1xf32>
    %22 = arith.addf %18, %21 : vector<8x1xf32>
    %23 = math.rsqrt %22 : vector<8x1xf32>
    %24 = vector.broadcast %23 : vector<8x1xf32> to vector<8x64xf32>
    %25 = arith.mulf %20, %24 : vector<8x64xf32>
    %c0_12 = arith.constant 0 : index
    %c0_13 = arith.constant 0 : index
    %26 = vector.load %arg5[%c0_12, %c0_13] : memref<1x64xf32, #tpu.memory_space<vmem>>, vector<1x64xf32>
    %27 = vector.broadcast %26 : vector<1x64xf32> to vector<8x64xf32>
    %28 = arith.mulf %25, %27 : vector<8x64xf32>
    %c0_14 = arith.constant 0 : index
    %c0_15 = arith.constant 0 : index
    %29 = vector.load %arg6[%c0_14, %c0_15] : memref<1x64xf32, #tpu.memory_space<vmem>>, vector<1x64xf32>
    %30 = vector.broadcast %29 : vector<1x64xf32> to vector<8x64xf32>
    %31 = arith.addf %28, %30 : vector<8x64xf32>
    %c0_16 = arith.constant 0 : index
    %c0_17 = arith.constant 0 : index
    %32 = vector.load %arg7[%c0_16, %c0_17] : memref<8x64xf32, #tpu.memory_space<vmem>>, vector<8x64xf32>
    tpu.vector_store %arg7[%c0_16, %c0_17], %31 {strides = array<i32>} : memref<8x64xf32, #tpu.memory_space<vmem>>, vector<8x64xf32>,
    return
  }
  func.func @transform_0(%arg0: i32) -> (i32, i32) {
    %c0_i32 = arith.constant 0 : i32
    %c0_i32_0 = arith.constant 0 : i32
    return %arg0, %c0_i32 : i32, i32
  }
  func.func @transform_1(%arg0: i32) -> (i32, i32) {
    %c0_i32 = arith.constant 0 : i32
    %c0_i32_0 = arith.constant 0 : i32
    %c0_i32_1 = arith.constant 0 : i32
    return %c0_i32, %c0_i32_0 : i32, i32
  }
  func.func @transform_2(%arg0: i32) -> (i32, i32) {
    %c0_i32 = arith.constant 0 : i32
    %c0_i32_0 = arith.constant 0 : i32
    %c0_i32_1 = arith.constant 0 : i32
    return %c0_i32, %c0_i32_0 : i32, i32
  }
  func.func @transform_3(%arg0: i32) -> (i32, i32) {
    %c0_i32 = arith.constant 0 : i32
    %c0_i32_0 = arith.constant 0 : i32
    return %arg0, %c0_i32 : i32, i32
  }
  func.func @transform_4(%arg0: i32) -> (i32, i32) {
    %c0_i32 = arith.constant 0 : i32
    %c0_i32_0 = arith.constant 0 : i32
    %c0_i32_1 = arith.constant 0 : i32
    return %c0_i32, %c0_i32_0 : i32, i32
  }
  func.func @transform_5(%arg0: i32) -> (i32, i32) {
    %c0_i32 = arith.constant 0 : i32
    %c0_i32_0 = arith.constant 0 : i32
    %c0_i32_1 = arith.constant 0 : i32
    return %c0_i32, %c0_i32_0 : i32, i32
  }
  func.func @transform_6(%arg0: i32) -> (i32, i32) {
    %c0_i32 = arith.constant 0 : i32
    %c0_i32_0 = arith.constant 0 : i32
    return %arg0, %c0_i32 : i32, i32
  }
}

module attributes {stable_mosaic.version = 11 : i64} {
  func.func @_linear_kernel(%arg0: i32, %arg1: memref<8x64xf32, #tpu.memory_space<vmem>>, %arg2: memref<64x64xbf16, #tpu.memory_space<vmem>>, %arg3: memref<1x64xf32, #tpu.memory_space<vmem>>, %arg4: memref<8x64xbf16, #tpu.memory_space<vmem>>) attributes {dimension_semantics = [#tpu.dimension_semantics<parallel>], iteration_bounds = array<i64: 2>, scalar_prefetch = 0 : i64, scratch_operands = 0 : i64, tpu.core_type = #tpu.core_type<tc>, window_params = [{transform_indices = @transform_0, window_bounds = array<i64: 8, 64>}, {pipeline_mode = #tpu.pipeline_mode<synchronous>, transform_indices = @transform_1, window_bounds = array<i64: 64, 64>}, {pipeline_mode = #tpu.pipeline_mode<synchronous>, transform_indices = @transform_2, window_bounds = array<i64: 1, 64>}, {transform_indices = @transform_3, window_bounds = array<i64: 8, 64>}]} {
    %c0 = arith.constant 0 : index
    %c0_0 = arith.constant 0 : index
    %0 = vector.load %arg1[%c0, %c0_0] : memref<8x64xf32, #tpu.memory_space<vmem>>, vector<8x64xf32>
    %1 = arith.truncf %0 : vector<8x64xf32> to vector<8x64xbf16>
    %c0_1 = arith.constant 0 : index
    %c0_2 = arith.constant 0 : index
    %2 = vector.load %arg2[%c0_1, %c0_2] : memref<64x64xbf16, #tpu.memory_space<vmem>>, vector<64x64xbf16>
    %cst = arith.constant dense<0.000000e+00> : vector<8x64xf32>
    %3 = tpu.matmul %1, %2, %cst {dimension_numbers = #tpu.dot_dimension_numbers<[1], [0], [0], [1], [0, 0, 1, 1], [], []>} : vector<8x64xbf16>, vector<64x64xbf16>, vector<8x64xf32> -> vector<8x64xf32>
    %c0_3 = arith.constant 0 : index
    %c0_4 = arith.constant 0 : index
    %4 = vector.load %arg3[%c0_3, %c0_4] : memref<1x64xf32, #tpu.memory_space<vmem>>, vector<1x64xf32>
    %5 = vector.broadcast %4 : vector<1x64xf32> to vector<8x64xf32>
    %6 = arith.addf %3, %5 : vector<8x64xf32>
    %7 = arith.truncf %6 : vector<8x64xf32> to vector<8x64xbf16>
    %c0_5 = arith.constant 0 : index
    %c0_6 = arith.constant 0 : index
    %8 = vector.load %arg4[%c0_5, %c0_6] : memref<8x64xbf16, #tpu.memory_space<vmem>>, vector<8x64xbf16>
    tpu.vector_store %arg4[%c0_5, %c0_6], %7 {strides = array<i32>} : memref<8x64xbf16, #tpu.memory_space<vmem>>, vector<8x64xbf16>,
    return
  }
  func.func @transform_0(%arg0: i32) -> (i32, i32) {
    %c0_i32 = arith.constant 0 : i32
    %c0_i32_0 = arith.constant 0 : i32
    return %arg0, %c0_i32 : i32, i32
  }
  func.func @transform_1(%arg0: i32) -> (i32, i32) {
    %c0_i32 = arith.constant 0 : i32
    %c0_i32_0 = arith.constant 0 : i32
    %c0_i32_1 = arith.constant 0 : i32
    return %c0_i32, %c0_i32_0 : i32, i32
  }
  func.func @transform_2(%arg0: i32) -> (i32, i32) {
    %c0_i32 = arith.constant 0 : i32
    %c0_i32_0 = arith.constant 0 : i32
    %c0_i32_1 = arith.constant 0 : i32
    return %c0_i32, %c0_i32_0 : i32, i32
  }
  func.func @transform_3(%arg0: i32) -> (i32, i32) {
    %c0_i32 = arith.constant 0 : i32
    %c0_i32_0 = arith.constant 0 : i32
    return %arg0, %c0_i32 : i32, i32
  }
}

module attributes {stable_mosaic.version = 11 : i64} {
  func.func @_linear_kernel(%arg0: i32, %arg1: memref<16x64xf32, #tpu.memory_space<vmem>>, %arg2: memref<64x128xbf16, #tpu.memory_space<vmem>>, %arg3: memref<1x128xf32, #tpu.memory_space<vmem>>, %arg4: memref<16x128xbf16, #tpu.memory_space<vmem>>) attributes {dimension_semantics = [#tpu.dimension_semantics<parallel>], iteration_bounds = array<i64: 2>, scalar_prefetch = 0 : i64, scratch_operands = 0 : i64, tpu.core_type = #tpu.core_type<tc>, window_params = [{transform_indices = @transform_0, window_bounds = array<i64: 16, 64>}, {pipeline_mode = #tpu.pipeline_mode<synchronous>, transform_indices = @transform_1, window_bounds = array<i64: 64, 128>}, {pipeline_mode = #tpu.pipeline_mode<synchronous>, transform_indices = @transform_2, window_bounds = array<i64: 1, 128>}, {transform_indices = @transform_3, window_bounds = array<i64: 16, 128>}]} {
    %c0 = arith.constant 0 : index
    %c0_0 = arith.constant 0 : index
    %0 = vector.load %arg1[%c0, %c0_0] : memref<16x64xf32, #tpu.memory_space<vmem>>, vector<16x64xf32>
    %1 = arith.truncf %0 : vector<16x64xf32> to vector<16x64xbf16>
    %c0_1 = arith.constant 0 : index
    %c0_2 = arith.constant 0 : index
    %2 = vector.load %arg2[%c0_1, %c0_2] : memref<64x128xbf16, #tpu.memory_space<vmem>>, vector<64x128xbf16>
    %cst = arith.constant dense<0.000000e+00> : vector<16x128xf32>
    %3 = tpu.matmul %1, %2, %cst {dimension_numbers = #tpu.dot_dimension_numbers<[1], [0], [0], [1], [0, 0, 1, 1], [], []>} : vector<16x64xbf16>, vector<64x128xbf16>, vector<16x128xf32> -> vector<16x128xf32>
    %c0_3 = arith.constant 0 : index
    %c0_4 = arith.constant 0 : index
    %4 = vector.load %arg3[%c0_3, %c0_4] : memref<1x128xf32, #tpu.memory_space<vmem>>, vector<1x128xf32>
    %5 = vector.broadcast %4 : vector<1x128xf32> to vector<16x128xf32>
    %6 = arith.addf %3, %5 : vector<16x128xf32>
    %7 = arith.truncf %6 : vector<16x128xf32> to vector<16x128xbf16>
    %c0_5 = arith.constant 0 : index
    %c0_6 = arith.constant 0 : index
    %8 = vector.load %arg4[%c0_5, %c0_6] : memref<16x128xbf16, #tpu.memory_space<vmem>>, vector<16x128xbf16>
    tpu.vector_store %arg4[%c0_5, %c0_6], %7 {strides = array<i32>} : memref<16x128xbf16, #tpu.memory_space<vmem>>, vector<16x128xbf16>,
    return
  }
  func.func @transform_0(%arg0: i32) -> (i32, i32) {
    %c0_i32 = arith.constant 0 : i32
    %c0_i32_0 = arith.constant 0 : i32
    return %arg0, %c0_i32 : i32, i32
  }
  func.func @transform_1(%arg0: i32) -> (i32, i32) {
    %c0_i32 = arith.constant 0 : i32
    %c0_i32_0 = arith.constant 0 : i32
    %c0_i32_1 = arith.constant 0 : i32
    return %c0_i32, %c0_i32_0 : i32, i32
  }
  func.func @transform_2(%arg0: i32) -> (i32, i32) {
    %c0_i32 = arith.constant 0 : i32
    %c0_i32_0 = arith.constant 0 : i32
    %c0_i32_1 = arith.constant 0 : i32
    return %c0_i32, %c0_i32_0 : i32, i32
  }
  func.func @transform_3(%arg0: i32) -> (i32, i32) {
    %c0_i32 = arith.constant 0 : i32
    %c0_i32_0 = arith.constant 0 : i32
    return %arg0, %c0_i32 : i32, i32
  }
}

module attributes {stable_mosaic.version = 11 : i64} {
  func.func @_mha_kernel(%arg0: i32, %arg1: i32, %arg2: memref<1x8x64xbf16, #tpu.memory_space<vmem>>, %arg3: memref<1x16x128xbf16, #tpu.memory_space<vmem>>, %arg4: memref<1x8x64xbf16, #tpu.memory_space<vmem>>) attributes {dimension_semantics = [#tpu.dimension_semantics<parallel>, #tpu.dimension_semantics<parallel>], iteration_bounds = array<i64: 2, 1>, scalar_prefetch = 0 : i64, scratch_operands = 0 : i64, tpu.core_type = #tpu.core_type<tc>, window_params = [{transform_indices = @transform_0, window_bounds = array<i64: 1, 8, 64>}, {transform_indices = @transform_1, window_bounds = array<i64: 1, 16, 128>}, {transform_indices = @transform_2, window_bounds = array<i64: 1, 8, 64>}]} {
    %c0 = arith.constant 0 : index
    %c0_0 = arith.constant 0 : index
    %c0_1 = arith.constant 0 : index
    %0 = vector.load %arg2[%c0, %c0_0, %c0_1] : memref<1x8x64xbf16, #tpu.memory_space<vmem>>, vector<1x8x64xbf16>
    %1 = vector.shape_cast %0 : vector<1x8x64xbf16> to vector<8x64xbf16>
    %c0_2 = arith.constant 0 : index
    %c0_3 = arith.constant 0 : index
    %c0_4 = arith.constant 0 : index
    %2 = vector.load %arg3[%c0_2, %c0_3, %c0_4] : memref<1x16x128xbf16, #tpu.memory_space<vmem>>, vector<1x16x128xbf16>
    %3 = vector.shape_cast %2 : vector<1x16x128xbf16> to vector<16x128xbf16>
    %4 = vector.extract_strided_slice %1 {offsets = [0, 0], sizes = [8, 16], strides = [1, 1]} : vector<8x64xbf16> to vector<8x16xbf16>
    %5 = vector.extract_strided_slice %3 {offsets = [0, 0], sizes = [16, 16], strides = [1, 1]} : vector<16x128xbf16> to vector<16x16xbf16>
    %6 = vector.extract_strided_slice %3 {offsets = [0, 64], sizes = [16, 16], strides = [1, 1]} : vector<16x128xbf16> to vector<16x16xbf16>
    %cst = arith.constant dense<0.000000e+00> : vector<8x16xf32>
    %7 = tpu.matmul %4, %5, %cst {dimension_numbers = #tpu.dot_dimension_numbers<[1], [1], [0], [0], [0, 0, 1, 0], [], []>} : vector<8x16xbf16>, vector<16x16xbf16>, vector<8x16xf32> -> vector<8x16xf32>
    %cst_5 = arith.constant dense<0xFF800000> : vector<8xf32>
    %8 = vector.multi_reduction <maximumf>, %7, %cst_5 [1] : vector<8x16xf32> to vector<8xf32>
    %9 = vector.shape_cast %8 : vector<8xf32> to vector<8x1xf32>
    %10 = vector.broadcast %9 : vector<8x1xf32> to vector<8x16xf32>
    %11 = arith.subf %7, %10 : vector<8x16xf32>
    %12 = math.exp %11 : vector<8x16xf32>
    %cst_6 = arith.constant dense<0.000000e+00> : vector<8xf32>
    %13 = vector.multi_reduction <add>, %12, %cst_6 [1] : vector<8x16xf32> to vector<8xf32>
    %14 = vector.shape_cast %13 : vector<8xf32> to vector<8x1xf32>
    %15 = tpu.reciprocal %14 {approx = true} : vector<8x1xf32> -> vector<8x1xf32>
    %16 = vector.broadcast %15 : vector<8x1xf32> to vector<8x16xf32>
    %17 = arith.mulf %12, %16 : vector<8x16xf32>
    %18 = arith.truncf %17 : vector<8x16xf32> to vector<8x16xbf16>
    %cst_7 = arith.constant dense<0.000000e+00> : vector<8x16xf32>
    %19 = tpu.matmul %18, %6, %cst_7 {dimension_numbers = #tpu.dot_dimension_numbers<[1], [0], [0], [1], [0, 0, 1, 1], [], []>} : vector<8x16xbf16>, vector<16x16xbf16>, vector<8x16xf32> -> vector<8x16xf32>
    %20 = vector.extract_strided_slice %1 {offsets = [0, 16], sizes = [8, 16], strides = [1, 1]} : vector<8x64xbf16> to vector<8x16xbf16>
    %21 = vector.extract_strided_slice %3 {offsets = [0, 16], sizes = [16, 16], strides = [1, 1]} : vector<16x128xbf16> to vector<16x16xbf16>
    %22 = vector.extract_strided_slice %3 {offsets = [0, 80], sizes = [16, 16], strides = [1, 1]} : vector<16x128xbf16> to vector<16x16xbf16>
    %cst_8 = arith.constant dense<0.000000e+00> : vector<8x16xf32>
    %23 = tpu.matmul %20, %21, %cst_8 {dimension_numbers = #tpu.dot_dimension_numbers<[1], [1], [0], [0], [0, 0, 1, 0], [], []>} : vector<8x16xbf16>, vector<16x16xbf16>, vector<8x16xf32> -> vector<8x16xf32>
    %cst_9 = arith.constant dense<0xFF800000> : vector<8xf32>
    %24 = vector.multi_reduction <maximumf>, %23, %cst_9 [1] : vector<8x16xf32> to vector<8xf32>
    %25 = vector.shape_cast %24 : vector<8xf32> to vector<8x1xf32>
    %26 = vector.broadcast %25 : vector<8x1xf32> to vector<8x16xf32>
    %27 = arith.subf %23, %26 : vector<8x16xf32>
    %28 = math.exp %27 : vector<8x16xf32>
    %cst_10 = arith.constant dense<0.000000e+00> : vector<8xf32>
    %29 = vector.multi_reduction <add>, %28, %cst_10 [1] : vector<8x16xf32> to vector<8xf32>
    %30 = vector.shape_cast %29 : vector<8xf32> to vector<8x1xf32>
    %31 = tpu.reciprocal %30 {approx = true} : vector<8x1xf32> -> vector<8x1xf32>
    %32 = vector.broadcast %31 : vector<8x1xf32> to vector<8x16xf32>
    %33 = arith.mulf %28, %32 : vector<8x16xf32>
    %34 = arith.truncf %33 : vector<8x16xf32> to vector<8x16xbf16>
    %cst_11 = arith.constant dense<0.000000e+00> : vector<8x16xf32>
    %35 = tpu.matmul %34, %22, %cst_11 {dimension_numbers = #tpu.dot_dimension_numbers<[1], [0], [0], [1], [0, 0, 1, 1], [], []>} : vector<8x16xbf16>, vector<16x16xbf16>, vector<8x16xf32> -> vector<8x16xf32>
    %36 = vector.extract_strided_slice %1 {offsets = [0, 32], sizes = [8, 16], strides = [1, 1]} : vector<8x64xbf16> to vector<8x16xbf16>
    %37 = vector.extract_strided_slice %3 {offsets = [0, 32], sizes = [16, 16], strides = [1, 1]} : vector<16x128xbf16> to vector<16x16xbf16>
    %38 = vector.extract_strided_slice %3 {offsets = [0, 96], sizes = [16, 16], strides = [1, 1]} : vector<16x128xbf16> to vector<16x16xbf16>
    %cst_12 = arith.constant dense<0.000000e+00> : vector<8x16xf32>
    %39 = tpu.matmul %36, %37, %cst_12 {dimension_numbers = #tpu.dot_dimension_numbers<[1], [1], [0], [0], [0, 0, 1, 0], [], []>} : vector<8x16xbf16>, vector<16x16xbf16>, vector<8x16xf32> -> vector<8x16xf32>
    %cst_13 = arith.constant dense<0xFF800000> : vector<8xf32>
    %40 = vector.multi_reduction <maximumf>, %39, %cst_13 [1] : vector<8x16xf32> to vector<8xf32>
    %41 = vector.shape_cast %40 : vector<8xf32> to vector<8x1xf32>
    %42 = vector.broadcast %41 : vector<8x1xf32> to vector<8x16xf32>
    %43 = arith.subf %39, %42 : vector<8x16xf32>
    %44 = math.exp %43 : vector<8x16xf32>
    %cst_14 = arith.constant dense<0.000000e+00> : vector<8xf32>
    %45 = vector.multi_reduction <add>, %44, %cst_14 [1] : vector<8x16xf32> to vector<8xf32>
    %46 = vector.shape_cast %45 : vector<8xf32> to vector<8x1xf32>
    %47 = tpu.reciprocal %46 {approx = true} : vector<8x1xf32> -> vector<8x1xf32>
    %48 = vector.broadcast %47 : vector<8x1xf32> to vector<8x16xf32>
    %49 = arith.mulf %44, %48 : vector<8x16xf32>
    %50 = arith.truncf %49 : vector<8x16xf32> to vector<8x16xbf16>
    %cst_15 = arith.constant dense<0.000000e+00> : vector<8x16xf32>
    %51 = tpu.matmul %50, %38, %cst_15 {dimension_numbers = #tpu.dot_dimension_numbers<[1], [0], [0], [1], [0, 0, 1, 1], [], []>} : vector<8x16xbf16>, vector<16x16xbf16>, vector<8x16xf32> -> vector<8x16xf32>
    %52 = vector.extract_strided_slice %1 {offsets = [0, 48], sizes = [8, 16], strides = [1, 1]} : vector<8x64xbf16> to vector<8x16xbf16>
    %53 = vector.extract_strided_slice %3 {offsets = [0, 48], sizes = [16, 16], strides = [1, 1]} : vector<16x128xbf16> to vector<16x16xbf16>
    %54 = vector.extract_strided_slice %3 {offsets = [0, 112], sizes = [16, 16], strides = [1, 1]} : vector<16x128xbf16> to vector<16x16xbf16>
    %cst_16 = arith.constant dense<0.000000e+00> : vector<8x16xf32>
    %55 = tpu.matmul %52, %53, %cst_16 {dimension_numbers = #tpu.dot_dimension_numbers<[1], [1], [0], [0], [0, 0, 1, 0], [], []>} : vector<8x16xbf16>, vector<16x16xbf16>, vector<8x16xf32> -> vector<8x16xf32>
    %cst_17 = arith.constant dense<0xFF800000> : vector<8xf32>
    %56 = vector.multi_reduction <maximumf>, %55, %cst_17 [1] : vector<8x16xf32> to vector<8xf32>
    %57 = vector.shape_cast %56 : vector<8xf32> to vector<8x1xf32>
    %58 = vector.broadcast %57 : vector<8x1xf32> to vector<8x16xf32>
    %59 = arith.subf %55, %58 : vector<8x16xf32>
    %60 = math.exp %59 : vector<8x16xf32>
    %cst_18 = arith.constant dense<0.000000e+00> : vector<8xf32>
    %61 = vector.multi_reduction <add>, %60, %cst_18 [1] : vector<8x16xf32> to vector<8xf32>
    %62 = vector.shape_cast %61 : vector<8xf32> to vector<8x1xf32>
    %63 = tpu.reciprocal %62 {approx = true} : vector<8x1xf32> -> vector<8x1xf32>
    %64 = vector.broadcast %63 : vector<8x1xf32> to vector<8x16xf32>
    %65 = arith.mulf %60, %64 : vector<8x16xf32>
    %66 = arith.truncf %65 : vector<8x16xf32> to vector<8x16xbf16>
    %cst_19 = arith.constant dense<0.000000e+00> : vector<8x16xf32>
    %67 = tpu.matmul %66, %54, %cst_19 {dimension_numbers = #tpu.dot_dimension_numbers<[1], [0], [0], [1], [0, 0, 1, 1], [], []>} : vector<8x16xbf16>, vector<16x16xbf16>, vector<8x16xf32> -> vector<8x16xf32>
    %68 = tpu.concatenate %19, %35, %51, %67 in 1 : vector<8x16xf32>, vector<8x16xf32>, vector<8x16xf32>, vector<8x16xf32> -> vector<8x64xf32>
    %69 = arith.truncf %68 : vector<8x64xf32> to vector<8x64xbf16>
    %c0_20 = arith.constant 0 : index
    %c0_21 = arith.constant 0 : index
    %c0_22 = arith.constant 0 : index
    %70 = vector.load %arg4[%c0_20, %c0_21, %c0_22] : memref<1x8x64xbf16, #tpu.memory_space<vmem>>, vector<1x8x64xbf16>
    %71 = vector.shape_cast %70 : vector<1x8x64xbf16> to vector<8x64xbf16>
    %72 = vector.shape_cast %69 : vector<8x64xbf16> to vector<1x8x64xbf16>
    tpu.vector_store %arg4[%c0_20, %c0_21, %c0_22], %72 {strides = array<i32>} : memref<1x8x64xbf16, #tpu.memory_space<vmem>>, vector<1x8x64xbf16>,
    return
  }
  func.func @transform_0(%arg0: i32, %arg1: i32) -> (i32, i32, i32) {
    %c0_i32 = arith.constant 0 : i32
    %c0_i32_0 = arith.constant 0 : i32
    return %arg0, %arg1, %c0_i32 : i32, i32, i32
  }
  func.func @transform_1(%arg0: i32, %arg1: i32) -> (i32, i32, i32) {
    %c0_i32 = arith.constant 0 : i32
    %c0_i32_0 = arith.constant 0 : i32
    %c0_i32_1 = arith.constant 0 : i32
    return %arg0, %c0_i32, %c0_i32_0 : i32, i32, i32
  }
  func.func @transform_2(%arg0: i32, %arg1: i32) -> (i32, i32, i32) {
    %c0_i32 = arith.constant 0 : i32
    %c0_i32_0 = arith.constant 0 : i32
    return %arg0, %arg1, %c0_i32 : i32, i32, i32
  }
}

module attributes {stable_mosaic.version = 11 : i64} {
  func.func @_ffn_add_ln_kernel(%arg0: i32, %arg1: i32, %arg2: memref<8x64xf32, #tpu.memory_space<vmem>>, %arg3: memref<64x128xbf16, #tpu.memory_space<vmem>>, %arg4: memref<1x128xf32, #tpu.memory_space<vmem>>, %arg5: memref<128x64xbf16, #tpu.memory_space<vmem>>, %arg6: memref<1x64xf32, #tpu.memory_space<vmem>>, %arg7: memref<1x64xf32, #tpu.memory_space<vmem>>, %arg8: memref<1x64xf32, #tpu.memory_space<vmem>>, %arg9: memref<8x64xf32, #tpu.memory_space<vmem>>, %arg10: memref<8x64xf32, #tpu.memory_space<vmem>>) attributes {dimension_semantics = [#tpu.dimension_semantics<parallel>, #tpu.dimension_semantics<arbitrary>], iteration_bounds = array<i64: 2, 1>, scalar_prefetch = 0 : i64, scratch_operands = 1 : i64, tpu.core_type = #tpu.core_type<tc>, window_params = [{transform_indices = @transform_0, window_bounds = array<i64: 8, 64>}, {transform_indices = @transform_1, window_bounds = array<i64: 64, 128>}, {transform_indices = @transform_2, window_bounds = array<i64: 1, 128>}, {transform_indices = @transform_3, window_bounds = array<i64: 128, 64>}, {pipeline_mode = #tpu.pipeline_mode<synchronous>, transform_indices = @transform_4, window_bounds = array<i64: 1, 64>}, {pipeline_mode = #tpu.pipeline_mode<synchronous>, transform_indices = @transform_5, window_bounds = array<i64: 1, 64>}, {pipeline_mode = #tpu.pipeline_mode<synchronous>, transform_indices = @transform_6, window_bounds = array<i64: 1, 64>}, {transform_indices = @transform_7, window_bounds = array<i64: 8, 64>}]} {
    %c0_i32 = arith.constant 0 : i32
    %0 = arith.cmpi eq, %arg1, %c0_i32 : i32
    %1 = arith.extui %0 : i1 to i32
    %c0_i32_0 = arith.constant 0 : i32
    %2 = arith.cmpi ne, %1, %c0_i32_0 : i32
    scf.if %2 {
      %cst_16 = arith.constant 0.000000e+00 : f32
      %21 = vector.broadcast %cst_16 : f32 to vector<8x64xf32>
      %c0_17 = arith.constant 0 : index
      %c0_18 = arith.constant 0 : index
      %22 = vector.load %arg10[%c0_17, %c0_18] : memref<8x64xf32, #tpu.memory_space<vmem>>, vector<8x64xf32>
      tpu.vector_store %arg10[%c0_17, %c0_18], %21 {strides = array<i32>} : memref<8x64xf32, #tpu.memory_space<vmem>>, vector<8x64xf32>,
    } else {
    }
    %c0 = arith.constant 0 : index
    %c0_1 = arith.constant 0 : index
    %3 = vector.load %arg2[%c0, %c0_1] : memref<8x64xf32, #tpu.memory_space<vmem>>, vector<8x64xf32>
    %4 = arith.truncf %3 : vector<8x64xf32> to vector<8x64xbf16>
    %c0_2 = arith.constant 0 : index
    %c0_3 = arith.constant 0 : index
    %5 = vector.load %arg3[%c0_2, %c0_3] : memref<64x128xbf16, #tpu.memory_space<vmem>>, vector<64x128xbf16>
    %cst = arith.constant dense<0.000000e+00> : vector<8x128xf32>
    %6 = tpu.matmul %4, %5, %cst {dimension_numbers = #tpu.dot_dimension_numbers<[1], [0], [0], [1], [0, 0, 1, 1], [], []>} : vector<8x64xbf16>, vector<64x128xbf16>, vector<8x128xf32> -> vector<8x128xf32>
    %c0_4 = arith.constant 0 : index
    %c0_5 = arith.constant 0 : index
    %7 = vector.load %arg4[%c0_4, %c0_5] : memref<1x128xf32, #tpu.memory_space<vmem>>, vector<1x128xf32>
    %8 = vector.broadcast %7 : vector<1x128xf32> to vector<8x128xf32>
    %9 = arith.addf %6, %8 : vector<8x128xf32>
    %cst_6 = arith.constant 0.000000e+00 : f32
    %10 = vector.broadcast %cst_6 : f32 to vector<8x128xf32>
    %11 = arith.maximumf %9, %10 : vector<8x128xf32>
    %c0_7 = arith.constant 0 : index
    %c0_8 = arith.constant 0 : index
    %12 = vector.load %arg10[%c0_7, %c0_8] : memref<8x64xf32, #tpu.memory_space<vmem>>, vector<8x64xf32>
    %13 = arith.truncf %11 : vector<8x128xf32> to vector<8x128xbf16>
    %c0_9 = arith.constant 0 : index
    %c0_10 = arith.constant 0 : index
    %14 = vector.load %arg5[%c0_9, %c0_10] : memref<128x64xbf16, #tpu.memory_space<vmem>>, vector<128x64xbf16>
    %cst_11 = arith.constant dense<0.000000e+00> : vector<8x64xf32>
    %15 = tpu.matmul %13, %14, %cst_11 {dimension_numbers = #tpu.dot_dimension_numbers<[1], [0], [0], [1], [0, 0, 1, 1], [], []>} : vector<8x128xbf16>, vector<128x64xbf16>, vector<8x64xf32> -> vector<8x64xf32>
    %16 = arith.addf %12, %15 : vector<8x64xf32>
    %c0_12 = arith.constant 0 : index
    %c0_13 = arith.constant 0 : index
    %17 = vector.load %arg10[%c0_12, %c0_13] : memref<8x64xf32, #tpu.memory_space<vmem>>, vector<8x64xf32>
    tpu.vector_store %arg10[%c0_12, %c0_13], %16 {strides = array<i32>} : memref<8x64xf32, #tpu.memory_space<vmem>>, vector<8x64xf32>,
    %c0_i32_14 = arith.constant 0 : i32
    %18 = arith.cmpi eq, %arg1, %c0_i32_14 : i32
    %19 = arith.extui %18 : i1 to i32
    %c0_i32_15 = arith.constant 0 : i32
    %20 = arith.cmpi ne, %19, %c0_i32_15 : i32
    scf.if %20 {
      %c0_16 = arith.constant 0 : index
      %c0_17 = arith.constant 0 : index
      %21 = vector.load %arg10[%c0_16, %c0_17] : memref<8x64xf32, #tpu.memory_space<vmem>>, vector<8x64xf32>
      %22 = arith.addf %3, %21 : vector<8x64xf32>
      %c0_18 = arith.constant 0 : index
      %c0_19 = arith.constant 0 : index
      %23 = vector.load %arg6[%c0_18, %c0_19] : memref<1x64xf32, #tpu.memory_space<vmem>>, vector<1x64xf32>
      %24 = vector.broadcast %23 : vector<1x64xf32> to vector<8x64xf32>
      %25 = arith.addf %22, %24 : vector<8x64xf32>
      %cst_20 = arith.constant dense<0.000000e+00> : vector<8xf32>
      %26 = vector.multi_reduction <add>, %25, %cst_20 [1] : vector<8x64xf32> to vector<8xf32>
      %27 = vector.shape_cast %26 : vector<8xf32> to vector<8x1xf32>
      %cst_21 = arith.constant 6.400000e+01 : f32
      %28 = vector.broadcast %cst_21 : f32 to vector<8x1xf32>
      %29 = arith.divf %27, %28 : vector<8x1xf32>
      %30 = vector.broadcast %29 : vector<8x1xf32> to vector<8x64xf32>
      %31 = arith.subf %25, %30 : vector<8x64xf32>
      %32 = arith.mulf %31, %31 : vector<8x64xf32>
      %cst_22 = arith.constant dense<0.000000e+00> : vector<8xf32>
      %33 = vector.multi_reduction <add>, %32, %cst_22 [1] : vector<8x64xf32> to vector<8xf32>
      %34 = vector.shape_cast %33 : vector<8xf32> to vector<8x1xf32>
      %cst_23 = arith.constant 6.400000e+01 : f32
      %35 = vector.broadcast %cst_23 : f32 to vector<8x1xf32>
      %36 = arith.divf %34, %35 : vector<8x1xf32>
      %37 = vector.broadcast %29 : vector<8x1xf32> to vector<8x64xf32>
      %38 = arith.subf %25, %37 : vector<8x64xf32>
      %cst_24 = arith.constant 9.99999974E-6 : f32
      %39 = vector.broadcast %cst_24 : f32 to vector<8x1xf32>
      %40 = arith.addf %36, %39 : vector<8x1xf32>
      %41 = math.rsqrt %40 : vector<8x1xf32>
      %42 = vector.broadcast %41 : vector<8x1xf32> to vector<8x64xf32>
      %43 = arith.mulf %38, %42 : vector<8x64xf32>
      %c0_25 = arith.constant 0 : index
      %c0_26 = arith.constant 0 : index
      %44 = vector.load %arg7[%c0_25, %c0_26] : memref<1x64xf32, #tpu.memory_space<vmem>>, vector<1x64xf32>
      %45 = vector.broadcast %44 : vector<1x64xf32> to vector<8x64xf32>
      %46 = arith.mulf %43, %45 : vector<8x64xf32>
      %c0_27 = arith.constant 0 : index
      %c0_28 = arith.constant 0 : index
      %47 = vector.load %arg8[%c0_27, %c0_28] : memref<1x64xf32, #tpu.memory_space<vmem>>, vector<1x64xf32>
      %48 = vector.broadcast %47 : vector<1x64xf32> to vector<8x64xf32>
      %49 = arith.addf %46, %48 : vector<8x64xf32>
      %c0_29 = arith.constant 0 : index
      %c0_30 = arith.constant 0 : index
      %50 = vector.load %arg9[%c0_29, %c0_30] : memref<8x64xf32, #tpu.memory_space<vmem>>, vector<8x64xf32>
      tpu.vector_store %arg9[%c0_29, %c0_30], %49 {strides = array<i32>} : memref<8x64xf32, #tpu.memory_space<vmem>>, vector<8x64xf32>,
    } else {
    }
    return
  }
  func.func @transform_0(%arg0: i32, %arg1: i32) -> (i32, i32) {
    %c0_i32 = arith.constant 0 : i32
    %c0_i32_0 = arith.constant 0 : i32
    return %arg0, %c0_i32 : i32, i32
  }
  func.func @transform_1(%arg0: i32, %arg1: i32) -> (i32, i32) {
    %c0_i32 = arith.constant 0 : i32
    %c0_i32_0 = arith.constant 0 : i32
    return %c0_i32, %arg1 : i32, i32
  }
  func.func @transform_2(%arg0: i32, %arg1: i32) -> (i32, i32) {
    %c0_i32 = arith.constant 0 : i32
    %c0_i32_0 = arith.constant 0 : i32
    return %c0_i32, %arg1 : i32, i32
  }
  func.func @transform_3(%arg0: i32, %arg1: i32) -> (i32, i32) {
    %c0_i32 = arith.constant 0 : i32
    %c0_i32_0 = arith.constant 0 : i32
    return %arg1, %c0_i32 : i32, i32
  }
  func.func @transform_4(%arg0: i32, %arg1: i32) -> (i32, i32) {
    %c0_i32 = arith.constant 0 : i32
    %c0_i32_0 = arith.constant 0 : i32
    %c0_i32_1 = arith.constant 0 : i32
    return %c0_i32, %c0_i32_0 : i32, i32
  }
  func.func @transform_5(%arg0: i32, %arg1: i32) -> (i32, i32) {
    %c0_i32 = arith.constant 0 : i32
    %c0_i32_0 = arith.constant 0 : i32
    %c0_i32_1 = arith.constant 0 : i32
    return %c0_i32, %c0_i32_0 : i32, i32
  }
  func.func @transform_6(%arg0: i32, %arg1: i32) -> (i32, i32) {
    %c0_i32 = arith.constant 0 : i32
    %c0_i32_0 = arith.constant 0 : i32
    %c0_i32_1 = arith.constant 0 : i32
    return %c0_i32, %c0_i32_0 : i32, i32
  }
  func.func @transform_7(%arg0: i32, %arg1: i32) -> (i32, i32) {
    %c0_i32 = arith.constant 0 : i32
    %c0_i32_0 = arith.constant 0 : i32
    return %arg0, %c0_i32 : i32, i32
  }
}

</mosaic_0001>

<llo_original>
// kernel: decoder_layer.8
$region0: #{decoder_layer.8}
  #allocation0 [shape = 'u32[]', space=smem, size = 0x4, offset = 0x4, fixed_abs, tag = 'smem constant byte address 0x4 - core index']
  #allocation1 [shape = 'u32[144,128]{1,0:T(1,128)}', space=vmem, size = 0x12000, scoped, tag = 'internal scratch']
  %s0 = inlined_call_operand.hbm [shape: f32[16,64], index: 0, kind: input, shape index: {}]
  %s1 = inlined_call_operand.hbm [shape: bf16[64,192], index: 1, kind: input, shape index: {}]
  %s2 = inlined_call_operand.hbm [shape: f32[1,192], index: 2, kind: input, shape index: {}]
  %s3 = inlined_call_operand.hbm [shape: bf16[16,192], index: 3, kind: output, shape index: {}]
  %s4 = sld [smem:[#allocation0]]
  $region57: #{decoder_layer.8} parent=0
    _
  %s6 = ssub.s32 1, %s4
  %s7 = scalar_select 0, %s6, %s4
  $region1: #{decoder_layer.8} parent=0
    #allocation2 [shape = 'u8[8192]{0}', space=vmem, size = 0x2000, scoped, tag = 'input window, operand 0']
    #allocation3 [shape = 's32[2]{0}', space=sflag, size = 0x8, scoped, tag = 'scoped memory for decoder_layer.8']
    #allocation4 [shape = 's32[2]{0}', space=sflag, size = 0x8, scoped, tag = 'scoped memory for decoder_layer.8']
    #allocation5 [shape = 'u8[32768]{0}', space=vmem, size = 0x8000, scoped, tag = 'input window, operand 1, single buffered']
    #allocation6 [shape = 's32[1]{0}', space=sflag, size = 0x4, scoped, tag = 'scoped memory for decoder_layer.8']
    #allocation7 [shape = 'u8[1024]{0}', space=vmem, size = 0x400, scoped, tag = 'input window, operand 2, single buffered']
    #allocation8 [shape = 'u8[8192]{0}', space=vmem, size = 0x2000, scoped, tag = 'output window, operand 0']
    %8 = vsyncpa [#allocation3], 0
    %s9 = scalar_lea.sflag [#allocation3], 1
    %10 = vsyncpa %s9, 0
    %11 = vsyncpa [#allocation6], 0
    %12 = vsyncpa [#allocation4], 0
    %s13 = scalar_lea.sflag [#allocation4], 1
    %14 = vsyncpa %s13, 0
    loop: start=0, step=1, limit=4
    $region2: #{decoder_layer.8} parent=1 // loop_pre_header
      _
    $region3: #{decoder_layer.8} parent=1 // loop_header
      %s16 = sphi 0, %s20
      %p17 = scmp.ge.s32.totalorder %s16, 4
      %s26 = sphi 0, %s28
      %s29 = sphi 0, %s26
      %s30 = sphi 0, %s29
      %s46 = sphi 0, %s30
      %s50 = sphi 0, %s50
      %s52 = sphi 0, %s50
      %s53 = sphi 0, %s52
      %s67 = sphi 0, %s53
      %s71 = sphi 0, %s71
      %s73 = sphi 0, %s71
      %s74 = sphi 0, %s73
      %s88 = sphi 0, %s74
      %s94 = sphi 0, %s96
      %s97 = sphi 0, %s94
      %s98 = sphi 0, %s97
      %s114 = sphi 0, %s98
    $region4: #{decoder_layer.8} parent=1 // loop_header_branch
      %19 = sbr.rel (%p17) target = $region8
    $region5: #{decoder_layer.8} parent=1 // loop_body
      %s21 = ssub.s32 %s16, 1
      %s22 = ssub.s32 %s16, 2
      %s23 = sadd.s32 %s16, 1
      %s24 = ssub.s32 %s16, %s23
      %p25 = scmp.eq.s32.totalorder %s24, 0
      %s27 = sadd.s32 %s26, 1
      %s28 = scalar_select %p25, %s26, %s27
      %p31 = pneg %p25
      %p32 = scmp.eq.s32.totalorder %s16, 1
      %p33 = por %p31, %p32
      %p34 = scmp.ne.s32.totalorder %s26, %s29
      %p35 = scmp.eq.s32.totalorder %s16, 0
      %p36 = por %p34, %p35
      %p37 = scmp.ne.s32.totalorder %s26, %s29
      %p38 = scmp.eq.s32.totalorder %s21, 1
      %p39 = por %p37, %p38
      %p40 = scmp.ne.s32.totalorder %s29, %s30
      %p41 = scmp.eq.s32.totalorder %s21, 0
      %p42 = por %p40, %p41
      %p43 = scmp.ne.s32.totalorder %s29, %s30
      %p44 = scmp.eq.s32.totalorder %s22, 1
      %p45 = por %p43, %p44
      %p47 = scmp.ne.s32.totalorder %s30, %s46
      %p48 = scmp.eq.s32.totalorder %s22, 0
      %p49 = por %p47, %p48
      %s51 = sadd.s32 %s50, 1
      %p54 = scmp.eq.s32.totalorder %s16, 1
      %p55 = scmp.ne.s32.totalorder %s50, %s52
      %p56 = scmp.eq.s32.totalorder %s16, 0
      %p57 = por %p55, %p56
      %p58 = scmp.ne.s32.totalorder %s50, %s52
      %p59 = scmp.eq.s32.totalorder %s21, 1
      %p60 = por %p58, %p59
      %p61 = scmp.ne.s32.totalorder %s52, %s53
      %p62 = scmp.eq.s32.totalorder %s21, 0
      %p63 = por %p61, %p62
      %p64 = scmp.ne.s32.totalorder %s52, %s53
      %p65 = scmp.eq.s32.totalorder %s22, 1
      %p66 = por %p64, %p65
      %p68 = scmp.ne.s32.totalorder %s53, %s67
      %p69 = scmp.eq.s32.totalorder %s22, 0
      %p70 = por %p68, %p69
      %s72 = sadd.s32 %s71, 1
      %p75 = scmp.eq.s32.totalorder %s16, 1
      %p76 = scmp.ne.s32.totalorder %s71, %s73
      %p77 = scmp.eq.s32.totalorder %s16, 0
      %p78 = por %p76, %p77
      %p79 = scmp.ne.s32.totalorder %s71, %s73
      %p80 = scmp.eq.s32.totalorder %s21, 1
      %p81 = por %p79, %p80
      %p82 = scmp.ne.s32.totalorder %s73, %s74
      %p83 = scmp.eq.s32.totalorder %s21, 0
      %p84 = por %p82, %p83
      %p85 = scmp.ne.s32.totalorder %s73, %s74
      %p86 = scmp.eq.s32.totalorder %s22, 1
      %p87 = por %p85, %p86
      %p89 = scmp.ne.s32.totalorder %s74, %s88
      %p90 = scmp.eq.s32.totalorder %s22, 0
      %p91 = por %p89, %p90
      %s92 = ssub.s32 %s16, %s23
      %p93 = scmp.eq.s32.totalorder %s92, 0
      %s95 = sadd.s32 %s94, 1
      %s96 = scalar_select %p93, %s94, %s95
      %p99 = pneg %p93
      %p100 = scmp.eq.s32.totalorder %s16, 1
      %p101 = por %p99, %p100
      %p102 = scmp.ne.s32.totalorder %s94, %s97
      %p103 = scmp.eq.s32.totalorder %s16, 0
      %p104 = por %p102, %p103
      %p105 = scmp.ne.s32.totalorder %s94, %s97
      %p106 = scmp.eq.s32.totalorder %s21, 1
      %p107 = por %p105, %p106
      %p108 = scmp.ne.s32.totalorder %s97, %s98
      %p109 = scmp.eq.s32.totalorder %s21, 0
      %p110 = por %p108, %p109
      %p111 = scmp.ne.s32.totalorder %s97, %s98
      %p112 = scmp.eq.s32.totalorder %s22, 1
      %p113 = por %p111, %p112
      %p115 = scmp.ne.s32.totalorder %s98, %s114
      %p116 = scmp.eq.s32.totalorder %s22, 0
      %p117 = por %p115, %p116
      %p118 = scmp.le.s32.totalorder 1, %s16
      %p119 = scmp.lt.s32.totalorder %s16, 3
      %p120 = pnand %p118, %p119
      %p121 = pneg %p120
      // Predicated region
      $region9: #{decoder_layer.8} parent=5 // pred_check
        _
      $region10: #{decoder_layer.8} parent=5 // pred_check_branch
        %123 = sbr.rel (%p120) target = $region12
      $region11: #{decoder_layer.8} parent=5 // pred_region
        %s124 = ssub.s32 %s16, 1
        // Predicated region
        $region13: #{decoder_layer.8} parent=11 // pred_check
          %p125 = pneg %p63
        $region14: #{decoder_layer.8} parent=11 // pred_check_branch
          %127 = sbr.rel (%p125) target = $region16
        $region15: #{decoder_layer.8} parent=11 // pred_region
          %s129 = ssub.s32 1024, 1024
          %130 = vsyncadd [#allocation6], %s129
          %s131 = sshll.u32 [#allocation5], 4
          %s132 = int_to_ptr.vmem [resolvable:$true] %s131
          %137 = dma.hbm_to_vmem [thread:$0]  %s1, 1024, %s132, [#allocation6], 128, 128, 8
        $region16: #{decoder_layer.8} parent=11 // pred_fallthru
          _
        // Predicated region
        $region17: #{decoder_layer.8} parent=11 // pred_check
          %p138 = pneg %p84
        $region18: #{decoder_layer.8} parent=11 // pred_check_branch
          %140 = sbr.rel (%p138) target = $region20
        $region19: #{decoder_layer.8} parent=11 // pred_region
          %s142 = ssub.s32 32, 32
          %143 = vsyncadd [#allocation6], %s142
          %s145 = sshll.u32 [#allocation7], 4
          %s146 = int_to_ptr.vmem [resolvable:$true] %s145
          %148 = dma.hbm_to_vmem [thread:$0]  %s2, 32, %s146, [#allocation6]
        $region20: #{decoder_layer.8} parent=11 // pred_fallthru
          _
      $region12: #{decoder_layer.8} parent=5 // pred_fallthru
        _
      %p149 = scmp.lt.s32.totalorder %s16, 2
      // Predicated region
      $region21: #{decoder_layer.8} parent=5 // pred_check
        %p150 = pneg %p149
      $region22: #{decoder_layer.8} parent=5 // pred_check_branch
        %152 = sbr.rel (%p150) target = $region24
      $region23: #{decoder_layer.8} parent=5 // pred_region
        // Predicated region
        $region25: #{decoder_layer.8} parent=23 // pred_check
          %p153 = pneg %p36
        $region26: #{decoder_layer.8} parent=23 // pred_check_branch
          %155 = sbr.rel (%p153) target = $region28
        $region27: #{decoder_layer.8} parent=23 // pred_region
          %s156 = sand.u32 %s26, 1
          %s157 = scalar_lea.sflag [#allocation3], %s156
          %s158 = sand.u32 %s26, 1
          %s159 = smul.addr %s158, 8
          %s160 = scalar_lea.vmem [#allocation2], %s159
          %s162 = ssub.s32 128, 128
          %163 = vsyncadd %s157, %s162
          %s164 = smul.addr %s16, 128
          %s165 = scalar_lea.hbm %s0, %s164
          %s167 = sshll.u32 %s160, 4
          %s168 = int_to_ptr.vmem [resolvable:$true] %s167
          %170 = dma.hbm_to_vmem [thread:$0]  %s165, 128, %s168, %s157
        $region28: #{decoder_layer.8} parent=23 // pred_fallthru
          _
      $region24: #{decoder_layer.8} parent=5 // pred_fallthru
        _
      %p171 = scmp.le.s32.totalorder 1, %s16
      %p172 = scmp.lt.s32.totalorder %s16, 3
      %p173 = pnand %p171, %p172
      %p174 = pneg %p173
      // Predicated region
      $region29: #{decoder_layer.8} parent=5 // pred_check
        _
      $region30: #{decoder_layer.8} parent=5 // pred_check_branch
        %176 = sbr.rel (%p173) target = $region32
      $region31: #{decoder_layer.8} parent=5 // pred_region
        %s177 = ssub.s32 %s16, 1
        %s178 = sand.u32 %s29, 1
        %s179 = scalar_lea.sflag [#allocation3], %s178
        %s180 = sand.u32 %s29, 1
        %s181 = smul.addr %s180, 8
        %s182 = scalar_lea.vmem [#allocation2], %s181
        // Predicated region
        $region33: #{decoder_layer.8} parent=31 // pred_check
          %p183 = pneg %p42
        $region34: #{decoder_layer.8} parent=31 // pred_check_branch
          %185 = sbr.rel (%p183) target = $region36
        $region35: #{decoder_layer.8} parent=31 // pred_region
          %186 = dma.done %s179, 128
        $region36: #{decoder_layer.8} parent=31 // pred_fallthru
          _
        // Predicated region
        $region37: #{decoder_layer.8} parent=31 // pred_check
          %p187 = pneg %p63
        $region38: #{decoder_layer.8} parent=31 // pred_check_branch
          %189 = sbr.rel (%p187) target = $region40
        $region39: #{decoder_layer.8} parent=31 // pred_region
          %190 = dma.done [#allocation6], 1024
        $region40: #{decoder_layer.8} parent=31 // pred_fallthru
          _
        // Predicated region
        $region41: #{decoder_layer.8} parent=31 // pred_check
          %p191 = pneg %p84
        $region42: #{decoder_layer.8} parent=31 // pred_check_branch
          %193 = sbr.rel (%p191) target = $region44
        $region43: #{decoder_layer.8} parent=31 // pred_region
          %194 = dma.done [#allocation6], 32
        $region44: #{decoder_layer.8} parent=31 // pred_fallthru
          _
        %s195 = sand.u32 %s29, 1
        %s196 = scalar_lea.sflag [#allocation3], %s195
        %s197 = sand.u32 %s29, 1
        %s198 = smul.addr %s197, 8
        %s199 = scalar_lea.vmem [#allocation2], %s198
        %p200 = pneg %p42
        %p201 = pneg %p39
        %p202 = pneg %p63
        %p203 = pneg %p60
        %p204 = pneg %p84
        %p205 = pneg %p81
        %p206 = pneg %p110
        %p207 = pneg %p107
        %s208 = sand.u32 %s97, 1
        %s209 = scalar_lea.sflag [#allocation4], %s208
        %s210 = sand.u32 %s97, 1
        %s211 = smul.addr %s210, 8
        %s212 = scalar_lea.vmem [#allocation8], %s211
        %v214 = vld [vmem:[%s182] sm:$0xff]
        %v215 = vpack.c.bf16 %v214, %v214
        %v216 = vld [vmem:[#allocation5] sm:$0xff]
        %v217 = vld [vmem:[#allocation5 + $0x8] sm:$0xff]
        %v218 = vld [vmem:[#allocation5 + $0x10] sm:$0xff]
        %v219 = vld [vmem:[#allocation5 + $0x18] sm:$0xff]
        %v220 = vld [vmem:[#allocation5 + $0x20] sm:$0xff]
        %v221 = vld [vmem:[#allocation5 + $0x28] sm:$0xff]
        %v222 = vld [vmem:[#allocation5 + $0x30] sm:$0xff]
        %v223 = vld [vmem:[#allocation5 + $0x38] sm:$0xff]
        %v224 = vld [vmem:[#allocation7] sm:$0x3]
        %v226 = vlaneseq
        %v227 = vshrl.u32 %v226, 7
        %v228 = vsub.s32 0, %v227
        %v229 = vrot.slane %v224, %v228
        %v230 = vlaneseq
        %v231 = vshrl.u32 %v230, 7
        %v232 = vsub.s32 1, %v231
        %v233 = vrot.slane %v224, %v232
        %v244 = vunpack.c.l.b16 %v216
        %v245 = vunpack.c.h.b16 %v216
        %v246 = vunpack.c.l.b16 %v217
        %v247 = vunpack.c.h.b16 %v217
        %v248 = vunpack.c.l.b16 %v218
        %v249 = vunpack.c.h.b16 %v218
        %v250 = vunpack.c.l.b16 %v219
        %v251 = vunpack.c.h.b16 %v219
        %v252 = vunpack.c.l.b16 %v220
        %v253 = vunpack.c.h.b16 %v220
        %v254 = vunpack.c.l.b16 %v221
        %v255 = vunpack.c.h.b16 %v221
        %v256 = vunpack.c.l.b16 %v222
        %v257 = vunpack.c.h.b16 %v222
        %v258 = vunpack.c.l.b16 %v223
        %v259 = vunpack.c.h.b16 %v223
        %v260 = vpack.c.b16 %v246, %v244
        %v261 = vpack.c.b16 %v247, %v245
        %v262 = vpack.c.b16 %v250, %v248
        %v263 = vpack.c.b16 %v251, %v249
        %v264 = vpack.c.b16 %v254, %v252
        %v265 = vpack.c.b16 %v255, %v253
        %v266 = vpack.c.b16 %v258, %v256
        %v267 = vpack.c.b16 %v259, %v257
        %vm276 = vcmask 523264
        %v278 = vsel %vm276, %v215, 0
        %280 = vmatprep.subr.bf16.mxu0 %v261
        %281 = vmatpush1.bf16.msra.mxu0 %v260
        %282 = vmatprep.subr.bf16.mxu0 %v263
        %283 = vmatpush1.bf16.msra.mxu0 %v262
        %284 = vmatprep.subr.bf16.mxu0 %v265
        %285 = vmatpush1.bf16.msra.mxu0 %v264
        %286 = vmatprep.subr.bf16.mxu0 %v267
        %287 = vmatpush1.bf16.msra.mxu0 %v266
        %288 = vmatprep.subr.bf16.mxu0 0
        %289 = vmatpush1.bf16.msra.mxu0 0
        %290 = vmatprep.subr.bf16.mxu0 0
        %291 = vmatpush1.bf16.msra.mxu0 0
        %292 = vmatprep.subr.bf16.mxu0 0
        %293 = vmatpush1.bf16.msra.mxu0 0
        %294 = vmatprep.subr.bf16.mxu0 0
        %295 = vmatpush1.bf16.msra.mxu0 0
        %296 = vmatprep.subr.bf16.mxu0 0
        %297 = vmatpush1.bf16.msra.mxu0 0
        %298 = vmatprep.subr.bf16.mxu0 0
        %299 = vmatpush1.bf16.msra.mxu0 0
        %300 = vmatprep.subr.bf16.mxu0 0
        %301 = vmatpush1.bf16.msra.mxu0 0
        %302 = vmatprep.subr.bf16.mxu0 0
        %303 = vmatpush1.bf16.msra.mxu0 0
        %304 = vmatprep.subr.bf16.mxu0 0
        %305 = vmatpush1.bf16.msra.mxu0 0
        %306 = vmatprep.subr.bf16.mxu0 0
        %307 = vmatpush1.bf16.msra.mxu0 0
        %308 = vmatprep.subr.bf16.mxu0 0
        %309 = vmatpush1.bf16.msra.mxu0 0
        %310 = vmatprep.subr.bf16.mxu0 0
        %311 = vmatpush1.bf16.msra.mxu0 0
        %312 = vmatprep.mubr.bf16.mxu0 0
        %313 = vmatmul.mubr.bf16.gmra.mrb[0].mxu0 %v278
        %v314 = vpop.f32.mrb[0].mxu0
        %v315 = vadd.f32 %v229, %v314
        %v316 = vpop.f32.mrb[0].mxu0
        %v317 = vadd.f32 %v233, %v316
        %v318 = vpop.f32.mrb[0].mxu0
        %v319 = vpop.f32.mrb[0].mxu0
        %320 = vdwg.mxu0
        %v321 = vpack.c.bf16 %v315, %v315
        %v322 = vpack.c.bf16 %v317, %v317
        %v325 = vunpack.c.l.b16 %v321
        %v326 = vunpack.c.l.b16 %v322
        %v327 = vpack.c.b16 %v326, %v325
        %vm329 = vcmask 1043456
        %vm330 = vcmask 523268
        %vm331 = vmor %vm330, %vm329
        %332 = vst.msk [vmem:[%s212] sm:$0xff] %vm331, %v327
        %s333 = sand.u32 %s97, 1
        %s334 = scalar_lea.sflag [#allocation4], %s333
        %s335 = sand.u32 %s97, 1
        %s336 = smul.addr %s335, 8
        %s337 = scalar_lea.vmem [#allocation8], %s336
        // Predicated region
        $region45: #{decoder_layer.8} parent=31 // pred_check
          %p338 = pneg %p107
        $region46: #{decoder_layer.8} parent=31 // pred_check_branch
          %340 = sbr.rel (%p338) target = $region48
        $region47: #{decoder_layer.8} parent=31 // pred_region
          %s342 = ssub.s32 128, 128
          %343 = vsyncadd %s334, %s342
          %s344 = smul.addr %s21, 2
          %s345 = smul.addr %s344, 64
          %s346 = scalar_lea.hbm %s3, %s345
          %s348 = sshll.u32 %s337, 4
          %s349 = int_to_ptr.vmem [resolvable:$true] %s348
          %351 = dma.vmem_to_hbm [thread:$0]  %s349, 128, %s346, %s334
        $region48: #{decoder_layer.8} parent=31 // pred_fallthru
          _
      $region32: #{decoder_layer.8} parent=5 // pred_fallthru
        _
      %p352 = scmp.le.s32.totalorder 2, %s16
      // Predicated region
      $region49: #{decoder_layer.8} parent=5 // pred_check
        %p353 = pneg %p352
      $region50: #{decoder_layer.8} parent=5 // pred_check_branch
        %355 = sbr.rel (%p353) target = $region52
      $region51: #{decoder_layer.8} parent=5 // pred_region
        %s356 = ssub.s32 %s16, 2
        // Predicated region
        $region53: #{decoder_layer.8} parent=51 // pred_check
          %p357 = pneg %p113
        $region54: #{decoder_layer.8} parent=51 // pred_check_branch
          %359 = sbr.rel (%p357) target = $region56
        $region55: #{decoder_layer.8} parent=51 // pred_region
          %s360 = sand.u32 %s98, 1
          %s361 = scalar_lea.sflag [#allocation4], %s360
          %s362 = sand.u32 %s98, 1
          %s363 = smul.addr %s362, 8
          %s364 = scalar_lea.vmem [#allocation8], %s363
          %365 = dma.done %s361, 128
        $region56: #{decoder_layer.8} parent=51 // pred_fallthru
          _
      $region52: #{decoder_layer.8} parent=5 // pred_fallthru
        _
    $region6: #{decoder_layer.8} parent=1 // loop_footer
      %s20 = sadd.s32 1, %s16
    $region7: #{decoder_layer.8} parent=1 // loop_footer_branch
      %15 = sbr.rel target = $region3
    $region8: #{decoder_layer.8} parent=1 // loop_exit
      _
    %366 = vsyncpa [#allocation3], 1
    %s367 = scalar_lea.sflag [#allocation3], 1
    %368 = vsyncpa %s367, 1
    %369 = vsyncpa [#allocation6], 1
    %370 = vsyncpa [#allocation4], 1
    %s371 = scalar_lea.sflag [#allocation4], 1
    %372 = vsyncpa %s371, 1

// kernel: decoder_layer.9
$region0: #{decoder_layer.9}
  #allocation0 [shape = 'u32[]', space=smem, size = 0x4, offset = 0x4, fixed_abs, tag = 'smem constant byte address 0x4 - core index']
  #allocation1 [shape = 'u32[144,128]{1,0:T(1,128)}', space=vmem, size = 0x12000, scoped, tag = 'internal scratch']
  %s0 = inlined_call_operand.hbm [shape: bf16[2,8,192], index: 0, kind: input, shape index: {}, may-alias: {0,1}]
  %s1 = inlined_call_operand.hbm [shape: bf16[2,8,192], index: 1, kind: input, shape index: {}, may-alias: {0,1}]
  %s2 = inlined_call_operand.hbm [shape: bf16[2,8,64], index: 2, kind: output, shape index: {}]
  %s3 = sld [smem:[#allocation0]]
  $region49: #{decoder_layer.9} parent=0
    _
  %s5 = ssub.s32 1, %s3
  %s6 = scalar_select 0, %s5, %s3
  $region1: #{decoder_layer.9} parent=0
    #allocation2 [shape = 'u8[8192]{0}', space=vmem, size = 0x2000, scoped, tag = 'input window, operand 0']
    #allocation3 [shape = 's32[2]{0}', space=sflag, size = 0x8, scoped, tag = 'scoped memory for decoder_layer.9']
    #allocation4 [shape = 's32[2]{0}', space=sflag, size = 0x8, scoped, tag = 'scoped memory for decoder_layer.9']
    #allocation5 [shape = 'u8[8192]{0}', space=vmem, size = 0x2000, scoped, tag = 'input window, operand 1']
    #allocation6 [shape = 's32[2]{0}', space=sflag, size = 0x8, scoped, tag = 'scoped memory for decoder_layer.9']
    #allocation7 [shape = 'u8[4096]{0}', space=vmem, size = 0x1000, scoped, tag = 'output window, operand 0']
    %7 = vsyncpa [#allocation3], 0
    %s8 = scalar_lea.sflag [#allocation3], 1
    %9 = vsyncpa %s8, 0
    %10 = vsyncpa [#allocation6], 0
    %s11 = scalar_lea.sflag [#allocation6], 1
    %12 = vsyncpa %s11, 0
    %13 = vsyncpa [#allocation4], 0
    %s14 = scalar_lea.sflag [#allocation4], 1
    %15 = vsyncpa %s14, 0
    loop: start=0, step=1, limit=4
    $region2: #{decoder_layer.9} parent=1 // loop_pre_header
      _
    $region3: #{decoder_layer.9} parent=1 // loop_header
      %s17 = sphi 0, %s21
      %p18 = scmp.ge.s32.totalorder %s17, 4
      %s24 = sphi 0, %s36
      %s25 = sphi 0, %s32
      %s26 = sphi 0, %s24
      %s27 = sphi 0, %s25
      %s28 = sphi 0, %s26
      %s29 = sphi 0, %s27
      %s41 = sphi 0, %s43
      %s44 = sphi 0, %s41
      %s45 = sphi 0, %s44
      %s61 = sphi 0, %s45
      %s67 = sphi 0, %s69
      %s70 = sphi 0, %s67
      %s71 = sphi 0, %s70
      %s87 = sphi 0, %s71
      %s95 = sphi 0, %s97
      %s98 = sphi 0, %s95
      %s99 = sphi 0, %s98
      %s115 = sphi 0, %s99
    $region4: #{decoder_layer.9} parent=1 // loop_header_branch
      %20 = sbr.rel (%p18) target = $region8
    $region5: #{decoder_layer.9} parent=1 // loop_body
      %s22 = ssub.s32 %s17, 1
      %s23 = ssub.s32 %s17, 2
      %s30 = sadd.s32 1, %s25
      %p31 = scmp.ge.s32.totalorder %s30, 1
      %s32 = scalar_select %p31, 0, %s30
      %s33 = sadd.s32 1, %s24
      %s34 = scalar_select %p31, %s33, %s24
      %p35 = scmp.ge.s32.totalorder %s34, 2
      %s36 = scalar_select %p35, 0, %s34
      %s37 = ssub.s32 %s24, %s36
      %s38 = ssub.s32 %s25, %s32
      %s39 = sor.u32 %s37, %s38
      %p40 = scmp.eq.s32.totalorder %s39, 0
      %s42 = sadd.s32 %s41, 1
      %s43 = scalar_select %p40, %s41, %s42
      %p46 = pneg %p40
      %p47 = scmp.eq.s32.totalorder %s17, 1
      %p48 = por %p46, %p47
      %p49 = scmp.ne.s32.totalorder %s41, %s44
      %p50 = scmp.eq.s32.totalorder %s17, 0
      %p51 = por %p49, %p50
      %p52 = scmp.ne.s32.totalorder %s41, %s44
      %p53 = scmp.eq.s32.totalorder %s22, 1
      %p54 = por %p52, %p53
      %p55 = scmp.ne.s32.totalorder %s44, %s45
      %p56 = scmp.eq.s32.totalorder %s22, 0
      %p57 = por %p55, %p56
      %p58 = scmp.ne.s32.totalorder %s44, %s45
      %p59 = scmp.eq.s32.totalorder %s23, 1
      %p60 = por %p58, %p59
      %p62 = scmp.ne.s32.totalorder %s45, %s61
      %p63 = scmp.eq.s32.totalorder %s23, 0
      %p64 = por %p62, %p63
      %s65 = ssub.s32 %s24, %s36
      %p66 = scmp.eq.s32.totalorder %s65, 0
      %s68 = sadd.s32 %s67, 1
      %s69 = scalar_select %p66, %s67, %s68
      %p72 = pneg %p66
      %p73 = scmp.eq.s32.totalorder %s17, 1
      %p74 = por %p72, %p73
      %p75 = scmp.ne.s32.totalorder %s67, %s70
      %p76 = scmp.eq.s32.totalorder %s17, 0
      %p77 = por %p75, %p76
      %p78 = scmp.ne.s32.totalorder %s67, %s70
      %p79 = scmp.eq.s32.totalorder %s22, 1
      %p80 = por %p78, %p79
      %p81 = scmp.ne.s32.totalorder %s70, %s71
      %p82 = scmp.eq.s32.totalorder %s22, 0
      %p83 = por %p81, %p82
      %p84 = scmp.ne.s32.totalorder %s70, %s71
      %p85 = scmp.eq.s32.totalorder %s23, 1
      %p86 = por %p84, %p85
      %p88 = scmp.ne.s32.totalorder %s71, %s87
      %p89 = scmp.eq.s32.totalorder %s23, 0
      %p90 = por %p88, %p89
      %s91 = ssub.s32 %s24, %s36
      %s92 = ssub.s32 %s25, %s32
      %s93 = sor.u32 %s91, %s92
      %p94 = scmp.eq.s32.totalorder %s93, 0
      %s96 = sadd.s32 %s95, 1
      %s97 = scalar_select %p94, %s95, %s96
      %p100 = pneg %p94
      %p101 = scmp.eq.s32.totalorder %s17, 1
      %p102 = por %p100, %p101
      %p103 = scmp.ne.s32.totalorder %s95, %s98
      %p104 = scmp.eq.s32.totalorder %s17, 0
      %p105 = por %p103, %p104
      %p106 = scmp.ne.s32.totalorder %s95, %s98
      %p107 = scmp.eq.s32.totalorder %s22, 1
      %p108 = por %p106, %p107
      %p109 = scmp.ne.s32.totalorder %s98, %s99
      %p110 = scmp.eq.s32.totalorder %s22, 0
      %p111 = por %p109, %p110
      %p112 = scmp.ne.s32.totalorder %s98, %s99
      %p113 = scmp.eq.s32.totalorder %s23, 1
      %p114 = por %p112, %p113
      %p116 = scmp.ne.s32.totalorder %s99, %s115
      %p117 = scmp.eq.s32.totalorder %s23, 0
      %p118 = por %p116, %p117
      %p119 = scmp.le.s32.totalorder 1, %s17
      %p120 = scmp.lt.s32.totalorder %s17, 3
      %p121 = pnand %p119, %p120
      %p122 = pneg %p121
      // Predicated region
      $region9: #{decoder_layer.9} parent=5 // pred_check
        _
      $region10: #{decoder_layer.9} parent=5 // pred_check_branch
        %124 = sbr.rel (%p121) target = $region12
      $region11: #{decoder_layer.9} parent=5 // pred_region
        %s125 = ssub.s32 %s17, 1
      $region12: #{decoder_layer.9} parent=5 // pred_fallthru
        _
      %p126 = scmp.lt.s32.totalorder %s17, 2
      // Predicated region
      $region13: #{decoder_layer.9} parent=5 // pred_check
        %p127 = pneg %p126
      $region14: #{decoder_layer.9} parent=5 // pred_check_branch
        %129 = sbr.rel (%p127) target = $region16
      $region15: #{decoder_layer.9} parent=5 // pred_region
        // Predicated region
        $region17: #{decoder_layer.9} parent=15 // pred_check
          %p130 = pneg %p51
        $region18: #{decoder_layer.9} parent=15 // pred_check_branch
          %132 = sbr.rel (%p130) target = $region20
        $region19: #{decoder_layer.9} parent=15 // pred_region
          %s133 = sand.u32 %s41, 1
          %s134 = scalar_lea.sflag [#allocation3], %s133
          %s135 = sand.u32 %s41, 1
          %s136 = smul.addr %s135, 8
          %s137 = scalar_lea.vmem [#allocation2], %s136
          %s139 = ssub.s32 128, 128
          %140 = vsyncadd %s134, %s139
          %s141 = smul.addr %s25, 2
          %s142 = smul.addr %s24, 2
          %s143 = sadd.s32 %s141, %s142
          %s144 = smul.addr %s143, 64
          %s145 = scalar_lea.hbm %s0, %s144
          %s147 = sshll.u32 %s137, 4
          %s148 = int_to_ptr.vmem [resolvable:$true] %s147
          %150 = dma.hbm_to_vmem [thread:$0]  %s145, 128, %s148, %s134
        $region20: #{decoder_layer.9} parent=15 // pred_fallthru
          _
        // Predicated region
        $region21: #{decoder_layer.9} parent=15 // pred_check
          %p151 = pneg %p77
        $region22: #{decoder_layer.9} parent=15 // pred_check_branch
          %153 = sbr.rel (%p151) target = $region24
        $region23: #{decoder_layer.9} parent=15 // pred_region
          %s154 = sand.u32 %s67, 1
          %s155 = scalar_lea.sflag [#allocation6], %s154
          %s156 = sand.u32 %s67, 1
          %s157 = smul.addr %s156, 8
          %s158 = scalar_lea.vmem [#allocation5], %s157
          %s160 = ssub.s32 128, 128
          %161 = vsyncadd %s155, %s160
          %s162 = smul.addr %s24, 2
          %s163 = smul.addr %s162, 64
          %s164 = scalar_lea.hbm %s1, %s163
          %s166 = sshll.u32 %s158, 4
          %s167 = int_to_ptr.vmem [resolvable:$true] %s166
          %169 = dma.hbm_to_vmem [thread:$0]  %s164, 128, %s167, %s155
        $region24: #{decoder_layer.9} parent=15 // pred_fallthru
          _
      $region16: #{decoder_layer.9} parent=5 // pred_fallthru
        _
      %p170 = scmp.le.s32.totalorder 1, %s17
      %p171 = scmp.lt.s32.totalorder %s17, 3
      %p172 = pnand %p170, %p171
      %p173 = pneg %p172
      // Predicated region
      $region25: #{decoder_layer.9} parent=5 // pred_check
        _
      $region26: #{decoder_layer.9} parent=5 // pred_check_branch
        %175 = sbr.rel (%p172) target = $region28
      $region27: #{decoder_layer.9} parent=5 // pred_region
        %s176 = ssub.s32 %s17, 1
        %s177 = sand.u32 %s44, 1
        %s178 = scalar_lea.sflag [#allocation3], %s177
        %s179 = sand.u32 %s44, 1
        %s180 = smul.addr %s179, 8
        %s181 = scalar_lea.vmem [#allocation2], %s180
        // Predicated region
        $region29: #{decoder_layer.9} parent=27 // pred_check
          %p182 = pneg %p57
        $region30: #{decoder_layer.9} parent=27 // pred_check_branch
          %184 = sbr.rel (%p182) target = $region32
        $region31: #{decoder_layer.9} parent=27 // pred_region
          %185 = dma.done %s178, 128
        $region32: #{decoder_layer.9} parent=27 // pred_fallthru
          _
        %s186 = sand.u32 %s70, 1
        %s187 = scalar_lea.sflag [#allocation6], %s186
        %s188 = sand.u32 %s70, 1
        %s189 = smul.addr %s188, 8
        %s190 = scalar_lea.vmem [#allocation5], %s189
        // Predicated region
        $region33: #{decoder_layer.9} parent=27 // pred_check
          %p191 = pneg %p83
        $region34: #{decoder_layer.9} parent=27 // pred_check_branch
          %193 = sbr.rel (%p191) target = $region36
        $region35: #{decoder_layer.9} parent=27 // pred_region
          %194 = dma.done %s187, 128
        $region36: #{decoder_layer.9} parent=27 // pred_fallthru
          _
        %s195 = sand.u32 %s44, 1
        %s196 = scalar_lea.sflag [#allocation3], %s195
        %s197 = sand.u32 %s44, 1
        %s198 = smul.addr %s197, 8
        %s199 = scalar_lea.vmem [#allocation2], %s198
        %p200 = pneg %p57
        %p201 = pneg %p54
        %s202 = sand.u32 %s70, 1
        %s203 = scalar_lea.sflag [#allocation6], %s202
        %s204 = sand.u32 %s70, 1
        %s205 = smul.addr %s204, 8
        %s206 = scalar_lea.vmem [#allocation5], %s205
        %p207 = pneg %p83
        %p208 = pneg %p80
        %p209 = pneg %p111
        %p210 = pneg %p108
        %s211 = sand.u32 %s98, 1
        %s212 = scalar_lea.sflag [#allocation4], %s211
        %s213 = sand.u32 %s98, 1
        %s214 = smul.addr %s213, 4
        %s215 = scalar_lea.vmem [#allocation7], %s214
        %v217 = vld [vmem:[%s181] sm:$0xff]
        %v218 = vld [vmem:[%s190] sm:$0xff]
        %v220 = vunpack.c.l.b16 %v218
        %v221 = vpack.c.b16 %v220, %v220
        %222 = vrot.lane.b32.xlu0 %v221, 64
        %v223 = vpop.permute.xlu0 %222
        %vm224 = vcmask 130048
        %v226 = vsel %vm224, %v217, 0
        %v229 = vsel %vm224, %v223, 0
        %231 = vmatprep.subr.bf16.mxu0 0
        %232 = vmatpush1.bf16.xpose.msra.mxu0 %v229
        %233 = vmatprep.subr.bf16.mxu0 0
        %234 = vmatpush1.bf16.xpose.msra.mxu0 0
        %235 = vmatprep.subr.bf16.mxu0 0
        %236 = vmatpush1.bf16.xpose.msra.mxu0 0
        %237 = vmatprep.subr.bf16.mxu0 0
        %238 = vmatpush1.bf16.xpose.msra.mxu0 0
        %239 = vmatprep.subr.bf16.mxu0 0
        %240 = vmatpush1.bf16.xpose.msra.mxu0 0
        %241 = vmatprep.subr.bf16.mxu0 0
        %242 = vmatpush1.bf16.xpose.msra.mxu0 0
        %243 = vmatprep.subr.bf16.mxu0 0
        %244 = vmatpush1.bf16.xpose.msra.mxu0 0
        %245 = vmatprep.subr.bf16.mxu0 0
        %246 = vmatpush1.bf16.xpose.msra.mxu0 0
        %247 = vmatprep.subr.bf16.mxu0 0
        %248 = vmatpush1.bf16.xpose.msra.mxu0 0
        %249 = vmatprep.subr.bf16.mxu0 0
        %250 = vmatpush1.bf16.xpose.msra.mxu0 0
        %251 = vmatprep.subr.bf16.mxu0 0
        %252 = vmatpush1.bf16.xpose.msra.mxu0 0
        %253 = vmatprep.subr.bf16.mxu0 0
        %254 = vmatpush1.bf16.xpose.msra.mxu0 0
        %255 = vmatprep.subr.bf16.mxu0 0
        %256 = vmatpush1.bf16.xpose.msra.mxu0 0
        %257 = vmatprep.subr.bf16.mxu0 0
        %258 = vmatpush1.bf16.xpose.msra.mxu0 0
        %259 = vmatprep.subr.bf16.mxu0 0
        %260 = vmatpush1.bf16.xpose.msra.mxu0 0
        %261 = vmatprep.subr.bf16.mxu0 0
        %262 = vmatpush1.bf16.xpose.msra.mxu0 0
        %263 = vmatprep.mubr.bf16.mxu0 0
        %264 = vmatmul.mubr.bf16.gmra.mrb[0].mxu0 %v226
        %v265 = vpop.f32.mrb[0].mxu0
        %v266 = vadd.f32 0.0, %v265
        %v267 = vpop.f32.mrb[0].mxu0
        %v268 = vpop.f32.mrb[0].mxu0
        %v269 = vpop.f32.mrb[0].mxu0
        %270 = vdwg.mxu0
        %vm271 = vcmask 64512
        %v272 = vsel %vm271, %v266, -inf
        %273 = vmax.xlane.f32.xlu0 %v272
        %v274 = vpop.xlane.xlu0 %273
        %v275 = vsub.f32 %v266, %v274
        %v276 = vmul.f32 %v275, 1.442695
        %v277 = vpow.pop %v276
        %v278 = vsel %vm271, %v277, 0.0
        %279 = vadd.xlane.f32.xlu0 %v278
        %v280 = vpop.xlane.xlu0 %279
        %v281 = vrcp.pop %v280
        %v282 = vmul.f32 %v277, %v281
        %v283 = vpack.c.bf16 %v282, %v282
        %v284 = vunpack.c.h.b16 %v218
        %v285 = vpack.c.b16 %v284, %v284
        %v287 = vsel %vm271, %v283, 0
        %vm289 = vcmask 1043456
        %v291 = vsel %vm289, %v285, 0
        %293 = vmatprep.subr.bf16.mxu0 0
        %294 = vmatpush1.bf16.msra.mxu0 %v291
        %295 = vmatprep.subr.bf16.mxu0 0
        %296 = vmatpush1.bf16.msra.mxu0 0
        %297 = vmatprep.subr.bf16.mxu0 0
        %298 = vmatpush1.bf16.msra.mxu0 0
        %299 = vmatprep.subr.bf16.mxu0 0
        %300 = vmatpush1.bf16.msra.mxu0 0
        %301 = vmatprep.subr.bf16.mxu0 0
        %302 = vmatpush1.bf16.msra.mxu0 0
        %303 = vmatprep.subr.bf16.mxu0 0
        %304 = vmatpush1.bf16.msra.mxu0 0
        %305 = vmatprep.subr.bf16.mxu0 0
        %306 = vmatpush1.bf16.msra.mxu0 0
        %307 = vmatprep.subr.bf16.mxu0 0
        %308 = vmatpush1.bf16.msra.mxu0 0
        %309 = vmatprep.subr.bf16.mxu0 0
        %310 = vmatpush1.bf16.msra.mxu0 0
        %311 = vmatprep.subr.bf16.mxu0 0
        %312 = vmatpush1.bf16.msra.mxu0 0
        %313 = vmatprep.subr.bf16.mxu0 0
        %314 = vmatpush1.bf16.msra.mxu0 0
        %315 = vmatprep.subr.bf16.mxu0 0
        %316 = vmatpush1.bf16.msra.mxu0 0
        %317 = vmatprep.subr.bf16.mxu0 0
        %318 = vmatpush1.bf16.msra.mxu0 0
        %319 = vmatprep.subr.bf16.mxu0 0
        %320 = vmatpush1.bf16.msra.mxu0 0
        %321 = vmatprep.subr.bf16.mxu0 0
        %322 = vmatpush1.bf16.msra.mxu0 0
        %323 = vmatprep.subr.bf16.mxu0 0
        %324 = vmatpush1.bf16.msra.mxu0 0
        %325 = vmatprep.mubr.bf16.mxu0 0
        %326 = vmatmul.mubr.bf16.gmra.mrb[0].mxu0 %v287
        %v327 = vpop.f32.mrb[0].mxu0
        %v328 = vadd.f32 0.0, %v327
        %v329 = vpop.f32.mrb[0].mxu0
        %v330 = vpop.f32.mrb[0].mxu0
        %v331 = vpop.f32.mrb[0].mxu0
        %332 = vdwg.mxu0
        %v334 = vunpack.c.l.b16 %v217
        %v335 = vpack.c.b16 %v334, %v334
        %336 = vrot.lane.b32.xlu0 %v335, 112
        %v337 = vpop.permute.xlu0 %336
        %338 = vrot.lane.b32.xlu0 %v221, 48
        %v339 = vpop.permute.xlu0 %338
        %v341 = vsel %vm224, %v337, 0
        %v344 = vsel %vm224, %v339, 0
        %346 = vmatprep.subr.bf16.mxu0 0
        %347 = vmatpush1.bf16.xpose.msra.mxu0 %v344
        %348 = vmatprep.subr.bf16.mxu0 0
        %349 = vmatpush1.bf16.xpose.msra.mxu0 0
        %350 = vmatprep.subr.bf16.mxu0 0
        %351 = vmatpush1.bf16.xpose.msra.mxu0 0
        %352 = vmatprep.subr.bf16.mxu0 0
        %353 = vmatpush1.bf16.xpose.msra.mxu0 0
        %354 = vmatprep.subr.bf16.mxu0 0
        %355 = vmatpush1.bf16.xpose.msra.mxu0 0
        %356 = vmatprep.subr.bf16.mxu0 0
        %357 = vmatpush1.bf16.xpose.msra.mxu0 0
        %358 = vmatprep.subr.bf16.mxu0 0
        %359 = vmatpush1.bf16.xpose.msra.mxu0 0
        %360 = vmatprep.subr.bf16.mxu0 0
        %361 = vmatpush1.bf16.xpose.msra.mxu0 0
        %362 = vmatprep.subr.bf16.mxu0 0
        %363 = vmatpush1.bf16.xpose.msra.mxu0 0
        %364 = vmatprep.subr.bf16.mxu0 0
        %365 = vmatpush1.bf16.xpose.msra.mxu0 0
        %366 = vmatprep.subr.bf16.mxu0 0
        %367 = vmatpush1.bf16.xpose.msra.mxu0 0
        %368 = vmatprep.subr.bf16.mxu0 0
        %369 = vmatpush1.bf16.xpose.msra.mxu0 0
        %370 = vmatprep.subr.bf16.mxu0 0
        %371 = vmatpush1.bf16.xpose.msra.mxu0 0
        %372 = vmatprep.subr.bf16.mxu0 0
        %373 = vmatpush1.bf16.xpose.msra.mxu0 0
        %374 = vmatprep.subr.bf16.mxu0 0
        %375 = vmatpush1.bf16.xpose.msra.mxu0 0
        %376 = vmatprep.subr.bf16.mxu0 0
        %377 = vmatpush1.bf16.xpose.msra.mxu0 0
        %378 = vmatprep.mubr.bf16.mxu0 0
        %379 = vmatmul.mubr.bf16.gmra.mrb[0].mxu0 %v341
        %v380 = vpop.f32.mrb[0].mxu0
        %v381 = vadd.f32 0.0, %v380
        %v382 = vpop.f32.mrb[0].mxu0
        %v383 = vpop.f32.mrb[0].mxu0
        %v384 = vpop.f32.mrb[0].mxu0
        %385 = vdwg.mxu0
        %v386 = vsel %vm271, %v381, -inf
        %387 = vmax.xlane.f32.xlu0 %v386
        %v388 = vpop.xlane.xlu0 %387
        %v389 = vsub.f32 %v381, %v388
        %v390 = vmul.f32 %v389, 1.442695
        %v391 = vpow.pop %v390
        %v392 = vsel %vm271, %v391, 0.0
        %393 = vadd.xlane.f32.xlu0 %v392
        %v394 = vpop.xlane.xlu0 %393
        %v395 = vrcp.pop %v394
        %v396 = vmul.f32 %v391, %v395
        %v397 = vpack.c.bf16 %v396, %v396
        %398 = vrot.lane.b32.xlu0 %v285, 112
        %v399 = vpop.permute.xlu0 %398
        %v401 = vsel %vm271, %v397, 0
        %v404 = vsel %vm289, %v399, 0
        %406 = vmatprep.subr.bf16.mxu0 0
        %407 = vmatpush1.bf16.msra.mxu0 %v404
        %408 = vmatprep.subr.bf16.mxu0 0
        %409 = vmatpush1.bf16.msra.mxu0 0
        %410 = vmatprep.subr.bf16.mxu0 0
        %411 = vmatpush1.bf16.msra.mxu0 0
        %412 = vmatprep.subr.bf16.mxu0 0
        %413 = vmatpush1.bf16.msra.mxu0 0
        %414 = vmatprep.subr.bf16.mxu0 0
        %415 = vmatpush1.bf16.msra.mxu0 0
        %416 = vmatprep.subr.bf16.mxu0 0
        %417 = vmatpush1.bf16.msra.mxu0 0
        %418 = vmatprep.subr.bf16.mxu0 0
        %419 = vmatpush1.bf16.msra.mxu0 0
        %420 = vmatprep.subr.bf16.mxu0 0
        %421 = vmatpush1.bf16.msra.mxu0 0
        %422 = vmatprep.subr.bf16.mxu0 0
        %423 = vmatpush1.bf16.msra.mxu0 0
        %424 = vmatprep.subr.bf16.mxu0 0
        %425 = vmatpush1.bf16.msra.mxu0 0
        %426 = vmatprep.subr.bf16.mxu0 0
        %427 = vmatpush1.bf16.msra.mxu0 0
        %428 = vmatprep.subr.bf16.mxu0 0
        %429 = vmatpush1.bf16.msra.mxu0 0
        %430 = vmatprep.subr.bf16.mxu0 0
        %431 = vmatpush1.bf16.msra.mxu0 0
        %432 = vmatprep.subr.bf16.mxu0 0
        %433 = vmatpush1.bf16.msra.mxu0 0
        %434 = vmatprep.subr.bf16.mxu0 0
        %435 = vmatpush1.bf16.msra.mxu0 0
        %436 = vmatprep.subr.bf16.mxu0 0
        %437 = vmatpush1.bf16.msra.mxu0 0
        %438 = vmatprep.mubr.bf16.mxu0 0
        %439 = vmatmul.mubr.bf16.gmra.mrb[0].mxu0 %v401
        %v440 = vpop.f32.mrb[0].mxu0
        %v441 = vadd.f32 0.0, %v440
        %v442 = vpop.f32.mrb[0].mxu0
        %v443 = vpop.f32.mrb[0].mxu0
        %v444 = vpop.f32.mrb[0].mxu0
        %445 = vdwg.mxu0
        %446 = vrot.lane.b32.xlu0 %v335, 96
        %v447 = vpop.permute.xlu0 %446
        %448 = vrot.lane.b32.xlu0 %v221, 32
        %v449 = vpop.permute.xlu0 %448
        %v451 = vsel %vm224, %v447, 0
        %v454 = vsel %vm224, %v449, 0
        %456 = vmatprep.subr.bf16.mxu0 0
        %457 = vmatpush1.bf16.xpose.msra.mxu0 %v454
        %458 = vmatprep.subr.bf16.mxu0 0
        %459 = vmatpush1.bf16.xpose.msra.mxu0 0
        %460 = vmatprep.subr.bf16.mxu0 0
        %461 = vmatpush1.bf16.xpose.msra.mxu0 0
        %462 = vmatprep.subr.bf16.mxu0 0
        %463 = vmatpush1.bf16.xpose.msra.mxu0 0
        %464 = vmatprep.subr.bf16.mxu0 0
        %465 = vmatpush1.bf16.xpose.msra.mxu0 0
        %466 = vmatprep.subr.bf16.mxu0 0
        %467 = vmatpush1.bf16.xpose.msra.mxu0 0
        %468 = vmatprep.subr.bf16.mxu0 0
        %469 = vmatpush1.bf16.xpose.msra.mxu0 0
        %470 = vmatprep.subr.bf16.mxu0 0
        %471 = vmatpush1.bf16.xpose.msra.mxu0 0
        %472 = vmatprep.subr.bf16.mxu0 0
        %473 = vmatpush1.bf16.xpose.msra.mxu0 0
        %474 = vmatprep.subr.bf16.mxu0 0
        %475 = vmatpush1.bf16.xpose.msra.mxu0 0
        %476 = vmatprep.subr.bf16.mxu0 0
        %477 = vmatpush1.bf16.xpose.msra.mxu0 0
        %478 = vmatprep.subr.bf16.mxu0 0
        %479 = vmatpush1.bf16.xpose.msra.mxu0 0
        %480 = vmatprep.subr.bf16.mxu0 0
        %481 = vmatpush1.bf16.xpose.msra.mxu0 0
        %482 = vmatprep.subr.bf16.mxu0 0
        %483 = vmatpush1.bf16.xpose.msra.mxu0 0
        %484 = vmatprep.subr.bf16.mxu0 0
        %485 = vmatpush1.bf16.xpose.msra.mxu0 0
        %486 = vmatprep.subr.bf16.mxu0 0
        %487 = vmatpush1.bf16.xpose.msra.mxu0 0
        %488 = vmatprep.mubr.bf16.mxu0 0
        %489 = vmatmul.mubr.bf16.gmra.mrb[0].mxu0 %v451
        %v490 = vpop.f32.mrb[0].mxu0
        %v491 = vadd.f32 0.0, %v490
        %v492 = vpop.f32.mrb[0].mxu0
        %v493 = vpop.f32.mrb[0].mxu0
        %v494 = vpop.f32.mrb[0].mxu0
        %495 = vdwg.mxu0
        %v496 = vsel %vm271, %v491, -inf
        %497 = vmax.xlane.f32.xlu0 %v496
        %v498 = vpop.xlane.xlu0 %497
        %v499 = vsub.f32 %v491, %v498
        %v500 = vmul.f32 %v499, 1.442695
        %v501 = vpow.pop %v500
        %v502 = vsel %vm271, %v501, 0.0
        %503 = vadd.xlane.f32.xlu0 %v502
        %v504 = vpop.xlane.xlu0 %503
        %v505 = vrcp.pop %v504
        %v506 = vmul.f32 %v501, %v505
        %v507 = vpack.c.bf16 %v506, %v506
        %508 = vrot.lane.b32.xlu0 %v285, 96
        %v509 = vpop.permute.xlu0 %508
        %v511 = vsel %vm271, %v507, 0
        %v514 = vsel %vm289, %v509, 0
        %516 = vmatprep.subr.bf16.mxu0 0
        %517 = vmatpush1.bf16.msra.mxu0 %v514
        %518 = vmatprep.subr.bf16.mxu0 0
        %519 = vmatpush1.bf16.msra.mxu0 0
        %520 = vmatprep.subr.bf16.mxu0 0
        %521 = vmatpush1.bf16.msra.mxu0 0
        %522 = vmatprep.subr.bf16.mxu0 0
        %523 = vmatpush1.bf16.msra.mxu0 0
        %524 = vmatprep.subr.bf16.mxu0 0
        %525 = vmatpush1.bf16.msra.mxu0 0
        %526 = vmatprep.subr.bf16.mxu0 0
        %527 = vmatpush1.bf16.msra.mxu0 0
        %528 = vmatprep.subr.bf16.mxu0 0
        %529 = vmatpush1.bf16.msra.mxu0 0
        %530 = vmatprep.subr.bf16.mxu0 0
        %531 = vmatpush1.bf16.msra.mxu0 0
        %532 = vmatprep.subr.bf16.mxu0 0
        %533 = vmatpush1.bf16.msra.mxu0 0
        %534 = vmatprep.subr.bf16.mxu0 0
        %535 = vmatpush1.bf16.msra.mxu0 0
        %536 = vmatprep.subr.bf16.mxu0 0
        %537 = vmatpush1.bf16.msra.mxu0 0
        %538 = vmatprep.subr.bf16.mxu0 0
        %539 = vmatpush1.bf16.msra.mxu0 0
        %540 = vmatprep.subr.bf16.mxu0 0
        %541 = vmatpush1.bf16.msra.mxu0 0
        %542 = vmatprep.subr.bf16.mxu0 0
        %543 = vmatpush1.bf16.msra.mxu0 0
        %544 = vmatprep.subr.bf16.mxu0 0
        %545 = vmatpush1.bf16.msra.mxu0 0
        %546 = vmatprep.subr.bf16.mxu0 0
        %547 = vmatpush1.bf16.msra.mxu0 0
        %548 = vmatprep.mubr.bf16.mxu0 0
        %549 = vmatmul.mubr.bf16.gmra.mrb[0].mxu0 %v511
        %v550 = vpop.f32.mrb[0].mxu0
        %v551 = vadd.f32 0.0, %v550
        %v552 = vpop.f32.mrb[0].mxu0
        %v553 = vpop.f32.mrb[0].mxu0
        %v554 = vpop.f32.mrb[0].mxu0
        %555 = vdwg.mxu0
        %556 = vrot.lane.b32.xlu0 %v335, 80
        %v557 = vpop.permute.xlu0 %556
        %558 = vrot.lane.b32.xlu0 %v221, 16
        %v559 = vpop.permute.xlu0 %558
        %v561 = vsel %vm224, %v557, 0
        %v564 = vsel %vm224, %v559, 0
        %566 = vmatprep.subr.bf16.mxu0 0
        %567 = vmatpush1.bf16.xpose.msra.mxu0 %v564
        %568 = vmatprep.subr.bf16.mxu0 0
        %569 = vmatpush1.bf16.xpose.msra.mxu0 0
        %570 = vmatprep.subr.bf16.mxu0 0
        %571 = vmatpush1.bf16.xpose.msra.mxu0 0
        %572 = vmatprep.subr.bf16.mxu0 0
        %573 = vmatpush1.bf16.xpose.msra.mxu0 0
        %574 = vmatprep.subr.bf16.mxu0 0
        %575 = vmatpush1.bf16.xpose.msra.mxu0 0
        %576 = vmatprep.subr.bf16.mxu0 0
        %577 = vmatpush1.bf16.xpose.msra.mxu0 0
        %578 = vmatprep.subr.bf16.mxu0 0
        %579 = vmatpush1.bf16.xpose.msra.mxu0 0
        %580 = vmatprep.subr.bf16.mxu0 0
        %581 = vmatpush1.bf16.xpose.msra.mxu0 0
        %582 = vmatprep.subr.bf16.mxu0 0
        %583 = vmatpush1.bf16.xpose.msra.mxu0 0
        %584 = vmatprep.subr.bf16.mxu0 0
        %585 = vmatpush1.bf16.xpose.msra.mxu0 0
        %586 = vmatprep.subr.bf16.mxu0 0
        %587 = vmatpush1.bf16.xpose.msra.mxu0 0
        %588 = vmatprep.subr.bf16.mxu0 0
        %589 = vmatpush1.bf16.xpose.msra.mxu0 0
        %590 = vmatprep.subr.bf16.mxu0 0
        %591 = vmatpush1.bf16.xpose.msra.mxu0 0
        %592 = vmatprep.subr.bf16.mxu0 0
        %593 = vmatpush1.bf16.xpose.msra.mxu0 0
        %594 = vmatprep.subr.bf16.mxu0 0
        %595 = vmatpush1.bf16.xpose.msra.mxu0 0
        %596 = vmatprep.subr.bf16.mxu0 0
        %597 = vmatpush1.bf16.xpose.msra.mxu0 0
        %598 = vmatprep.mubr.bf16.mxu0 0
        %599 = vmatmul.mubr.bf16.gmra.mrb[0].mxu0 %v561
        %v600 = vpop.f32.mrb[0].mxu0
        %v601 = vadd.f32 0.0, %v600
        %v602 = vpop.f32.mrb[0].mxu0
        %v603 = vpop.f32.mrb[0].mxu0
        %v604 = vpop.f32.mrb[0].mxu0
        %605 = vdwg.mxu0
        %v606 = vsel %vm271, %v601, -inf
        %607 = vmax.xlane.f32.xlu0 %v606
        %v608 = vpop.xlane.xlu0 %607
        %v609 = vsub.f32 %v601, %v608
        %v610 = vmul.f32 %v609, 1.442695
        %v611 = vpow.pop %v610
        %v612 = vsel %vm271, %v611, 0.0
        %613 = vadd.xlane.f32.xlu0 %v612
        %v614 = vpop.xlane.xlu0 %613
        %v615 = vrcp.pop %v614
        %v616 = vmul.f32 %v611, %v615
        %v617 = vpack.c.bf16 %v616, %v616
        %618 = vrot.lane.b32.xlu0 %v285, 80
        %v619 = vpop.permute.xlu0 %618
        %v621 = vsel %vm271, %v617, 0
        %v624 = vsel %vm289, %v619, 0
        %626 = vmatprep.subr.bf16.mxu0 0
        %627 = vmatpush1.bf16.msra.mxu0 %v624
        %628 = vmatprep.subr.bf16.mxu0 0
        %629 = vmatpush1.bf16.msra.mxu0 0
        %630 = vmatprep.subr.bf16.mxu0 0
        %631 = vmatpush1.bf16.msra.mxu0 0
        %632 = vmatprep.subr.bf16.mxu0 0
        %633 = vmatpush1.bf16.msra.mxu0 0
        %634 = vmatprep.subr.bf16.mxu0 0
        %635 = vmatpush1.bf16.msra.mxu0 0
        %636 = vmatprep.subr.bf16.mxu0 0
        %637 = vmatpush1.bf16.msra.mxu0 0
        %638 = vmatprep.subr.bf16.mxu0 0
        %639 = vmatpush1.bf16.msra.mxu0 0
        %640 = vmatprep.subr.bf16.mxu0 0
        %641 = vmatpush1.bf16.msra.mxu0 0
        %642 = vmatprep.subr.bf16.mxu0 0
        %643 = vmatpush1.bf16.msra.mxu0 0
        %644 = vmatprep.subr.bf16.mxu0 0
        %645 = vmatpush1.bf16.msra.mxu0 0
        %646 = vmatprep.subr.bf16.mxu0 0
        %647 = vmatpush1.bf16.msra.mxu0 0
        %648 = vmatprep.subr.bf16.mxu0 0
        %649 = vmatpush1.bf16.msra.mxu0 0
        %650 = vmatprep.subr.bf16.mxu0 0
        %651 = vmatpush1.bf16.msra.mxu0 0
        %652 = vmatprep.subr.bf16.mxu0 0
        %653 = vmatpush1.bf16.msra.mxu0 0
        %654 = vmatprep.subr.bf16.mxu0 0
        %655 = vmatpush1.bf16.msra.mxu0 0
        %656 = vmatprep.subr.bf16.mxu0 0
        %657 = vmatpush1.bf16.msra.mxu0 0
        %658 = vmatprep.mubr.bf16.mxu0 0
        %659 = vmatmul.mubr.bf16.gmra.mrb[0].mxu0 %v621
        %v660 = vpop.f32.mrb[0].mxu0
        %v661 = vadd.f32 0.0, %v660
        %v662 = vpop.f32.mrb[0].mxu0
        %v663 = vpop.f32.mrb[0].mxu0
        %v664 = vpop.f32.mrb[0].mxu0
        %665 = vdwg.mxu0
        %667 = vrot.lane.b32.xlu0 %v441, 16
        %v668 = vpop.permute.xlu0 %667
        %671 = vrot.lane.b32.xlu0 %v551, 32
        %v672 = vpop.permute.xlu0 %671
        %675 = vrot.lane.b32.xlu0 %v661, 48
        %v676 = vpop.permute.xlu0 %675
        %v678 = vsel %vm224, %v328, %v668
        %vm679 = vcmask 261120
        %v680 = vsel %vm679, %v678, %v672
        %vm681 = vcmask 392192
        %v682 = vsel %vm681, %v680, %v676
        %v683 = vpack.c.bf16 %v682, %v682
        %vm684 = vcmask 519168
        %685 = vst.msk [vmem:[%s215] sm:$0xf] %vm684, %v683
        %s686 = sand.u32 %s98, 1
        %s687 = scalar_lea.sflag [#allocation4], %s686
        %s688 = sand.u32 %s98, 1
        %s689 = smul.addr %s688, 4
        %s690 = scalar_lea.vmem [#allocation7], %s689
        // Predicated region
        $region37: #{decoder_layer.9} parent=27 // pred_check
          %p691 = pneg %p108
        $region38: #{decoder_layer.9} parent=27 // pred_check_branch
          %693 = sbr.rel (%p691) target = $region40
        $region39: #{decoder_layer.9} parent=27 // pred_region
          %s695 = ssub.s32 64, 64
          %696 = vsyncadd %s687, %s695
          %s697 = sadd.s32 %s27, %s26
          %s698 = smul.addr %s697, 64
          %s699 = scalar_lea.hbm %s2, %s698
          %s701 = sshll.u32 %s690, 4
          %s702 = int_to_ptr.vmem [resolvable:$true] %s701
          %704 = dma.vmem_to_hbm [thread:$0]  %s702, 64, %s699, %s687
        $region40: #{decoder_layer.9} parent=27 // pred_fallthru
          _
      $region28: #{decoder_layer.9} parent=5 // pred_fallthru
        _
      %p705 = scmp.le.s32.totalorder 2, %s17
      // Predicated region
      $region41: #{decoder_layer.9} parent=5 // pred_check
        %p706 = pneg %p705
      $region42: #{decoder_layer.9} parent=5 // pred_check_branch
        %708 = sbr.rel (%p706) target = $region44
      $region43: #{decoder_layer.9} parent=5 // pred_region
        %s709 = ssub.s32 %s17, 2
        // Predicated region
        $region45: #{decoder_layer.9} parent=43 // pred_check
          %p710 = pneg %p114
        $region46: #{decoder_layer.9} parent=43 // pred_check_branch
          %712 = sbr.rel (%p710) target = $region48
        $region47: #{decoder_layer.9} parent=43 // pred_region
          %s713 = sand.u32 %s99, 1
          %s714 = scalar_lea.sflag [#allocation4], %s713
          %s715 = sand.u32 %s99, 1
          %s716 = smul.addr %s715, 4
          %s717 = scalar_lea.vmem [#allocation7], %s716
          %718 = dma.done %s714, 64
        $region48: #{decoder_layer.9} parent=43 // pred_fallthru
          _
      $region44: #{decoder_layer.9} parent=5 // pred_fallthru
        _
    $region6: #{decoder_layer.9} parent=1 // loop_footer
      %s21 = sadd.s32 1, %s17
    $region7: #{decoder_layer.9} parent=1 // loop_footer_branch
      %16 = sbr.rel target = $region3
    $region8: #{decoder_layer.9} parent=1 // loop_exit
      _
    %719 = vsyncpa [#allocation3], 1
    %s720 = scalar_lea.sflag [#allocation3], 1
    %721 = vsyncpa %s720, 1
    %722 = vsyncpa [#allocation6], 1
    %s723 = scalar_lea.sflag [#allocation6], 1
    %724 = vsyncpa %s723, 1
    %725 = vsyncpa [#allocation4], 1
    %s726 = scalar_lea.sflag [#allocation4], 1
    %727 = vsyncpa %s726, 1

// kernel: decoder_layer.10
$region0: #{decoder_layer.10}
  #allocation0 [shape = 'u32[]', space=smem, size = 0x4, offset = 0x4, fixed_abs, tag = 'smem constant byte address 0x4 - core index']
  #allocation1 [shape = 'u32[144,128]{1,0:T(1,128)}', space=vmem, size = 0x12000, scoped, tag = 'internal scratch']
  %s0 = inlined_call_operand.hbm [shape: bf16[16,64], index: 0, kind: input, shape index: {}]
  %s1 = inlined_call_operand.hbm [shape: bf16[64,64], index: 1, kind: input, shape index: {}]
  %s2 = inlined_call_operand.hbm [shape: f32[1,64], index: 2, kind: input, shape index: {}]
  %s3 = inlined_call_operand.hbm [shape: f32[16,64], index: 3, kind: input, shape index: {}]
  %s4 = inlined_call_operand.hbm [shape: f32[1,64], index: 4, kind: input, shape index: {}]
  %s5 = inlined_call_operand.hbm [shape: f32[1,64], index: 5, kind: input, shape index: {}]
  %s6 = inlined_call_operand.hbm [shape: f32[16,64], index: 6, kind: output, shape index: {}]
  %s7 = sld [smem:[#allocation0]]
  $region81: #{decoder_layer.10} parent=0
    _
  %s9 = ssub.s32 1, %s7
  %s10 = scalar_select 0, %s9, %s7
  $region1: #{decoder_layer.10} parent=0
    #allocation2 [shape = 'u8[4096]{0}', space=vmem, size = 0x1000, scoped, tag = 'input window, operand 0']
    #allocation3 [shape = 's32[2]{0}', space=sflag, size = 0x8, scoped, tag = 'scoped memory for decoder_layer.10']
    #allocation4 [shape = 's32[2]{0}', space=sflag, size = 0x8, scoped, tag = 'scoped memory for decoder_layer.10']
    #allocation5 [shape = 'u8[16384]{0}', space=vmem, size = 0x4000, scoped, tag = 'input window, operand 1, single buffered']
    #allocation6 [shape = 's32[1]{0}', space=sflag, size = 0x4, scoped, tag = 'scoped memory for decoder_layer.10']
    #allocation7 [shape = 'u8[512]{0}', space=vmem, size = 0x400, scoped, tag = 'input window, operand 2, single buffered']
    #allocation8 [shape = 'u8[8192]{0}', space=vmem, size = 0x2000, scoped, tag = 'input window, operand 3']
    #allocation9 [shape = 's32[2]{0}', space=sflag, size = 0x8, scoped, tag = 'scoped memory for decoder_layer.10']
    #allocation10 [shape = 'u8[512]{0}', space=vmem, size = 0x400, scoped, tag = 'input window, operand 4, single buffered']
    #allocation11 [shape = 'u8[512]{0}', space=vmem, size = 0x400, scoped, tag = 'input window, operand 5, single buffered']
    #allocation12 [shape = 's32[1]{0}', space=sflag, size = 0x4, scoped, tag = 'scoped memory for decoder_layer.10']
    #allocation13 [shape = 'u8[8192]{0}', space=vmem, size = 0x2000, scoped, tag = 'output window, operand 0']
    %11 = vsyncpa [#allocation3], 0
    %s12 = scalar_lea.sflag [#allocation3], 1
    %13 = vsyncpa %s12, 0
    %14 = vsyncpa [#allocation6], 0
    %15 = vsyncpa [#allocation9], 0
    %s16 = scalar_lea.sflag [#allocation9], 1
    %17 = vsyncpa %s16, 0
    %18 = vsyncpa [#allocation12], 0
    %19 = vsyncpa [#allocation4], 0
    %s20 = scalar_lea.sflag [#allocation4], 1
    %21 = vsyncpa %s20, 0
    loop: start=0, step=1, limit=4
    $region2: #{decoder_layer.10} parent=1 // loop_pre_header
      _
    $region3: #{decoder_layer.10} parent=1 // loop_header
      %s23 = sphi 0, %s27
      %p24 = scmp.ge.s32.totalorder %s23, 4
      %s33 = sphi 0, %s35
      %s36 = sphi 0, %s33
      %s37 = sphi 0, %s36
      %s53 = sphi 0, %s37
      %s57 = sphi 0, %s57
      %s59 = sphi 0, %s57
      %s60 = sphi 0, %s59
      %s74 = sphi 0, %s60
      %s78 = sphi 0, %s78
      %s80 = sphi 0, %s78
      %s81 = sphi 0, %s80
      %s95 = sphi 0, %s81
      %s101 = sphi 0, %s103
      %s104 = sphi 0, %s101
      %s105 = sphi 0, %s104
      %s121 = sphi 0, %s105
      %s125 = sphi 0, %s125
      %s127 = sphi 0, %s125
      %s128 = sphi 0, %s127
      %s142 = sphi 0, %s128
      %s146 = sphi 0, %s146
      %s148 = sphi 0, %s146
      %s149 = sphi 0, %s148
      %s163 = sphi 0, %s149
      %s169 = sphi 0, %s171
      %s172 = sphi 0, %s169
      %s173 = sphi 0, %s172
      %s189 = sphi 0, %s173
    $region4: #{decoder_layer.10} parent=1 // loop_header_branch
      %26 = sbr.rel (%p24) target = $region8
    $region5: #{decoder_layer.10} parent=1 // loop_body
      %s28 = ssub.s32 %s23, 1
      %s29 = ssub.s32 %s23, 2
      %s30 = sadd.s32 %s23, 1
      %s31 = ssub.s32 %s23, %s30
      %p32 = scmp.eq.s32.totalorder %s31, 0
      %s34 = sadd.s32 %s33, 1
      %s35 = scalar_select %p32, %s33, %s34
      %p38 = pneg %p32
      %p39 = scmp.eq.s32.totalorder %s23, 1
      %p40 = por %p38, %p39
      %p41 = scmp.ne.s32.totalorder %s33, %s36
      %p42 = scmp.eq.s32.totalorder %s23, 0
      %p43 = por %p41, %p42
      %p44 = scmp.ne.s32.totalorder %s33, %s36
      %p45 = scmp.eq.s32.totalorder %s28, 1
      %p46 = por %p44, %p45
      %p47 = scmp.ne.s32.totalorder %s36, %s37
      %p48 = scmp.eq.s32.totalorder %s28, 0
      %p49 = por %p47, %p48
      %p50 = scmp.ne.s32.totalorder %s36, %s37
      %p51 = scmp.eq.s32.totalorder %s29, 1
      %p52 = por %p50, %p51
      %p54 = scmp.ne.s32.totalorder %s37, %s53
      %p55 = scmp.eq.s32.totalorder %s29, 0
      %p56 = por %p54, %p55
      %s58 = sadd.s32 %s57, 1
      %p61 = scmp.eq.s32.totalorder %s23, 1
      %p62 = scmp.ne.s32.totalorder %s57, %s59
      %p63 = scmp.eq.s32.totalorder %s23, 0
      %p64 = por %p62, %p63
      %p65 = scmp.ne.s32.totalorder %s57, %s59
      %p66 = scmp.eq.s32.totalorder %s28, 1
      %p67 = por %p65, %p66
      %p68 = scmp.ne.s32.totalorder %s59, %s60
      %p69 = scmp.eq.s32.totalorder %s28, 0
      %p70 = por %p68, %p69
      %p71 = scmp.ne.s32.totalorder %s59, %s60
      %p72 = scmp.eq.s32.totalorder %s29, 1
      %p73 = por %p71, %p72
      %p75 = scmp.ne.s32.totalorder %s60, %s74
      %p76 = scmp.eq.s32.totalorder %s29, 0
      %p77 = por %p75, %p76
      %s79 = sadd.s32 %s78, 1
      %p82 = scmp.eq.s32.totalorder %s23, 1
      %p83 = scmp.ne.s32.totalorder %s78, %s80
      %p84 = scmp.eq.s32.totalorder %s23, 0
      %p85 = por %p83, %p84
      %p86 = scmp.ne.s32.totalorder %s78, %s80
      %p87 = scmp.eq.s32.totalorder %s28, 1
      %p88 = por %p86, %p87
      %p89 = scmp.ne.s32.totalorder %s80, %s81
      %p90 = scmp.eq.s32.totalorder %s28, 0
      %p91 = por %p89, %p90
      %p92 = scmp.ne.s32.totalorder %s80, %s81
      %p93 = scmp.eq.s32.totalorder %s29, 1
      %p94 = por %p92, %p93
      %p96 = scmp.ne.s32.totalorder %s81, %s95
      %p97 = scmp.eq.s32.totalorder %s29, 0
      %p98 = por %p96, %p97
      %s99 = ssub.s32 %s23, %s30
      %p100 = scmp.eq.s32.totalorder %s99, 0
      %s102 = sadd.s32 %s101, 1
      %s103 = scalar_select %p100, %s101, %s102
      %p106 = pneg %p100
      %p107 = scmp.eq.s32.totalorder %s23, 1
      %p108 = por %p106, %p107
      %p109 = scmp.ne.s32.totalorder %s101, %s104
      %p110 = scmp.eq.s32.totalorder %s23, 0
      %p111 = por %p109, %p110
      %p112 = scmp.ne.s32.totalorder %s101, %s104
      %p113 = scmp.eq.s32.totalorder %s28, 1
      %p114 = por %p112, %p113
      %p115 = scmp.ne.s32.totalorder %s104, %s105
      %p116 = scmp.eq.s32.totalorder %s28, 0
      %p117 = por %p115, %p116
      %p118 = scmp.ne.s32.totalorder %s104, %s105
      %p119 = scmp.eq.s32.totalorder %s29, 1
      %p120 = por %p118, %p119
      %p122 = scmp.ne.s32.totalorder %s105, %s121
      %p123 = scmp.eq.s32.totalorder %s29, 0
      %p124 = por %p122, %p123
      %s126 = sadd.s32 %s125, 1
      %p129 = scmp.eq.s32.totalorder %s23, 1
      %p130 = scmp.ne.s32.totalorder %s125, %s127
      %p131 = scmp.eq.s32.totalorder %s23, 0
      %p132 = por %p130, %p131
      %p133 = scmp.ne.s32.totalorder %s125, %s127
      %p134 = scmp.eq.s32.totalorder %s28, 1
      %p135 = por %p133, %p134
      %p136 = scmp.ne.s32.totalorder %s127, %s128
      %p137 = scmp.eq.s32.totalorder %s28, 0
      %p138 = por %p136, %p137
      %p139 = scmp.ne.s32.totalorder %s127, %s128
      %p140 = scmp.eq.s32.totalorder %s29, 1
      %p141 = por %p139, %p140
      %p143 = scmp.ne.s32.totalorder %s128, %s142
      %p144 = scmp.eq.s32.totalorder %s29, 0
      %p145 = por %p143, %p144
      %s147 = sadd.s32 %s146, 1
      %p150 = scmp.eq.s32.totalorder %s23, 1
      %p151 = scmp.ne.s32.totalorder %s146, %s148
      %p152 = scmp.eq.s32.totalorder %s23, 0
      %p153 = por %p151, %p152
      %p154 = scmp.ne.s32.totalorder %s146, %s148
      %p155 = scmp.eq.s32.totalorder %s28, 1
      %p156 = por %p154, %p155
      %p157 = scmp.ne.s32.totalorder %s148, %s149
      %p158 = scmp.eq.s32.totalorder %s28, 0
      %p159 = por %p157, %p158
      %p160 = scmp.ne.s32.totalorder %s148, %s149
      %p161 = scmp.eq.s32.totalorder %s29, 1
      %p162 = por %p160, %p161
      %p164 = scmp.ne.s32.totalorder %s149, %s163
      %p165 = scmp.eq.s32.totalorder %s29, 0
      %p166 = por %p164, %p165
      %s167 = ssub.s32 %s23, %s30
      %p168 = scmp.eq.s32.totalorder %s167, 0
      %s170 = sadd.s32 %s169, 1
      %s171 = scalar_select %p168, %s169, %s170
      %p174 = pneg %p168
      %p175 = scmp.eq.s32.totalorder %s23, 1
      %p176 = por %p174, %p175
      %p177 = scmp.ne.s32.totalorder %s169, %s172
      %p178 = scmp.eq.s32.totalorder %s23, 0
      %p179 = por %p177, %p178
      %p180 = scmp.ne.s32.totalorder %s169, %s172
      %p181 = scmp.eq.s32.totalorder %s28, 1
      %p182 = por %p180, %p181
      %p183 = scmp.ne.s32.totalorder %s172, %s173
      %p184 = scmp.eq.s32.totalorder %s28, 0
      %p185 = por %p183, %p184
      %p186 = scmp.ne.s32.totalorder %s172, %s173
      %p187 = scmp.eq.s32.totalorder %s29, 1
      %p188 = por %p186, %p187
      %p190 = scmp.ne.s32.totalorder %s173, %s189
      %p191 = scmp.eq.s32.totalorder %s29, 0
      %p192 = por %p190, %p191
      %p193 = scmp.le.s32.totalorder 1, %s23
      %p194 = scmp.lt.s32.totalorder %s23, 3
      %p195 = pnand %p193, %p194
      %p196 = pneg %p195
      // Predicated region
      $region9: #{decoder_layer.10} parent=5 // pred_check
        _
      $region10: #{decoder_layer.10} parent=5 // pred_check_branch
        %198 = sbr.rel (%p195) target = $region12
      $region11: #{decoder_layer.10} parent=5 // pred_region
        %s199 = ssub.s32 %s23, 1
        // Predicated region
        $region13: #{decoder_layer.10} parent=11 // pred_check
          %p200 = pneg %p70
        $region14: #{decoder_layer.10} parent=11 // pred_check_branch
          %202 = sbr.rel (%p200) target = $region16
        $region15: #{decoder_layer.10} parent=11 // pred_region
          %s204 = ssub.s32 512, 512
          %205 = vsyncadd [#allocation6], %s204
          %s206 = sshll.u32 [#allocation5], 4
          %s207 = int_to_ptr.vmem [resolvable:$true] %s206
          %212 = dma.hbm_to_vmem [thread:$0]  %s1, 512, %s207, [#allocation6], 64, 64, 4
        $region16: #{decoder_layer.10} parent=11 // pred_fallthru
          _
        // Predicated region
        $region17: #{decoder_layer.10} parent=11 // pred_check
          %p213 = pneg %p91
        $region18: #{decoder_layer.10} parent=11 // pred_check_branch
          %215 = sbr.rel (%p213) target = $region20
        $region19: #{decoder_layer.10} parent=11 // pred_region
          %s217 = ssub.s32 16, 16
          %218 = vsyncadd [#allocation6], %s217
          %s220 = sshll.u32 [#allocation7], 4
          %s221 = int_to_ptr.vmem [resolvable:$true] %s220
          %223 = dma.hbm_to_vmem [thread:$0]  %s2, 16, %s221, [#allocation6]
        $region20: #{decoder_layer.10} parent=11 // pred_fallthru
          _
        // Predicated region
        $region21: #{decoder_layer.10} parent=11 // pred_check
          %p224 = pneg %p138
        $region22: #{decoder_layer.10} parent=11 // pred_check_branch
          %226 = sbr.rel (%p224) target = $region24
        $region23: #{decoder_layer.10} parent=11 // pred_region
          %s228 = ssub.s32 16, 16
          %229 = vsyncadd [#allocation9], %s228
          %s231 = sshll.u32 [#allocation10], 4
          %s232 = int_to_ptr.vmem [resolvable:$true] %s231
          %234 = dma.hbm_to_vmem [thread:$0]  %s4, 16, %s232, [#allocation9]
        $region24: #{decoder_layer.10} parent=11 // pred_fallthru
          _
        // Predicated region
        $region25: #{decoder_layer.10} parent=11 // pred_check
          %p235 = pneg %p159
        $region26: #{decoder_layer.10} parent=11 // pred_check_branch
          %237 = sbr.rel (%p235) target = $region28
        $region27: #{decoder_layer.10} parent=11 // pred_region
          %s239 = ssub.s32 16, 16
          %240 = vsyncadd [#allocation12], %s239
          %s242 = sshll.u32 [#allocation11], 4
          %s243 = int_to_ptr.vmem [resolvable:$true] %s242
          %245 = dma.hbm_to_vmem [thread:$0]  %s5, 16, %s243, [#allocation12]
        $region28: #{decoder_layer.10} parent=11 // pred_fallthru
          _
      $region12: #{decoder_layer.10} parent=5 // pred_fallthru
        _
      %p246 = scmp.lt.s32.totalorder %s23, 2
      // Predicated region
      $region29: #{decoder_layer.10} parent=5 // pred_check
        %p247 = pneg %p246
      $region30: #{decoder_layer.10} parent=5 // pred_check_branch
        %249 = sbr.rel (%p247) target = $region32
      $region31: #{decoder_layer.10} parent=5 // pred_region
        // Predicated region
        $region33: #{decoder_layer.10} parent=31 // pred_check
          %p250 = pneg %p43
        $region34: #{decoder_layer.10} parent=31 // pred_check_branch
          %252 = sbr.rel (%p250) target = $region36
        $region35: #{decoder_layer.10} parent=31 // pred_region
          %s253 = sand.u32 %s33, 1
          %s254 = scalar_lea.sflag [#allocation3], %s253
          %s255 = sand.u32 %s33, 1
          %s256 = smul.addr %s255, 4
          %s257 = scalar_lea.vmem [#allocation2], %s256
          %s259 = ssub.s32 64, 64
          %260 = vsyncadd %s254, %s259
          %s261 = smul.addr %s23, 64
          %s262 = scalar_lea.hbm %s0, %s261
          %s264 = sshll.u32 %s257, 4
          %s265 = int_to_ptr.vmem [resolvable:$true] %s264
          %267 = dma.hbm_to_vmem [thread:$0]  %s262, 64, %s265, %s254
        $region36: #{decoder_layer.10} parent=31 // pred_fallthru
          _
        // Predicated region
        $region37: #{decoder_layer.10} parent=31 // pred_check
          %p268 = pneg %p111
        $region38: #{decoder_layer.10} parent=31 // pred_check_branch
          %270 = sbr.rel (%p268) target = $region40
        $region39: #{decoder_layer.10} parent=31 // pred_region
          %s271 = sand.u32 %s23, 1
          %s272 = scalar_lea.sflag [#allocation9], %s271
          %s273 = sand.u32 %s101, 1
          %s274 = smul.addr %s273, 8
          %s275 = scalar_lea.vmem [#allocation8], %s274
          %s277 = ssub.s32 128, 128
          %278 = vsyncadd %s272, %s277
          %s279 = smul.addr %s23, 128
          %s280 = scalar_lea.hbm %s3, %s279
          %s282 = sshll.u32 %s275, 4
          %s283 = int_to_ptr.vmem [resolvable:$true] %s282
          %285 = dma.hbm_to_vmem [thread:$0]  %s280, 128, %s283, %s272
        $region40: #{decoder_layer.10} parent=31 // pred_fallthru
          _
      $region32: #{decoder_layer.10} parent=5 // pred_fallthru
        _
      %p286 = scmp.le.s32.totalorder 1, %s23
      %p287 = scmp.lt.s32.totalorder %s23, 3
      %p288 = pnand %p286, %p287
      %p289 = pneg %p288
      // Predicated region
      $region41: #{decoder_layer.10} parent=5 // pred_check
        _
      $region42: #{decoder_layer.10} parent=5 // pred_check_branch
        %291 = sbr.rel (%p288) target = $region44
      $region43: #{decoder_layer.10} parent=5 // pred_region
        %s292 = ssub.s32 %s23, 1
        %s293 = sand.u32 %s36, 1
        %s294 = scalar_lea.sflag [#allocation3], %s293
        %s295 = sand.u32 %s36, 1
        %s296 = smul.addr %s295, 4
        %s297 = scalar_lea.vmem [#allocation2], %s296
        // Predicated region
        $region45: #{decoder_layer.10} parent=43 // pred_check
          %p298 = pneg %p49
        $region46: #{decoder_layer.10} parent=43 // pred_check_branch
          %300 = sbr.rel (%p298) target = $region48
        $region47: #{decoder_layer.10} parent=43 // pred_region
          %301 = dma.done %s294, 64
        $region48: #{decoder_layer.10} parent=43 // pred_fallthru
          _
        // Predicated region
        $region49: #{decoder_layer.10} parent=43 // pred_check
          %p302 = pneg %p70
        $region50: #{decoder_layer.10} parent=43 // pred_check_branch
          %304 = sbr.rel (%p302) target = $region52
        $region51: #{decoder_layer.10} parent=43 // pred_region
          %305 = dma.done [#allocation6], 512
        $region52: #{decoder_layer.10} parent=43 // pred_fallthru
          _
        // Predicated region
        $region53: #{decoder_layer.10} parent=43 // pred_check
          %p306 = pneg %p91
        $region54: #{decoder_layer.10} parent=43 // pred_check_branch
          %308 = sbr.rel (%p306) target = $region56
        $region55: #{decoder_layer.10} parent=43 // pred_region
          %309 = dma.done [#allocation6], 16
        $region56: #{decoder_layer.10} parent=43 // pred_fallthru
          _
        %s310 = sand.u32 %s28, 1
        %s311 = scalar_lea.sflag [#allocation9], %s310
        %s312 = sand.u32 %s104, 1
        %s313 = smul.addr %s312, 8
        %s314 = scalar_lea.vmem [#allocation8], %s313
        // Predicated region
        $region57: #{decoder_layer.10} parent=43 // pred_check
          %p315 = pneg %p117
        $region58: #{decoder_layer.10} parent=43 // pred_check_branch
          %317 = sbr.rel (%p315) target = $region60
        $region59: #{decoder_layer.10} parent=43 // pred_region
          %318 = dma.done %s311, 128
        $region60: #{decoder_layer.10} parent=43 // pred_fallthru
          _
        // Predicated region
        $region61: #{decoder_layer.10} parent=43 // pred_check
          %p319 = pneg %p138
        $region62: #{decoder_layer.10} parent=43 // pred_check_branch
          %321 = sbr.rel (%p319) target = $region64
        $region63: #{decoder_layer.10} parent=43 // pred_region
          %322 = dma.done [#allocation9], 16
        $region64: #{decoder_layer.10} parent=43 // pred_fallthru
          _
        // Predicated region
        $region65: #{decoder_layer.10} parent=43 // pred_check
          %p323 = pneg %p159
        $region66: #{decoder_layer.10} parent=43 // pred_check_branch
          %325 = sbr.rel (%p323) target = $region68
        $region67: #{decoder_layer.10} parent=43 // pred_region
          %326 = dma.done [#allocation12], 16
        $region68: #{decoder_layer.10} parent=43 // pred_fallthru
          _
        %s327 = sand.u32 %s36, 1
        %s328 = scalar_lea.sflag [#allocation3], %s327
        %s329 = sand.u32 %s36, 1
        %s330 = smul.addr %s329, 4
        %s331 = scalar_lea.vmem [#allocation2], %s330
        %p332 = pneg %p49
        %p333 = pneg %p46
        %p334 = pneg %p70
        %p335 = pneg %p67
        %p336 = pneg %p91
        %p337 = pneg %p88
        %s338 = sand.u32 %s28, 1
        %s339 = scalar_lea.sflag [#allocation9], %s338
        %s340 = sand.u32 %s104, 1
        %s341 = smul.addr %s340, 8
        %s342 = scalar_lea.vmem [#allocation8], %s341
        %p343 = pneg %p117
        %p344 = pneg %p114
        %p345 = pneg %p138
        %p346 = pneg %p135
        %p347 = pneg %p159
        %p348 = pneg %p156
        %p349 = pneg %p185
        %p350 = pneg %p182
        %s351 = sand.u32 %s172, 1
        %s352 = scalar_lea.sflag [#allocation4], %s351
        %s353 = sand.u32 %s172, 1
        %s354 = smul.addr %s353, 8
        %s355 = scalar_lea.vmem [#allocation13], %s354
        %v357 = vld [vmem:[%s297] sm:$0xf]
        %v358 = vld [vmem:[#allocation5] sm:$0xf]
        %v359 = vld [vmem:[#allocation5 + $0x4] sm:$0xf]
        %v360 = vld [vmem:[#allocation5 + $0x8] sm:$0xf]
        %v361 = vld [vmem:[#allocation5 + $0xc] sm:$0xf]
        %v362 = vld [vmem:[#allocation5 + $0x10] sm:$0xf]
        %v363 = vld [vmem:[#allocation5 + $0x14] sm:$0xf]
        %v364 = vld [vmem:[#allocation5 + $0x18] sm:$0xf]
        %v365 = vld [vmem:[#allocation5 + $0x1c] sm:$0xf]
        %v366 = vld [vmem:[#allocation7] sm:$0x1]
        %v368 = vlaneseq
        %v369 = vshrl.u32 %v368, 7
        %v370 = vsub.s32 0, %v369
        %v371 = vrot.slane %v366, %v370
        %v381 = vunpack.c.l.b16 %v358
        %v382 = vunpack.c.l.b16 %v359
        %v383 = vunpack.c.l.b16 %v360
        %v384 = vunpack.c.l.b16 %v361
        %v385 = vunpack.c.l.b16 %v362
        %v386 = vunpack.c.l.b16 %v363
        %v387 = vunpack.c.l.b16 %v364
        %v388 = vunpack.c.l.b16 %v365
        %v389 = vpack.c.b16 %v382, %v381
        %v390 = vpack.c.b16 %v384, %v383
        %v391 = vpack.c.b16 %v386, %v385
        %v392 = vpack.c.b16 %v388, %v387
        %vm397 = vcmask 523264
        %v399 = vsel %vm397, %v357, 0
        %401 = vmatprep.subr.bf16.mxu0 0
        %402 = vmatpush1.bf16.msra.mxu0 %v389
        %403 = vmatprep.subr.bf16.mxu0 0
        %404 = vmatpush1.bf16.msra.mxu0 %v390
        %405 = vmatprep.subr.bf16.mxu0 0
        %406 = vmatpush1.bf16.msra.mxu0 %v391
        %407 = vmatprep.subr.bf16.mxu0 0
        %408 = vmatpush1.bf16.msra.mxu0 %v392
        %409 = vmatprep.subr.bf16.mxu0 0
        %410 = vmatpush1.bf16.msra.mxu0 0
        %411 = vmatprep.subr.bf16.mxu0 0
        %412 = vmatpush1.bf16.msra.mxu0 0
        %413 = vmatprep.subr.bf16.mxu0 0
        %414 = vmatpush1.bf16.msra.mxu0 0
        %415 = vmatprep.subr.bf16.mxu0 0
        %416 = vmatpush1.bf16.msra.mxu0 0
        %417 = vmatprep.subr.bf16.mxu0 0
        %418 = vmatpush1.bf16.msra.mxu0 0
        %419 = vmatprep.subr.bf16.mxu0 0
        %420 = vmatpush1.bf16.msra.mxu0 0
        %421 = vmatprep.subr.bf16.mxu0 0
        %422 = vmatpush1.bf16.msra.mxu0 0
        %423 = vmatprep.subr.bf16.mxu0 0
        %424 = vmatpush1.bf16.msra.mxu0 0
        %425 = vmatprep.subr.bf16.mxu0 0
        %426 = vmatpush1.bf16.msra.mxu0 0
        %427 = vmatprep.subr.bf16.mxu0 0
        %428 = vmatpush1.bf16.msra.mxu0 0
        %429 = vmatprep.subr.bf16.mxu0 0
        %430 = vmatpush1.bf16.msra.mxu0 0
        %431 = vmatprep.subr.bf16.mxu0 0
        %432 = vmatpush1.bf16.msra.mxu0 0
        %433 = vmatprep.mubr.bf16.mxu0 0
        %434 = vmatmul.mubr.bf16.gmra.mrb[0].mxu0 %v399
        %v435 = vpop.f32.mrb[0].mxu0
        %v436 = vadd.f32 %v371, %v435
        %v437 = vpop.f32.mrb[0].mxu0
        %v438 = vpop.f32.mrb[0].mxu0
        %v439 = vpop.f32.mrb[0].mxu0
        %440 = vdwg.mxu0
        %v441 = vld [vmem:[%s314] sm:$0xff]
        %v442 = vadd.f32 %v441, %v436
        %v443 = vsel %vm397, %v442, 0.0
        %444 = vadd.xlane.f32.xlu0 %v443
        %v445 = vpop.xlane.xlu0 %444
        %v446 = vrcp.pop 64.0
        %v447 = vmul.f32 %v445, %v446
        %v448 = vsub.f32 %v442, %v447
        %v449 = vmul.f32 %v448, %v448
        %v450 = vsel %vm397, %v449, 0.0
        %451 = vadd.xlane.f32.xlu0 %v450
        %v452 = vpop.xlane.xlu0 %451
        %v453 = vmul.f32 %v452, %v446
        %v454 = vadd.f32 %v453, 1e-05
        %v455 = vrsqrt.pop %v454
        %v456 = vmul.f32 %v448, %v455
        %v457 = vld [vmem:[#allocation10] sm:$0x1]
        %v459 = vlaneseq
        %v460 = vshrl.u32 %v459, 7
        %v461 = vsub.s32 0, %v460
        %v462 = vrot.slane %v457, %v461
        %v464 = vmul.f32 %v456, %v462
        %v465 = vld [vmem:[#allocation11] sm:$0x1]
        %v467 = vlaneseq
        %v468 = vshrl.u32 %v467, 7
        %v469 = vsub.s32 0, %v468
        %v470 = vrot.slane %v465, %v469
        %v472 = vadd.f32 %v464, %v470
        %473 = vst.msk [vmem:[%s355] sm:$0xff] %vm397, %v472
        %s474 = sand.u32 %s172, 1
        %s475 = scalar_lea.sflag [#allocation4], %s474
        %s476 = sand.u32 %s172, 1
        %s477 = smul.addr %s476, 8
        %s478 = scalar_lea.vmem [#allocation13], %s477
        // Predicated region
        $region69: #{decoder_layer.10} parent=43 // pred_check
          %p479 = pneg %p182
        $region70: #{decoder_layer.10} parent=43 // pred_check_branch
          %481 = sbr.rel (%p479) target = $region72
        $region71: #{decoder_layer.10} parent=43 // pred_region
          %s483 = ssub.s32 128, 128
          %484 = vsyncadd %s475, %s483
          %s485 = smul.addr %s28, 128
          %s486 = scalar_lea.hbm %s6, %s485
          %s488 = sshll.u32 %s478, 4
          %s489 = int_to_ptr.vmem [resolvable:$true] %s488
          %491 = dma.vmem_to_hbm [thread:$0]  %s489, 128, %s486, %s475
        $region72: #{decoder_layer.10} parent=43 // pred_fallthru
          _
      $region44: #{decoder_layer.10} parent=5 // pred_fallthru
        _
      %p492 = scmp.le.s32.totalorder 2, %s23
      // Predicated region
      $region73: #{decoder_layer.10} parent=5 // pred_check
        %p493 = pneg %p492
      $region74: #{decoder_layer.10} parent=5 // pred_check_branch
        %495 = sbr.rel (%p493) target = $region76
      $region75: #{decoder_layer.10} parent=5 // pred_region
        %s496 = ssub.s32 %s23, 2
        // Predicated region
        $region77: #{decoder_layer.10} parent=75 // pred_check
          %p497 = pneg %p188
        $region78: #{decoder_layer.10} parent=75 // pred_check_branch
          %499 = sbr.rel (%p497) target = $region80
        $region79: #{decoder_layer.10} parent=75 // pred_region
          %s500 = sand.u32 %s173, 1
          %s501 = scalar_lea.sflag [#allocation4], %s500
          %s502 = sand.u32 %s173, 1
          %s503 = smul.addr %s502, 8
          %s504 = scalar_lea.vmem [#allocation13], %s503
          %505 = dma.done %s501, 128
        $region80: #{decoder_layer.10} parent=75 // pred_fallthru
          _
      $region76: #{decoder_layer.10} parent=5 // pred_fallthru
        _
    $region6: #{decoder_layer.10} parent=1 // loop_footer
      %s27 = sadd.s32 1, %s23
    $region7: #{decoder_layer.10} parent=1 // loop_footer_branch
      %22 = sbr.rel target = $region3
    $region8: #{decoder_layer.10} parent=1 // loop_exit
      _
    %506 = vsyncpa [#allocation3], 1
    %s507 = scalar_lea.sflag [#allocation3], 1
    %508 = vsyncpa %s507, 1
    %509 = vsyncpa [#allocation6], 1
    %510 = vsyncpa [#allocation9], 1
    %s511 = scalar_lea.sflag [#allocation9], 1
    %512 = vsyncpa %s511, 1
    %513 = vsyncpa [#allocation12], 1
    %514 = vsyncpa [#allocation4], 1
    %s515 = scalar_lea.sflag [#allocation4], 1
    %516 = vsyncpa %s515, 1

// kernel: decoder_layer.11
$region0: #{decoder_layer.11}
  #allocation0 [shape = 'u32[]', space=smem, size = 0x4, offset = 0x4, fixed_abs, tag = 'smem constant byte address 0x4 - core index']
  #allocation1 [shape = 'u32[144,128]{1,0:T(1,128)}', space=vmem, size = 0x12000, scoped, tag = 'internal scratch']
  %s0 = inlined_call_operand.hbm [shape: f32[16,64], index: 0, kind: input, shape index: {}]
  %s1 = inlined_call_operand.hbm [shape: bf16[64,64], index: 1, kind: input, shape index: {}]
  %s2 = inlined_call_operand.hbm [shape: f32[1,64], index: 2, kind: input, shape index: {}]
  %s3 = inlined_call_operand.hbm [shape: bf16[16,64], index: 3, kind: output, shape index: {}]
  %s4 = sld [smem:[#allocation0]]
  $region57: #{decoder_layer.11} parent=0
    _
  %s6 = ssub.s32 1, %s4
  %s7 = scalar_select 0, %s6, %s4
  $region1: #{decoder_layer.11} parent=0
    #allocation2 [shape = 'u8[8192]{0}', space=vmem, size = 0x2000, scoped, tag = 'input window, operand 0']
    #allocation3 [shape = 's32[2]{0}', space=sflag, size = 0x8, scoped, tag = 'scoped memory for decoder_layer.11']
    #allocation4 [shape = 's32[2]{0}', space=sflag, size = 0x8, scoped, tag = 'scoped memory for decoder_layer.11']
    #allocation5 [shape = 'u8[16384]{0}', space=vmem, size = 0x4000, scoped, tag = 'input window, operand 1, single buffered']
    #allocation6 [shape = 's32[1]{0}', space=sflag, size = 0x4, scoped, tag = 'scoped memory for decoder_layer.11']
    #allocation7 [shape = 'u8[512]{0}', space=vmem, size = 0x400, scoped, tag = 'input window, operand 2, single buffered']
    #allocation8 [shape = 'u8[4096]{0}', space=vmem, size = 0x1000, scoped, tag = 'output window, operand 0']
    %8 = vsyncpa [#allocation3], 0
    %s9 = scalar_lea.sflag [#allocation3], 1
    %10 = vsyncpa %s9, 0
    %11 = vsyncpa [#allocation6], 0
    %12 = vsyncpa [#allocation4], 0
    %s13 = scalar_lea.sflag [#allocation4], 1
    %14 = vsyncpa %s13, 0
    loop: start=0, step=1, limit=4
    $region2: #{decoder_layer.11} parent=1 // loop_pre_header
      _
    $region3: #{decoder_layer.11} parent=1 // loop_header
      %s16 = sphi 0, %s20
      %p17 = scmp.ge.s32.totalorder %s16, 4
      %s26 = sphi 0, %s28
      %s29 = sphi 0, %s26
      %s30 = sphi 0, %s29
      %s46 = sphi 0, %s30
      %s50 = sphi 0, %s50
      %s52 = sphi 0, %s50
      %s53 = sphi 0, %s52
      %s67 = sphi 0, %s53
      %s71 = sphi 0, %s71
      %s73 = sphi 0, %s71
      %s74 = sphi 0, %s73
      %s88 = sphi 0, %s74
      %s94 = sphi 0, %s96
      %s97 = sphi 0, %s94
      %s98 = sphi 0, %s97
      %s114 = sphi 0, %s98
    $region4: #{decoder_layer.11} parent=1 // loop_header_branch
      %19 = sbr.rel (%p17) target = $region8
    $region5: #{decoder_layer.11} parent=1 // loop_body
      %s21 = ssub.s32 %s16, 1
      %s22 = ssub.s32 %s16, 2
      %s23 = sadd.s32 %s16, 1
      %s24 = ssub.s32 %s16, %s23
      %p25 = scmp.eq.s32.totalorder %s24, 0
      %s27 = sadd.s32 %s26, 1
      %s28 = scalar_select %p25, %s26, %s27
      %p31 = pneg %p25
      %p32 = scmp.eq.s32.totalorder %s16, 1
      %p33 = por %p31, %p32
      %p34 = scmp.ne.s32.totalorder %s26, %s29
      %p35 = scmp.eq.s32.totalorder %s16, 0
      %p36 = por %p34, %p35
      %p37 = scmp.ne.s32.totalorder %s26, %s29
      %p38 = scmp.eq.s32.totalorder %s21, 1
      %p39 = por %p37, %p38
      %p40 = scmp.ne.s32.totalorder %s29, %s30
      %p41 = scmp.eq.s32.totalorder %s21, 0
      %p42 = por %p40, %p41
      %p43 = scmp.ne.s32.totalorder %s29, %s30
      %p44 = scmp.eq.s32.totalorder %s22, 1
      %p45 = por %p43, %p44
      %p47 = scmp.ne.s32.totalorder %s30, %s46
      %p48 = scmp.eq.s32.totalorder %s22, 0
      %p49 = por %p47, %p48
      %s51 = sadd.s32 %s50, 1
      %p54 = scmp.eq.s32.totalorder %s16, 1
      %p55 = scmp.ne.s32.totalorder %s50, %s52
      %p56 = scmp.eq.s32.totalorder %s16, 0
      %p57 = por %p55, %p56
      %p58 = scmp.ne.s32.totalorder %s50, %s52
      %p59 = scmp.eq.s32.totalorder %s21, 1
      %p60 = por %p58, %p59
      %p61 = scmp.ne.s32.totalorder %s52, %s53
      %p62 = scmp.eq.s32.totalorder %s21, 0
      %p63 = por %p61, %p62
      %p64 = scmp.ne.s32.totalorder %s52, %s53
      %p65 = scmp.eq.s32.totalorder %s22, 1
      %p66 = por %p64, %p65
      %p68 = scmp.ne.s32.totalorder %s53, %s67
      %p69 = scmp.eq.s32.totalorder %s22, 0
      %p70 = por %p68, %p69
      %s72 = sadd.s32 %s71, 1
      %p75 = scmp.eq.s32.totalorder %s16, 1
      %p76 = scmp.ne.s32.totalorder %s71, %s73
      %p77 = scmp.eq.s32.totalorder %s16, 0
      %p78 = por %p76, %p77
      %p79 = scmp.ne.s32.totalorder %s71, %s73
      %p80 = scmp.eq.s32.totalorder %s21, 1
      %p81 = por %p79, %p80
      %p82 = scmp.ne.s32.totalorder %s73, %s74
      %p83 = scmp.eq.s32.totalorder %s21, 0
      %p84 = por %p82, %p83
      %p85 = scmp.ne.s32.totalorder %s73, %s74
      %p86 = scmp.eq.s32.totalorder %s22, 1
      %p87 = por %p85, %p86
      %p89 = scmp.ne.s32.totalorder %s74, %s88
      %p90 = scmp.eq.s32.totalorder %s22, 0
      %p91 = por %p89, %p90
      %s92 = ssub.s32 %s16, %s23
      %p93 = scmp.eq.s32.totalorder %s92, 0
      %s95 = sadd.s32 %s94, 1
      %s96 = scalar_select %p93, %s94, %s95
      %p99 = pneg %p93
      %p100 = scmp.eq.s32.totalorder %s16, 1
      %p101 = por %p99, %p100
      %p102 = scmp.ne.s32.totalorder %s94, %s97
      %p103 = scmp.eq.s32.totalorder %s16, 0
      %p104 = por %p102, %p103
      %p105 = scmp.ne.s32.totalorder %s94, %s97
      %p106 = scmp.eq.s32.totalorder %s21, 1
      %p107 = por %p105, %p106
      %p108 = scmp.ne.s32.totalorder %s97, %s98
      %p109 = scmp.eq.s32.totalorder %s21, 0
      %p110 = por %p108, %p109
      %p111 = scmp.ne.s32.totalorder %s97, %s98
      %p112 = scmp.eq.s32.totalorder %s22, 1
      %p113 = por %p111, %p112
      %p115 = scmp.ne.s32.totalorder %s98, %s114
      %p116 = scmp.eq.s32.totalorder %s22, 0
      %p117 = por %p115, %p116
      %p118 = scmp.le.s32.totalorder 1, %s16
      %p119 = scmp.lt.s32.totalorder %s16, 3
      %p120 = pnand %p118, %p119
      %p121 = pneg %p120
      // Predicated region
      $region9: #{decoder_layer.11} parent=5 // pred_check
        _
      $region10: #{decoder_layer.11} parent=5 // pred_check_branch
        %123 = sbr.rel (%p120) target = $region12
      $region11: #{decoder_layer.11} parent=5 // pred_region
        %s124 = ssub.s32 %s16, 1
        // Predicated region
        $region13: #{decoder_layer.11} parent=11 // pred_check
          %p125 = pneg %p63
        $region14: #{decoder_layer.11} parent=11 // pred_check_branch
          %127 = sbr.rel (%p125) target = $region16
        $region15: #{decoder_layer.11} parent=11 // pred_region
          %s129 = ssub.s32 512, 512
          %130 = vsyncadd [#allocation6], %s129
          %s131 = sshll.u32 [#allocation5], 4
          %s132 = int_to_ptr.vmem [resolvable:$true] %s131
          %137 = dma.hbm_to_vmem [thread:$0]  %s1, 512, %s132, [#allocation6], 64, 64, 4
        $region16: #{decoder_layer.11} parent=11 // pred_fallthru
          _
        // Predicated region
        $region17: #{decoder_layer.11} parent=11 // pred_check
          %p138 = pneg %p84
        $region18: #{decoder_layer.11} parent=11 // pred_check_branch
          %140 = sbr.rel (%p138) target = $region20
        $region19: #{decoder_layer.11} parent=11 // pred_region
          %s142 = ssub.s32 16, 16
          %143 = vsyncadd [#allocation6], %s142
          %s145 = sshll.u32 [#allocation7], 4
          %s146 = int_to_ptr.vmem [resolvable:$true] %s145
          %148 = dma.hbm_to_vmem [thread:$0]  %s2, 16, %s146, [#allocation6]
        $region20: #{decoder_layer.11} parent=11 // pred_fallthru
          _
      $region12: #{decoder_layer.11} parent=5 // pred_fallthru
        _
      %p149 = scmp.lt.s32.totalorder %s16, 2
      // Predicated region
      $region21: #{decoder_layer.11} parent=5 // pred_check
        %p150 = pneg %p149
      $region22: #{decoder_layer.11} parent=5 // pred_check_branch
        %152 = sbr.rel (%p150) target = $region24
      $region23: #{decoder_layer.11} parent=5 // pred_region
        // Predicated region
        $region25: #{decoder_layer.11} parent=23 // pred_check
          %p153 = pneg %p36
        $region26: #{decoder_layer.11} parent=23 // pred_check_branch
          %155 = sbr.rel (%p153) target = $region28
        $region27: #{decoder_layer.11} parent=23 // pred_region
          %s156 = sand.u32 %s26, 1
          %s157 = scalar_lea.sflag [#allocation3], %s156
          %s158 = sand.u32 %s26, 1
          %s159 = smul.addr %s158, 8
          %s160 = scalar_lea.vmem [#allocation2], %s159
          %s162 = ssub.s32 128, 128
          %163 = vsyncadd %s157, %s162
          %s164 = smul.addr %s16, 128
          %s165 = scalar_lea.hbm %s0, %s164
          %s167 = sshll.u32 %s160, 4
          %s168 = int_to_ptr.vmem [resolvable:$true] %s167
          %170 = dma.hbm_to_vmem [thread:$0]  %s165, 128, %s168, %s157
        $region28: #{decoder_layer.11} parent=23 // pred_fallthru
          _
      $region24: #{decoder_layer.11} parent=5 // pred_fallthru
        _
      %p171 = scmp.le.s32.totalorder 1, %s16
      %p172 = scmp.lt.s32.totalorder %s16, 3
      %p173 = pnand %p171, %p172
      %p174 = pneg %p173
      // Predicated region
      $region29: #{decoder_layer.11} parent=5 // pred_check
        _
      $region30: #{decoder_layer.11} parent=5 // pred_check_branch
        %176 = sbr.rel (%p173) target = $region32
      $region31: #{decoder_layer.11} parent=5 // pred_region
        %s177 = ssub.s32 %s16, 1
        %s178 = sand.u32 %s29, 1
        %s179 = scalar_lea.sflag [#allocation3], %s178
        %s180 = sand.u32 %s29, 1
        %s181 = smul.addr %s180, 8
        %s182 = scalar_lea.vmem [#allocation2], %s181
        // Predicated region
        $region33: #{decoder_layer.11} parent=31 // pred_check
          %p183 = pneg %p42
        $region34: #{decoder_layer.11} parent=31 // pred_check_branch
          %185 = sbr.rel (%p183) target = $region36
        $region35: #{decoder_layer.11} parent=31 // pred_region
          %186 = dma.done %s179, 128
        $region36: #{decoder_layer.11} parent=31 // pred_fallthru
          _
        // Predicated region
        $region37: #{decoder_layer.11} parent=31 // pred_check
          %p187 = pneg %p63
        $region38: #{decoder_layer.11} parent=31 // pred_check_branch
          %189 = sbr.rel (%p187) target = $region40
        $region39: #{decoder_layer.11} parent=31 // pred_region
          %190 = dma.done [#allocation6], 512
        $region40: #{decoder_layer.11} parent=31 // pred_fallthru
          _
        // Predicated region
        $region41: #{decoder_layer.11} parent=31 // pred_check
          %p191 = pneg %p84
        $region42: #{decoder_layer.11} parent=31 // pred_check_branch
          %193 = sbr.rel (%p191) target = $region44
        $region43: #{decoder_layer.11} parent=31 // pred_region
          %194 = dma.done [#allocation6], 16
        $region44: #{decoder_layer.11} parent=31 // pred_fallthru
          _
        %s195 = sand.u32 %s29, 1
        %s196 = scalar_lea.sflag [#allocation3], %s195
        %s197 = sand.u32 %s29, 1
        %s198 = smul.addr %s197, 8
        %s199 = scalar_lea.vmem [#allocation2], %s198
        %p200 = pneg %p42
        %p201 = pneg %p39
        %p202 = pneg %p63
        %p203 = pneg %p60
        %p204 = pneg %p84
        %p205 = pneg %p81
        %p206 = pneg %p110
        %p207 = pneg %p107
        %s208 = sand.u32 %s97, 1
        %s209 = scalar_lea.sflag [#allocation4], %s208
        %s210 = sand.u32 %s97, 1
        %s211 = smul.addr %s210, 4
        %s212 = scalar_lea.vmem [#allocation8], %s211
        %v214 = vld [vmem:[%s182] sm:$0xff]
        %v215 = vpack.c.bf16 %v214, %v214
        %v216 = vld [vmem:[#allocation5] sm:$0xf]
        %v217 = vld [vmem:[#allocation5 + $0x4] sm:$0xf]
        %v218 = vld [vmem:[#allocation5 + $0x8] sm:$0xf]
        %v219 = vld [vmem:[#allocation5 + $0xc] sm:$0xf]
        %v220 = vld [vmem:[#allocation5 + $0x10] sm:$0xf]
        %v221 = vld [vmem:[#allocation5 + $0x14] sm:$0xf]
        %v222 = vld [vmem:[#allocation5 + $0x18] sm:$0xf]
        %v223 = vld [vmem:[#allocation5 + $0x1c] sm:$0xf]
        %v224 = vld [vmem:[#allocation7] sm:$0x1]
        %v226 = vlaneseq
        %v227 = vshrl.u32 %v226, 7
        %v228 = vsub.s32 0, %v227
        %v229 = vrot.slane %v224, %v228
        %v239 = vunpack.c.l.b16 %v216
        %v240 = vunpack.c.l.b16 %v217
        %v241 = vunpack.c.l.b16 %v218
        %v242 = vunpack.c.l.b16 %v219
        %v243 = vunpack.c.l.b16 %v220
        %v244 = vunpack.c.l.b16 %v221
        %v245 = vunpack.c.l.b16 %v222
        %v246 = vunpack.c.l.b16 %v223
        %v247 = vpack.c.b16 %v240, %v239
        %v248 = vpack.c.b16 %v242, %v241
        %v249 = vpack.c.b16 %v244, %v243
        %v250 = vpack.c.b16 %v246, %v245
        %vm255 = vcmask 523264
        %v257 = vsel %vm255, %v215, 0
        %259 = vmatprep.subr.bf16.mxu0 0
        %260 = vmatpush1.bf16.msra.mxu0 %v247
        %261 = vmatprep.subr.bf16.mxu0 0
        %262 = vmatpush1.bf16.msra.mxu0 %v248
        %263 = vmatprep.subr.bf16.mxu0 0
        %264 = vmatpush1.bf16.msra.mxu0 %v249
        %265 = vmatprep.subr.bf16.mxu0 0
        %266 = vmatpush1.bf16.msra.mxu0 %v250
        %267 = vmatprep.subr.bf16.mxu0 0
        %268 = vmatpush1.bf16.msra.mxu0 0
        %269 = vmatprep.subr.bf16.mxu0 0
        %270 = vmatpush1.bf16.msra.mxu0 0
        %271 = vmatprep.subr.bf16.mxu0 0
        %272 = vmatpush1.bf16.msra.mxu0 0
        %273 = vmatprep.subr.bf16.mxu0 0
        %274 = vmatpush1.bf16.msra.mxu0 0
        %275 = vmatprep.subr.bf16.mxu0 0
        %276 = vmatpush1.bf16.msra.mxu0 0
        %277 = vmatprep.subr.bf16.mxu0 0
        %278 = vmatpush1.bf16.msra.mxu0 0
        %279 = vmatprep.subr.bf16.mxu0 0
        %280 = vmatpush1.bf16.msra.mxu0 0
        %281 = vmatprep.subr.bf16.mxu0 0
        %282 = vmatpush1.bf16.msra.mxu0 0
        %283 = vmatprep.subr.bf16.mxu0 0
        %284 = vmatpush1.bf16.msra.mxu0 0
        %285 = vmatprep.subr.bf16.mxu0 0
        %286 = vmatpush1.bf16.msra.mxu0 0
        %287 = vmatprep.subr.bf16.mxu0 0
        %288 = vmatpush1.bf16.msra.mxu0 0
        %289 = vmatprep.subr.bf16.mxu0 0
        %290 = vmatpush1.bf16.msra.mxu0 0
        %291 = vmatprep.mubr.bf16.mxu0 0
        %292 = vmatmul.mubr.bf16.gmra.mrb[0].mxu0 %v257
        %v293 = vpop.f32.mrb[0].mxu0
        %v294 = vadd.f32 %v229, %v293
        %v295 = vpop.f32.mrb[0].mxu0
        %v296 = vpop.f32.mrb[0].mxu0
        %v297 = vpop.f32.mrb[0].mxu0
        %298 = vdwg.mxu0
        %v299 = vpack.c.bf16 %v294, %v294
        %vm300 = vcmask 519168
        %301 = vst.msk [vmem:[%s212] sm:$0xf] %vm300, %v299
        %s302 = sand.u32 %s97, 1
        %s303 = scalar_lea.sflag [#allocation4], %s302
        %s304 = sand.u32 %s97, 1
        %s305 = smul.addr %s304, 4
        %s306 = scalar_lea.vmem [#allocation8], %s305
        // Predicated region
        $region45: #{decoder_layer.11} parent=31 // pred_check
          %p307 = pneg %p107
        $region46: #{decoder_layer.11} parent=31 // pred_check_branch
          %309 = sbr.rel (%p307) target = $region48
        $region47: #{decoder_layer.11} parent=31 // pred_region
          %s311 = ssub.s32 64, 64
          %312 = vsyncadd %s303, %s311
          %s313 = smul.addr %s21, 64
          %s314 = scalar_lea.hbm %s3, %s313
          %s316 = sshll.u32 %s306, 4
          %s317 = int_to_ptr.vmem [resolvable:$true] %s316
          %319 = dma.vmem_to_hbm [thread:$0]  %s317, 64, %s314, %s303
        $region48: #{decoder_layer.11} parent=31 // pred_fallthru
          _
      $region32: #{decoder_layer.11} parent=5 // pred_fallthru
        _
      %p320 = scmp.le.s32.totalorder 2, %s16
      // Predicated region
      $region49: #{decoder_layer.11} parent=5 // pred_check
        %p321 = pneg %p320
      $region50: #{decoder_layer.11} parent=5 // pred_check_branch
        %323 = sbr.rel (%p321) target = $region52
      $region51: #{decoder_layer.11} parent=5 // pred_region
        %s324 = ssub.s32 %s16, 2
        // Predicated region
        $region53: #{decoder_layer.11} parent=51 // pred_check
          %p325 = pneg %p113
        $region54: #{decoder_layer.11} parent=51 // pred_check_branch
          %327 = sbr.rel (%p325) target = $region56
        $region55: #{decoder_layer.11} parent=51 // pred_region
          %s328 = sand.u32 %s98, 1
          %s329 = scalar_lea.sflag [#allocation4], %s328
          %s330 = sand.u32 %s98, 1
          %s331 = smul.addr %s330, 4
          %s332 = scalar_lea.vmem [#allocation8], %s331
          %333 = dma.done %s329, 64
        $region56: #{decoder_layer.11} parent=51 // pred_fallthru
          _
      $region52: #{decoder_layer.11} parent=5 // pred_fallthru
        _
    $region6: #{decoder_layer.11} parent=1 // loop_footer
      %s20 = sadd.s32 1, %s16
    $region7: #{decoder_layer.11} parent=1 // loop_footer_branch
      %15 = sbr.rel target = $region3
    $region8: #{decoder_layer.11} parent=1 // loop_exit
      _
    %334 = vsyncpa [#allocation3], 1
    %s335 = scalar_lea.sflag [#allocation3], 1
    %336 = vsyncpa %s335, 1
    %337 = vsyncpa [#allocation6], 1
    %338 = vsyncpa [#allocation4], 1
    %s339 = scalar_lea.sflag [#allocation4], 1
    %340 = vsyncpa %s339, 1

// kernel: decoder_layer.12
$region0: #{decoder_layer.12}
  #allocation0 [shape = 'u32[]', space=smem, size = 0x4, offset = 0x4, fixed_abs, tag = 'smem constant byte address 0x4 - core index']
  #allocation1 [shape = 'u32[144,128]{1,0:T(1,128)}', space=vmem, size = 0x12000, scoped, tag = 'internal scratch']
  %s0 = inlined_call_operand.hbm [shape: f32[32,64], index: 0, kind: input, shape index: {}]
  %s1 = inlined_call_operand.hbm [shape: bf16[64,128], index: 1, kind: input, shape index: {}]
  %s2 = inlined_call_operand.hbm [shape: f32[1,128], index: 2, kind: input, shape index: {}]
  %s3 = inlined_call_operand.hbm [shape: bf16[32,128], index: 3, kind: output, shape index: {}]
  %s4 = sld [smem:[#allocation0]]
  $region57: #{decoder_layer.12} parent=0
    _
  %s6 = ssub.s32 1, %s4
  %s7 = scalar_select 0, %s6, %s4
  $region1: #{decoder_layer.12} parent=0
    #allocation2 [shape = 'u8[16384]{0}', space=vmem, size = 0x4000, scoped, tag = 'input window, operand 0']
    #allocation3 [shape = 's32[2]{0}', space=sflag, size = 0x8, scoped, tag = 'scoped memory for decoder_layer.12']
    #allocation4 [shape = 's32[2]{0}', space=sflag, size = 0x8, scoped, tag = 'scoped memory for decoder_layer.12']
    #allocation5 [shape = 'u8[16384]{0}', space=vmem, size = 0x4000, scoped, tag = 'input window, operand 1, single buffered']
    #allocation6 [shape = 's32[1]{0}', space=sflag, size = 0x4, scoped, tag = 'scoped memory for decoder_layer.12']
    #allocation7 [shape = 'u8[512]{0}', space=vmem, size = 0x400, scoped, tag = 'input window, operand 2, single buffered']
    #allocation8 [shape = 'u8[8192]{0}', space=vmem, size = 0x2000, scoped, tag = 'output window, operand 0']
    %8 = vsyncpa [#allocation3], 0
    %s9 = scalar_lea.sflag [#allocation3], 1
    %10 = vsyncpa %s9, 0
    %11 = vsyncpa [#allocation6], 0
    %12 = vsyncpa [#allocation4], 0
    %s13 = scalar_lea.sflag [#allocation4], 1
    %14 = vsyncpa %s13, 0
    loop: start=0, step=1, limit=4
    $region2: #{decoder_layer.12} parent=1 // loop_pre_header
      _
    $region3: #{decoder_layer.12} parent=1 // loop_header
      %s16 = sphi 0, %s20
      %p17 = scmp.ge.s32.totalorder %s16, 4
      %s26 = sphi 0, %s28
      %s29 = sphi 0, %s26
      %s30 = sphi 0, %s29
      %s46 = sphi 0, %s30
      %s50 = sphi 0, %s50
      %s52 = sphi 0, %s50
      %s53 = sphi 0, %s52
      %s67 = sphi 0, %s53
      %s71 = sphi 0, %s71
      %s73 = sphi 0, %s71
      %s74 = sphi 0, %s73
      %s88 = sphi 0, %s74
      %s94 = sphi 0, %s96
      %s97 = sphi 0, %s94
      %s98 = sphi 0, %s97
      %s114 = sphi 0, %s98
    $region4: #{decoder_layer.12} parent=1 // loop_header_branch
      %19 = sbr.rel (%p17) target = $region8
    $region5: #{decoder_layer.12} parent=1 // loop_body
      %s21 = ssub.s32 %s16, 1
      %s22 = ssub.s32 %s16, 2
      %s23 = sadd.s32 %s16, 1
      %s24 = ssub.s32 %s16, %s23
      %p25 = scmp.eq.s32.totalorder %s24, 0
      %s27 = sadd.s32 %s26, 1
      %s28 = scalar_select %p25, %s26, %s27
      %p31 = pneg %p25
      %p32 = scmp.eq.s32.totalorder %s16, 1
      %p33 = por %p31, %p32
      %p34 = scmp.ne.s32.totalorder %s26, %s29
      %p35 = scmp.eq.s32.totalorder %s16, 0
      %p36 = por %p34, %p35
      %p37 = scmp.ne.s32.totalorder %s26, %s29
      %p38 = scmp.eq.s32.totalorder %s21, 1
      %p39 = por %p37, %p38
      %p40 = scmp.ne.s32.totalorder %s29, %s30
      %p41 = scmp.eq.s32.totalorder %s21, 0
      %p42 = por %p40, %p41
      %p43 = scmp.ne.s32.totalorder %s29, %s30
      %p44 = scmp.eq.s32.totalorder %s22, 1
      %p45 = por %p43, %p44
      %p47 = scmp.ne.s32.totalorder %s30, %s46
      %p48 = scmp.eq.s32.totalorder %s22, 0
      %p49 = por %p47, %p48
      %s51 = sadd.s32 %s50, 1
      %p54 = scmp.eq.s32.totalorder %s16, 1
      %p55 = scmp.ne.s32.totalorder %s50, %s52
      %p56 = scmp.eq.s32.totalorder %s16, 0
      %p57 = por %p55, %p56
      %p58 = scmp.ne.s32.totalorder %s50, %s52
      %p59 = scmp.eq.s32.totalorder %s21, 1
      %p60 = por %p58, %p59
      %p61 = scmp.ne.s32.totalorder %s52, %s53
      %p62 = scmp.eq.s32.totalorder %s21, 0
      %p63 = por %p61, %p62
      %p64 = scmp.ne.s32.totalorder %s52, %s53
      %p65 = scmp.eq.s32.totalorder %s22, 1
      %p66 = por %p64, %p65
      %p68 = scmp.ne.s32.totalorder %s53, %s67
      %p69 = scmp.eq.s32.totalorder %s22, 0
      %p70 = por %p68, %p69
      %s72 = sadd.s32 %s71, 1
      %p75 = scmp.eq.s32.totalorder %s16, 1
      %p76 = scmp.ne.s32.totalorder %s71, %s73
      %p77 = scmp.eq.s32.totalorder %s16, 0
      %p78 = por %p76, %p77
      %p79 = scmp.ne.s32.totalorder %s71, %s73
      %p80 = scmp.eq.s32.totalorder %s21, 1
      %p81 = por %p79, %p80
      %p82 = scmp.ne.s32.totalorder %s73, %s74
      %p83 = scmp.eq.s32.totalorder %s21, 0
      %p84 = por %p82, %p83
      %p85 = scmp.ne.s32.totalorder %s73, %s74
      %p86 = scmp.eq.s32.totalorder %s22, 1
      %p87 = por %p85, %p86
      %p89 = scmp.ne.s32.totalorder %s74, %s88
      %p90 = scmp.eq.s32.totalorder %s22, 0
      %p91 = por %p89, %p90
      %s92 = ssub.s32 %s16, %s23
      %p93 = scmp.eq.s32.totalorder %s92, 0
      %s95 = sadd.s32 %s94, 1
      %s96 = scalar_select %p93, %s94, %s95
      %p99 = pneg %p93
      %p100 = scmp.eq.s32.totalorder %s16, 1
      %p101 = por %p99, %p100
      %p102 = scmp.ne.s32.totalorder %s94, %s97
      %p103 = scmp.eq.s32.totalorder %s16, 0
      %p104 = por %p102, %p103
      %p105 = scmp.ne.s32.totalorder %s94, %s97
      %p106 = scmp.eq.s32.totalorder %s21, 1
      %p107 = por %p105, %p106
      %p108 = scmp.ne.s32.totalorder %s97, %s98
      %p109 = scmp.eq.s32.totalorder %s21, 0
      %p110 = por %p108, %p109
      %p111 = scmp.ne.s32.totalorder %s97, %s98
      %p112 = scmp.eq.s32.totalorder %s22, 1
      %p113 = por %p111, %p112
      %p115 = scmp.ne.s32.totalorder %s98, %s114
      %p116 = scmp.eq.s32.totalorder %s22, 0
      %p117 = por %p115, %p116
      %p118 = scmp.le.s32.totalorder 1, %s16
      %p119 = scmp.lt.s32.totalorder %s16, 3
      %p120 = pnand %p118, %p119
      %p121 = pneg %p120
      // Predicated region
      $region9: #{decoder_layer.12} parent=5 // pred_check
        _
      $region10: #{decoder_layer.12} parent=5 // pred_check_branch
        %123 = sbr.rel (%p120) target = $region12
      $region11: #{decoder_layer.12} parent=5 // pred_region
        %s124 = ssub.s32 %s16, 1
        // Predicated region
        $region13: #{decoder_layer.12} parent=11 // pred_check
          %p125 = pneg %p63
        $region14: #{decoder_layer.12} parent=11 // pred_check_branch
          %127 = sbr.rel (%p125) target = $region16
        $region15: #{decoder_layer.12} parent=11 // pred_region
          %s129 = ssub.s32 512, 512
          %130 = vsyncadd [#allocation6], %s129
          %s131 = sshll.u32 [#allocation5], 4
          %s132 = int_to_ptr.vmem [resolvable:$true] %s131
          %137 = dma.hbm_to_vmem [thread:$0]  %s1, 512, %s132, [#allocation6], 64, 64, 4
        $region16: #{decoder_layer.12} parent=11 // pred_fallthru
          _
        // Predicated region
        $region17: #{decoder_layer.12} parent=11 // pred_check
          %p138 = pneg %p84
        $region18: #{decoder_layer.12} parent=11 // pred_check_branch
          %140 = sbr.rel (%p138) target = $region20
        $region19: #{decoder_layer.12} parent=11 // pred_region
          %s142 = ssub.s32 16, 16
          %143 = vsyncadd [#allocation6], %s142
          %s145 = sshll.u32 [#allocation7], 4
          %s146 = int_to_ptr.vmem [resolvable:$true] %s145
          %148 = dma.hbm_to_vmem [thread:$0]  %s2, 16, %s146, [#allocation6]
        $region20: #{decoder_layer.12} parent=11 // pred_fallthru
          _
      $region12: #{decoder_layer.12} parent=5 // pred_fallthru
        _
      %p149 = scmp.lt.s32.totalorder %s16, 2
      // Predicated region
      $region21: #{decoder_layer.12} parent=5 // pred_check
        %p150 = pneg %p149
      $region22: #{decoder_layer.12} parent=5 // pred_check_branch
        %152 = sbr.rel (%p150) target = $region24
      $region23: #{decoder_layer.12} parent=5 // pred_region
        // Predicated region
        $region25: #{decoder_layer.12} parent=23 // pred_check
          %p153 = pneg %p36
        $region26: #{decoder_layer.12} parent=23 // pred_check_branch
          %155 = sbr.rel (%p153) target = $region28
        $region27: #{decoder_layer.12} parent=23 // pred_region
          %s156 = sand.u32 %s26, 1
          %s157 = scalar_lea.sflag [#allocation3], %s156
          %s158 = sand.u32 %s26, 1
          %s159 = smul.addr %s158, 16
          %s160 = scalar_lea.vmem [#allocation2], %s159
          %s161 = smul.u32 2, %s16
          %s163 = ssub.s32 256, 256
          %164 = vsyncadd %s157, %s163
          %s165 = smul.addr %s161, 128
          %s166 = scalar_lea.hbm %s0, %s165
          %s167 = sshll.u32 %s160, 4
          %s168 = int_to_ptr.vmem [resolvable:$true] %s167
          %173 = dma.hbm_to_vmem [thread:$0]  %s166, 256, %s168, %s157, 128, 128, 8
        $region28: #{decoder_layer.12} parent=23 // pred_fallthru
          _
      $region24: #{decoder_layer.12} parent=5 // pred_fallthru
        _
      %p174 = scmp.le.s32.totalorder 1, %s16
      %p175 = scmp.lt.s32.totalorder %s16, 3
      %p176 = pnand %p174, %p175
      %p177 = pneg %p176
      // Predicated region
      $region29: #{decoder_layer.12} parent=5 // pred_check
        _
      $region30: #{decoder_layer.12} parent=5 // pred_check_branch
        %179 = sbr.rel (%p176) target = $region32
      $region31: #{decoder_layer.12} parent=5 // pred_region
        %s180 = ssub.s32 %s16, 1
        %s181 = sand.u32 %s29, 1
        %s182 = scalar_lea.sflag [#allocation3], %s181
        %s183 = sand.u32 %s29, 1
        %s184 = smul.addr %s183, 16
        %s185 = scalar_lea.vmem [#allocation2], %s184
        // Predicated region
        $region33: #{decoder_layer.12} parent=31 // pred_check
          %p186 = pneg %p42
        $region34: #{decoder_layer.12} parent=31 // pred_check_branch
          %188 = sbr.rel (%p186) target = $region36
        $region35: #{decoder_layer.12} parent=31 // pred_region
          %189 = dma.done %s182, 256
        $region36: #{decoder_layer.12} parent=31 // pred_fallthru
          _
        // Predicated region
        $region37: #{decoder_layer.12} parent=31 // pred_check
          %p190 = pneg %p63
        $region38: #{decoder_layer.12} parent=31 // pred_check_branch
          %192 = sbr.rel (%p190) target = $region40
        $region39: #{decoder_layer.12} parent=31 // pred_region
          %193 = dma.done [#allocation6], 512
        $region40: #{decoder_layer.12} parent=31 // pred_fallthru
          _
        // Predicated region
        $region41: #{decoder_layer.12} parent=31 // pred_check
          %p194 = pneg %p84
        $region42: #{decoder_layer.12} parent=31 // pred_check_branch
          %196 = sbr.rel (%p194) target = $region44
        $region43: #{decoder_layer.12} parent=31 // pred_region
          %197 = dma.done [#allocation6], 16
        $region44: #{decoder_layer.12} parent=31 // pred_fallthru
          _
        %s198 = sand.u32 %s29, 1
        %s199 = scalar_lea.sflag [#allocation3], %s198
        %s200 = sand.u32 %s29, 1
        %s201 = smul.addr %s200, 16
        %s202 = scalar_lea.vmem [#allocation2], %s201
        %p203 = pneg %p42
        %p204 = pneg %p39
        %p205 = pneg %p63
        %p206 = pneg %p60
        %p207 = pneg %p84
        %p208 = pneg %p81
        %p209 = pneg %p110
        %p210 = pneg %p107
        %s211 = sand.u32 %s97, 1
        %s212 = scalar_lea.sflag [#allocation4], %s211
        %s213 = sand.u32 %s97, 1
        %s214 = smul.addr %s213, 8
        %s215 = scalar_lea.vmem [#allocation8], %s214
        %s216 = smul.u32 2, %s21
        %s217 = smul.u32 2, %s21
        %v219 = vld [vmem:[%s185] sm:$0xff]
        %v220 = vld [vmem:[%s185 + $0x8] sm:$0xff]
        %v221 = vpack.c.bf16 %v220, %v219
        %v222 = vld [vmem:[#allocation5] sm:$0xf]
        %v223 = vld [vmem:[#allocation5 + $0x4] sm:$0xf]
        %v224 = vld [vmem:[#allocation5 + $0x8] sm:$0xf]
        %v225 = vld [vmem:[#allocation5 + $0xc] sm:$0xf]
        %v226 = vld [vmem:[#allocation5 + $0x10] sm:$0xf]
        %v227 = vld [vmem:[#allocation5 + $0x14] sm:$0xf]
        %v228 = vld [vmem:[#allocation5 + $0x18] sm:$0xf]
        %v229 = vld [vmem:[#allocation5 + $0x1c] sm:$0xf]
        %v230 = vld [vmem:[#allocation7] sm:$0x1]
        %v232 = vlaneseq
        %v233 = vshrl.u32 %v232, 7
        %v234 = vsub.s32 0, %v233
        %v235 = vrot.slane %v230, %v234
        %v245 = vunpack.c.l.b16 %v222
        %v246 = vunpack.c.l.b16 %v223
        %v247 = vunpack.c.l.b16 %v224
        %v248 = vunpack.c.l.b16 %v225
        %v249 = vunpack.c.l.b16 %v226
        %v250 = vunpack.c.l.b16 %v227
        %v251 = vunpack.c.l.b16 %v228
        %v252 = vunpack.c.l.b16 %v229
        %v253 = vpack.c.b16 %v246, %v245
        %v254 = vpack.c.b16 %v248, %v247
        %v255 = vpack.c.b16 %v250, %v249
        %v256 = vpack.c.b16 %v252, %v251
        %vm261 = vcmask 523264
        %v263 = vsel %vm261, %v221, 0
        %265 = vmatprep.subr.bf16.mxu0 0
        %266 = vmatpush1.bf16.msra.mxu0 %v253
        %267 = vmatprep.subr.bf16.mxu0 0
        %268 = vmatpush1.bf16.msra.mxu0 %v254
        %269 = vmatprep.subr.bf16.mxu0 0
        %270 = vmatpush1.bf16.msra.mxu0 %v255
        %271 = vmatprep.subr.bf16.mxu0 0
        %272 = vmatpush1.bf16.msra.mxu0 %v256
        %273 = vmatprep.subr.bf16.mxu0 0
        %274 = vmatpush1.bf16.msra.mxu0 0
        %275 = vmatprep.subr.bf16.mxu0 0
        %276 = vmatpush1.bf16.msra.mxu0 0
        %277 = vmatprep.subr.bf16.mxu0 0
        %278 = vmatpush1.bf16.msra.mxu0 0
        %279 = vmatprep.subr.bf16.mxu0 0
        %280 = vmatpush1.bf16.msra.mxu0 0
        %281 = vmatprep.subr.bf16.mxu0 0
        %282 = vmatpush1.bf16.msra.mxu0 0
        %283 = vmatprep.subr.bf16.mxu0 0
        %284 = vmatpush1.bf16.msra.mxu0 0
        %285 = vmatprep.subr.bf16.mxu0 0
        %286 = vmatpush1.bf16.msra.mxu0 0
        %287 = vmatprep.subr.bf16.mxu0 0
        %288 = vmatpush1.bf16.msra.mxu0 0
        %289 = vmatprep.subr.bf16.mxu0 0
        %290 = vmatpush1.bf16.msra.mxu0 0
        %291 = vmatprep.subr.bf16.mxu0 0
        %292 = vmatpush1.bf16.msra.mxu0 0
        %293 = vmatprep.subr.bf16.mxu0 0
        %294 = vmatpush1.bf16.msra.mxu0 0
        %295 = vmatprep.subr.bf16.mxu0 0
        %296 = vmatpush1.bf16.msra.mxu0 0
        %297 = vmatprep.mubr.bf16.mxu0 0
        %298 = vmatmul.mubr.bf16.gmra.mrb[0].mxu0 %v263
        %v299 = vpop.f32.mrb[0].mxu0
        %v300 = vadd.f32 %v235, %v299
        %v301 = vpop.f32.mrb[0].mxu0
        %v302 = vpop.f32.mrb[0].mxu0
        %v303 = vadd.f32 %v235, %v302
        %v304 = vpop.f32.mrb[0].mxu0
        %305 = vdwg.mxu0
        %v306 = vpack.c.bf16 %v303, %v300
        %v308 = vunpack.c.l.b16 %v306
        %v309 = vunpack.c.h.b16 %v306
        %v310 = vpack.c.b16 %v308, %v308
        %v311 = vpack.c.b16 %v309, %v309
        %314 = vst [vmem:[%s215] sm:$0xf] %v310
        %315 = vst [vmem:[%s215 + $0x4] sm:$0xf] %v311
        %s316 = sand.u32 %s97, 1
        %s317 = scalar_lea.sflag [#allocation4], %s316
        %s318 = sand.u32 %s97, 1
        %s319 = smul.addr %s318, 8
        %s320 = scalar_lea.vmem [#allocation8], %s319
        // Predicated region
        $region45: #{decoder_layer.12} parent=31 // pred_check
          %p321 = pneg %p107
        $region46: #{decoder_layer.12} parent=31 // pred_check_branch
          %323 = sbr.rel (%p321) target = $region48
        $region47: #{decoder_layer.12} parent=31 // pred_region
          %s324 = smul.u32 2, %s21
          %s326 = ssub.s32 128, 128
          %327 = vsyncadd %s317, %s326
          %s328 = smul.addr %s324, 64
          %s329 = scalar_lea.hbm %s3, %s328
          %s330 = sshll.u32 %s320, 4
          %s331 = int_to_ptr.vmem [resolvable:$true] %s330
          %336 = dma.vmem_to_hbm [thread:$0]  %s331, 128, %s329, %s317, 64, 64, 4
        $region48: #{decoder_layer.12} parent=31 // pred_fallthru
          _
      $region32: #{decoder_layer.12} parent=5 // pred_fallthru
        _
      %p337 = scmp.le.s32.totalorder 2, %s16
      // Predicated region
      $region49: #{decoder_layer.12} parent=5 // pred_check
        %p338 = pneg %p337
      $region50: #{decoder_layer.12} parent=5 // pred_check_branch
        %340 = sbr.rel (%p338) target = $region52
      $region51: #{decoder_layer.12} parent=5 // pred_region
        %s341 = ssub.s32 %s16, 2
        // Predicated region
        $region53: #{decoder_layer.12} parent=51 // pred_check
          %p342 = pneg %p113
        $region54: #{decoder_layer.12} parent=51 // pred_check_branch
          %344 = sbr.rel (%p342) target = $region56
        $region55: #{decoder_layer.12} parent=51 // pred_region
          %s345 = sand.u32 %s98, 1
          %s346 = scalar_lea.sflag [#allocation4], %s345
          %s347 = sand.u32 %s98, 1
          %s348 = smul.addr %s347, 8
          %s349 = scalar_lea.vmem [#allocation8], %s348
          %350 = dma.done %s346, 128
        $region56: #{decoder_layer.12} parent=51 // pred_fallthru
          _
      $region52: #{decoder_layer.12} parent=5 // pred_fallthru
        _
    $region6: #{decoder_layer.12} parent=1 // loop_footer
      %s20 = sadd.s32 1, %s16
    $region7: #{decoder_layer.12} parent=1 // loop_footer_branch
      %15 = sbr.rel target = $region3
    $region8: #{decoder_layer.12} parent=1 // loop_exit
      _
    %351 = vsyncpa [#allocation3], 1
    %s352 = scalar_lea.sflag [#allocation3], 1
    %353 = vsyncpa %s352, 1
    %354 = vsyncpa [#allocation6], 1
    %355 = vsyncpa [#allocation4], 1
    %s356 = scalar_lea.sflag [#allocation4], 1
    %357 = vsyncpa %s356, 1

// kernel: decoder_layer.13
$region0: #{decoder_layer.13}
  #allocation0 [shape = 'u32[]', space=smem, size = 0x4, offset = 0x4, fixed_abs, tag = 'smem constant byte address 0x4 - core index']
  #allocation1 [shape = 'u32[144,128]{1,0:T(1,128)}', space=vmem, size = 0x12000, scoped, tag = 'internal scratch']
  %s0 = inlined_call_operand.hbm [shape: bf16[2,8,64], index: 0, kind: input, shape index: {}]
  %s1 = inlined_call_operand.hbm [shape: bf16[2,16,128], index: 1, kind: input, shape index: {}]
  %s2 = inlined_call_operand.hbm [shape: bf16[2,8,64], index: 2, kind: output, shape index: {}]
  %s3 = sld [smem:[#allocation0]]
  $region49: #{decoder_layer.13} parent=0
    _
  %s5 = ssub.s32 1, %s3
  %s6 = scalar_select 0, %s5, %s3
  $region1: #{decoder_layer.13} parent=0
    #allocation2 [shape = 'u8[4096]{0}', space=vmem, size = 0x1000, scoped, tag = 'input window, operand 0']
    #allocation3 [shape = 's32[2]{0}', space=sflag, size = 0x8, scoped, tag = 'scoped memory for decoder_layer.13']
    #allocation4 [shape = 's32[2]{0}', space=sflag, size = 0x8, scoped, tag = 'scoped memory for decoder_layer.13']
    #allocation5 [shape = 'u8[8192]{0}', space=vmem, size = 0x2000, scoped, tag = 'input window, operand 1']
    #allocation6 [shape = 's32[2]{0}', space=sflag, size = 0x8, scoped, tag = 'scoped memory for decoder_layer.13']
    #allocation7 [shape = 'u8[4096]{0}', space=vmem, size = 0x1000, scoped, tag = 'output window, operand 0']
    %7 = vsyncpa [#allocation3], 0
    %s8 = scalar_lea.sflag [#allocation3], 1
    %9 = vsyncpa %s8, 0
    %10 = vsyncpa [#allocation6], 0
    %s11 = scalar_lea.sflag [#allocation6], 1
    %12 = vsyncpa %s11, 0
    %13 = vsyncpa [#allocation4], 0
    %s14 = scalar_lea.sflag [#allocation4], 1
    %15 = vsyncpa %s14, 0
    loop: start=0, step=1, limit=4
    $region2: #{decoder_layer.13} parent=1 // loop_pre_header
      _
    $region3: #{decoder_layer.13} parent=1 // loop_header
      %s17 = sphi 0, %s21
      %p18 = scmp.ge.s32.totalorder %s17, 4
      %s24 = sphi 0, %s36
      %s25 = sphi 0, %s32
      %s26 = sphi 0, %s24
      %s27 = sphi 0, %s25
      %s28 = sphi 0, %s26
      %s29 = sphi 0, %s27
      %s41 = sphi 0, %s43
      %s44 = sphi 0, %s41
      %s45 = sphi 0, %s44
      %s61 = sphi 0, %s45
      %s67 = sphi 0, %s69
      %s70 = sphi 0, %s67
      %s71 = sphi 0, %s70
      %s87 = sphi 0, %s71
      %s95 = sphi 0, %s97
      %s98 = sphi 0, %s95
      %s99 = sphi 0, %s98
      %s115 = sphi 0, %s99
    $region4: #{decoder_layer.13} parent=1 // loop_header_branch
      %20 = sbr.rel (%p18) target = $region8
    $region5: #{decoder_layer.13} parent=1 // loop_body
      %s22 = ssub.s32 %s17, 1
      %s23 = ssub.s32 %s17, 2
      %s30 = sadd.s32 1, %s25
      %p31 = scmp.ge.s32.totalorder %s30, 1
      %s32 = scalar_select %p31, 0, %s30
      %s33 = sadd.s32 1, %s24
      %s34 = scalar_select %p31, %s33, %s24
      %p35 = scmp.ge.s32.totalorder %s34, 2
      %s36 = scalar_select %p35, 0, %s34
      %s37 = ssub.s32 %s24, %s36
      %s38 = ssub.s32 %s25, %s32
      %s39 = sor.u32 %s37, %s38
      %p40 = scmp.eq.s32.totalorder %s39, 0
      %s42 = sadd.s32 %s41, 1
      %s43 = scalar_select %p40, %s41, %s42
      %p46 = pneg %p40
      %p47 = scmp.eq.s32.totalorder %s17, 1
      %p48 = por %p46, %p47
      %p49 = scmp.ne.s32.totalorder %s41, %s44
      %p50 = scmp.eq.s32.totalorder %s17, 0
      %p51 = por %p49, %p50
      %p52 = scmp.ne.s32.totalorder %s41, %s44
      %p53 = scmp.eq.s32.totalorder %s22, 1
      %p54 = por %p52, %p53
      %p55 = scmp.ne.s32.totalorder %s44, %s45
      %p56 = scmp.eq.s32.totalorder %s22, 0
      %p57 = por %p55, %p56
      %p58 = scmp.ne.s32.totalorder %s44, %s45
      %p59 = scmp.eq.s32.totalorder %s23, 1
      %p60 = por %p58, %p59
      %p62 = scmp.ne.s32.totalorder %s45, %s61
      %p63 = scmp.eq.s32.totalorder %s23, 0
      %p64 = por %p62, %p63
      %s65 = ssub.s32 %s24, %s36
      %p66 = scmp.eq.s32.totalorder %s65, 0
      %s68 = sadd.s32 %s67, 1
      %s69 = scalar_select %p66, %s67, %s68
      %p72 = pneg %p66
      %p73 = scmp.eq.s32.totalorder %s17, 1
      %p74 = por %p72, %p73
      %p75 = scmp.ne.s32.totalorder %s67, %s70
      %p76 = scmp.eq.s32.totalorder %s17, 0
      %p77 = por %p75, %p76
      %p78 = scmp.ne.s32.totalorder %s67, %s70
      %p79 = scmp.eq.s32.totalorder %s22, 1
      %p80 = por %p78, %p79
      %p81 = scmp.ne.s32.totalorder %s70, %s71
      %p82 = scmp.eq.s32.totalorder %s22, 0
      %p83 = por %p81, %p82
      %p84 = scmp.ne.s32.totalorder %s70, %s71
      %p85 = scmp.eq.s32.totalorder %s23, 1
      %p86 = por %p84, %p85
      %p88 = scmp.ne.s32.totalorder %s71, %s87
      %p89 = scmp.eq.s32.totalorder %s23, 0
      %p90 = por %p88, %p89
      %s91 = ssub.s32 %s24, %s36
      %s92 = ssub.s32 %s25, %s32
      %s93 = sor.u32 %s91, %s92
      %p94 = scmp.eq.s32.totalorder %s93, 0
      %s96 = sadd.s32 %s95, 1
      %s97 = scalar_select %p94, %s95, %s96
      %p100 = pneg %p94
      %p101 = scmp.eq.s32.totalorder %s17, 1
      %p102 = por %p100, %p101
      %p103 = scmp.ne.s32.totalorder %s95, %s98
      %p104 = scmp.eq.s32.totalorder %s17, 0
      %p105 = por %p103, %p104
      %p106 = scmp.ne.s32.totalorder %s95, %s98
      %p107 = scmp.eq.s32.totalorder %s22, 1
      %p108 = por %p106, %p107
      %p109 = scmp.ne.s32.totalorder %s98, %s99
      %p110 = scmp.eq.s32.totalorder %s22, 0
      %p111 = por %p109, %p110
      %p112 = scmp.ne.s32.totalorder %s98, %s99
      %p113 = scmp.eq.s32.totalorder %s23, 1
      %p114 = por %p112, %p113
      %p116 = scmp.ne.s32.totalorder %s99, %s115
      %p117 = scmp.eq.s32.totalorder %s23, 0
      %p118 = por %p116, %p117
      %p119 = scmp.le.s32.totalorder 1, %s17
      %p120 = scmp.lt.s32.totalorder %s17, 3
      %p121 = pnand %p119, %p120
      %p122 = pneg %p121
      // Predicated region
      $region9: #{decoder_layer.13} parent=5 // pred_check
        _
      $region10: #{decoder_layer.13} parent=5 // pred_check_branch
        %124 = sbr.rel (%p121) target = $region12
      $region11: #{decoder_layer.13} parent=5 // pred_region
        %s125 = ssub.s32 %s17, 1
      $region12: #{decoder_layer.13} parent=5 // pred_fallthru
        _
      %p126 = scmp.lt.s32.totalorder %s17, 2
      // Predicated region
      $region13: #{decoder_layer.13} parent=5 // pred_check
        %p127 = pneg %p126
      $region14: #{decoder_layer.13} parent=5 // pred_check_branch
        %129 = sbr.rel (%p127) target = $region16
      $region15: #{decoder_layer.13} parent=5 // pred_region
        // Predicated region
        $region17: #{decoder_layer.13} parent=15 // pred_check
          %p130 = pneg %p51
        $region18: #{decoder_layer.13} parent=15 // pred_check_branch
          %132 = sbr.rel (%p130) target = $region20
        $region19: #{decoder_layer.13} parent=15 // pred_region
          %s133 = sand.u32 %s41, 1
          %s134 = scalar_lea.sflag [#allocation3], %s133
          %s135 = sand.u32 %s41, 1
          %s136 = smul.addr %s135, 4
          %s137 = scalar_lea.vmem [#allocation2], %s136
          %s139 = ssub.s32 64, 64
          %140 = vsyncadd %s134, %s139
          %s141 = sadd.s32 %s25, %s24
          %s142 = smul.addr %s141, 64
          %s143 = scalar_lea.hbm %s0, %s142
          %s145 = sshll.u32 %s137, 4
          %s146 = int_to_ptr.vmem [resolvable:$true] %s145
          %148 = dma.hbm_to_vmem [thread:$0]  %s143, 64, %s146, %s134
        $region20: #{decoder_layer.13} parent=15 // pred_fallthru
          _
        // Predicated region
        $region21: #{decoder_layer.13} parent=15 // pred_check
          %p149 = pneg %p77
        $region22: #{decoder_layer.13} parent=15 // pred_check_branch
          %151 = sbr.rel (%p149) target = $region24
        $region23: #{decoder_layer.13} parent=15 // pred_region
          %s152 = sand.u32 %s67, 1
          %s153 = scalar_lea.sflag [#allocation6], %s152
          %s154 = sand.u32 %s67, 1
          %s155 = smul.addr %s154, 8
          %s156 = scalar_lea.vmem [#allocation5], %s155
          %s158 = ssub.s32 128, 128
          %159 = vsyncadd %s153, %s158
          %s160 = smul.addr %s24, 2
          %s161 = smul.addr %s160, 64
          %s162 = scalar_lea.hbm %s1, %s161
          %s163 = sshll.u32 %s156, 4
          %s164 = int_to_ptr.vmem [resolvable:$true] %s163
          %169 = dma.hbm_to_vmem [thread:$0]  %s162, 128, %s164, %s153, 64, 64, 4
        $region24: #{decoder_layer.13} parent=15 // pred_fallthru
          _
      $region16: #{decoder_layer.13} parent=5 // pred_fallthru
        _
      %p170 = scmp.le.s32.totalorder 1, %s17
      %p171 = scmp.lt.s32.totalorder %s17, 3
      %p172 = pnand %p170, %p171
      %p173 = pneg %p172
      // Predicated region
      $region25: #{decoder_layer.13} parent=5 // pred_check
        _
      $region26: #{decoder_layer.13} parent=5 // pred_check_branch
        %175 = sbr.rel (%p172) target = $region28
      $region27: #{decoder_layer.13} parent=5 // pred_region
        %s176 = ssub.s32 %s17, 1
        %s177 = sand.u32 %s44, 1
        %s178 = scalar_lea.sflag [#allocation3], %s177
        %s179 = sand.u32 %s44, 1
        %s180 = smul.addr %s179, 4
        %s181 = scalar_lea.vmem [#allocation2], %s180
        // Predicated region
        $region29: #{decoder_layer.13} parent=27 // pred_check
          %p182 = pneg %p57
        $region30: #{decoder_layer.13} parent=27 // pred_check_branch
          %184 = sbr.rel (%p182) target = $region32
        $region31: #{decoder_layer.13} parent=27 // pred_region
          %185 = dma.done %s178, 64
        $region32: #{decoder_layer.13} parent=27 // pred_fallthru
          _
        %s186 = sand.u32 %s70, 1
        %s187 = scalar_lea.sflag [#allocation6], %s186
        %s188 = sand.u32 %s70, 1
        %s189 = smul.addr %s188, 8
        %s190 = scalar_lea.vmem [#allocation5], %s189
        // Predicated region
        $region33: #{decoder_layer.13} parent=27 // pred_check
          %p191 = pneg %p83
        $region34: #{decoder_layer.13} parent=27 // pred_check_branch
          %193 = sbr.rel (%p191) target = $region36
        $region35: #{decoder_layer.13} parent=27 // pred_region
          %194 = dma.done %s187, 128
        $region36: #{decoder_layer.13} parent=27 // pred_fallthru
          _
        %s195 = sand.u32 %s44, 1
        %s196 = scalar_lea.sflag [#allocation3], %s195
        %s197 = sand.u32 %s44, 1
        %s198 = smul.addr %s197, 4
        %s199 = scalar_lea.vmem [#allocation2], %s198
        %p200 = pneg %p57
        %p201 = pneg %p54
        %s202 = sand.u32 %s70, 1
        %s203 = scalar_lea.sflag [#allocation6], %s202
        %s204 = sand.u32 %s70, 1
        %s205 = smul.addr %s204, 8
        %s206 = scalar_lea.vmem [#allocation5], %s205
        %p207 = pneg %p83
        %p208 = pneg %p80
        %p209 = pneg %p111
        %p210 = pneg %p108
        %s211 = sand.u32 %s98, 1
        %s212 = scalar_lea.sflag [#allocation4], %s211
        %s213 = sand.u32 %s98, 1
        %s214 = smul.addr %s213, 4
        %s215 = scalar_lea.vmem [#allocation7], %s214
        %v217 = vld [vmem:[%s181] sm:$0xf]
        %v218 = vld [vmem:[%s190] sm:$0xf]
        %v219 = vld [vmem:[%s190 + $0x4] sm:$0xf]
        %v222 = vunpack.c.l.b16 %v218
        %v223 = vunpack.c.l.b16 %v219
        %v224 = vpack.c.b16 %v223, %v222
        %vm225 = vcmask 130048
        %v227 = vsel %vm225, %v217, 0
        %v230 = vsel %vm225, %v224, 0
        %232 = vmatprep.subr.bf16.mxu0 0
        %233 = vmatpush1.bf16.xpose.msra.mxu0 %v230
        %234 = vmatprep.subr.bf16.mxu0 0
        %235 = vmatpush1.bf16.xpose.msra.mxu0 0
        %236 = vmatprep.subr.bf16.mxu0 0
        %237 = vmatpush1.bf16.xpose.msra.mxu0 0
        %238 = vmatprep.subr.bf16.mxu0 0
        %239 = vmatpush1.bf16.xpose.msra.mxu0 0
        %240 = vmatprep.subr.bf16.mxu0 0
        %241 = vmatpush1.bf16.xpose.msra.mxu0 0
        %242 = vmatprep.subr.bf16.mxu0 0
        %243 = vmatpush1.bf16.xpose.msra.mxu0 0
        %244 = vmatprep.subr.bf16.mxu0 0
        %245 = vmatpush1.bf16.xpose.msra.mxu0 0
        %246 = vmatprep.subr.bf16.mxu0 0
        %247 = vmatpush1.bf16.xpose.msra.mxu0 0
        %248 = vmatprep.subr.bf16.mxu0 0
        %249 = vmatpush1.bf16.xpose.msra.mxu0 0
        %250 = vmatprep.subr.bf16.mxu0 0
        %251 = vmatpush1.bf16.xpose.msra.mxu0 0
        %252 = vmatprep.subr.bf16.mxu0 0
        %253 = vmatpush1.bf16.xpose.msra.mxu0 0
        %254 = vmatprep.subr.bf16.mxu0 0
        %255 = vmatpush1.bf16.xpose.msra.mxu0 0
        %256 = vmatprep.subr.bf16.mxu0 0
        %257 = vmatpush1.bf16.xpose.msra.mxu0 0
        %258 = vmatprep.subr.bf16.mxu0 0
        %259 = vmatpush1.bf16.xpose.msra.mxu0 0
        %260 = vmatprep.subr.bf16.mxu0 0
        %261 = vmatpush1.bf16.xpose.msra.mxu0 0
        %262 = vmatprep.subr.bf16.mxu0 0
        %263 = vmatpush1.bf16.xpose.msra.mxu0 0
        %264 = vmatprep.mubr.bf16.mxu0 0
        %265 = vmatmul.mubr.bf16.gmra.mrb[0].mxu0 %v227
        %v266 = vpop.f32.mrb[0].mxu0
        %v267 = vadd.f32 0.0, %v266
        %v268 = vpop.f32.mrb[0].mxu0
        %v269 = vpop.f32.mrb[0].mxu0
        %v270 = vpop.f32.mrb[0].mxu0
        %271 = vdwg.mxu0
        %v272 = vsel %vm225, %v267, -inf
        %273 = vmax.xlane.f32.xlu0 %v272
        %v274 = vpop.xlane.xlu0 %273
        %v275 = vsub.f32 %v267, %v274
        %v276 = vmul.f32 %v275, 1.442695
        %v277 = vpow.pop %v276
        %v278 = vsel %vm225, %v277, 0.0
        %279 = vadd.xlane.f32.xlu0 %v278
        %v280 = vpop.xlane.xlu0 %279
        %v281 = vrcp.pop %v280
        %v282 = vmul.f32 %v277, %v281
        %v283 = vpack.c.bf16 %v282, %v282
        %284 = vrot.lane.b32.xlu0 %v224, 64
        %v285 = vpop.permute.xlu0 %284
        %v288 = vsel %vm225, %v283, 0
        %290 = vmatprep.subr.bf16.mxu0 0
        %291 = vmatpush1.bf16.msra.mxu0 %v285
        %292 = vmatprep.subr.bf16.mxu0 0
        %293 = vmatpush1.bf16.msra.mxu0 0
        %294 = vmatprep.subr.bf16.mxu0 0
        %295 = vmatpush1.bf16.msra.mxu0 0
        %296 = vmatprep.subr.bf16.mxu0 0
        %297 = vmatpush1.bf16.msra.mxu0 0
        %298 = vmatprep.subr.bf16.mxu0 0
        %299 = vmatpush1.bf16.msra.mxu0 0
        %300 = vmatprep.subr.bf16.mxu0 0
        %301 = vmatpush1.bf16.msra.mxu0 0
        %302 = vmatprep.subr.bf16.mxu0 0
        %303 = vmatpush1.bf16.msra.mxu0 0
        %304 = vmatprep.subr.bf16.mxu0 0
        %305 = vmatpush1.bf16.msra.mxu0 0
        %306 = vmatprep.subr.bf16.mxu0 0
        %307 = vmatpush1.bf16.msra.mxu0 0
        %308 = vmatprep.subr.bf16.mxu0 0
        %309 = vmatpush1.bf16.msra.mxu0 0
        %310 = vmatprep.subr.bf16.mxu0 0
        %311 = vmatpush1.bf16.msra.mxu0 0
        %312 = vmatprep.subr.bf16.mxu0 0
        %313 = vmatpush1.bf16.msra.mxu0 0
        %314 = vmatprep.subr.bf16.mxu0 0
        %315 = vmatpush1.bf16.msra.mxu0 0
        %316 = vmatprep.subr.bf16.mxu0 0
        %317 = vmatpush1.bf16.msra.mxu0 0
        %318 = vmatprep.subr.bf16.mxu0 0
        %319 = vmatpush1.bf16.msra.mxu0 0
        %320 = vmatprep.subr.bf16.mxu0 0
        %321 = vmatpush1.bf16.msra.mxu0 0
        %322 = vmatprep.mubr.bf16.mxu0 0
        %323 = vmatmul.mubr.bf16.gmra.mrb[0].mxu0 %v288
        %v324 = vpop.f32.mrb[0].mxu0
        %v325 = vadd.f32 0.0, %v324
        %v326 = vpop.f32.mrb[0].mxu0
        %v327 = vpop.f32.mrb[0].mxu0
        %v328 = vpop.f32.mrb[0].mxu0
        %329 = vdwg.mxu0
        %v331 = vunpack.c.l.b16 %v217
        %v332 = vpack.c.b16 %v331, %v331
        %333 = vrot.lane.b32.xlu0 %v332, 112
        %v334 = vpop.permute.xlu0 %333
        %335 = vrot.lane.b32.xlu0 %v224, 112
        %v336 = vpop.permute.xlu0 %335
        %v338 = vsel %vm225, %v334, 0
        %v341 = vsel %vm225, %v336, 0
        %343 = vmatprep.subr.bf16.mxu0 0
        %344 = vmatpush1.bf16.xpose.msra.mxu0 %v341
        %345 = vmatprep.subr.bf16.mxu0 0
        %346 = vmatpush1.bf16.xpose.msra.mxu0 0
        %347 = vmatprep.subr.bf16.mxu0 0
        %348 = vmatpush1.bf16.xpose.msra.mxu0 0
        %349 = vmatprep.subr.bf16.mxu0 0
        %350 = vmatpush1.bf16.xpose.msra.mxu0 0
        %351 = vmatprep.subr.bf16.mxu0 0
        %352 = vmatpush1.bf16.xpose.msra.mxu0 0
        %353 = vmatprep.subr.bf16.mxu0 0
        %354 = vmatpush1.bf16.xpose.msra.mxu0 0
        %355 = vmatprep.subr.bf16.mxu0 0
        %356 = vmatpush1.bf16.xpose.msra.mxu0 0
        %357 = vmatprep.subr.bf16.mxu0 0
        %358 = vmatpush1.bf16.xpose.msra.mxu0 0
        %359 = vmatprep.subr.bf16.mxu0 0
        %360 = vmatpush1.bf16.xpose.msra.mxu0 0
        %361 = vmatprep.subr.bf16.mxu0 0
        %362 = vmatpush1.bf16.xpose.msra.mxu0 0
        %363 = vmatprep.subr.bf16.mxu0 0
        %364 = vmatpush1.bf16.xpose.msra.mxu0 0
        %365 = vmatprep.subr.bf16.mxu0 0
        %366 = vmatpush1.bf16.xpose.msra.mxu0 0
        %367 = vmatprep.subr.bf16.mxu0 0
        %368 = vmatpush1.bf16.xpose.msra.mxu0 0
        %369 = vmatprep.subr.bf16.mxu0 0
        %370 = vmatpush1.bf16.xpose.msra.mxu0 0
        %371 = vmatprep.subr.bf16.mxu0 0
        %372 = vmatpush1.bf16.xpose.msra.mxu0 0
        %373 = vmatprep.subr.bf16.mxu0 0
        %374 = vmatpush1.bf16.xpose.msra.mxu0 0
        %375 = vmatprep.mubr.bf16.mxu0 0
        %376 = vmatmul.mubr.bf16.gmra.mrb[0].mxu0 %v338
        %v377 = vpop.f32.mrb[0].mxu0
        %v378 = vadd.f32 0.0, %v377
        %v379 = vpop.f32.mrb[0].mxu0
        %v380 = vpop.f32.mrb[0].mxu0
        %v381 = vpop.f32.mrb[0].mxu0
        %382 = vdwg.mxu0
        %v383 = vsel %vm225, %v378, -inf
        %384 = vmax.xlane.f32.xlu0 %v383
        %v385 = vpop.xlane.xlu0 %384
        %v386 = vsub.f32 %v378, %v385
        %v387 = vmul.f32 %v386, 1.442695
        %v388 = vpow.pop %v387
        %v389 = vsel %vm225, %v388, 0.0
        %390 = vadd.xlane.f32.xlu0 %v389
        %v391 = vpop.xlane.xlu0 %390
        %v392 = vrcp.pop %v391
        %v393 = vmul.f32 %v388, %v392
        %v394 = vpack.c.bf16 %v393, %v393
        %395 = vrot.lane.b32.xlu0 %v224, 48
        %v396 = vpop.permute.xlu0 %395
        %v399 = vsel %vm225, %v394, 0
        %401 = vmatprep.subr.bf16.mxu0 0
        %402 = vmatpush1.bf16.msra.mxu0 %v396
        %403 = vmatprep.subr.bf16.mxu0 0
        %404 = vmatpush1.bf16.msra.mxu0 0
        %405 = vmatprep.subr.bf16.mxu0 0
        %406 = vmatpush1.bf16.msra.mxu0 0
        %407 = vmatprep.subr.bf16.mxu0 0
        %408 = vmatpush1.bf16.msra.mxu0 0
        %409 = vmatprep.subr.bf16.mxu0 0
        %410 = vmatpush1.bf16.msra.mxu0 0
        %411 = vmatprep.subr.bf16.mxu0 0
        %412 = vmatpush1.bf16.msra.mxu0 0
        %413 = vmatprep.subr.bf16.mxu0 0
        %414 = vmatpush1.bf16.msra.mxu0 0
        %415 = vmatprep.subr.bf16.mxu0 0
        %416 = vmatpush1.bf16.msra.mxu0 0
        %417 = vmatprep.subr.bf16.mxu0 0
        %418 = vmatpush1.bf16.msra.mxu0 0
        %419 = vmatprep.subr.bf16.mxu0 0
        %420 = vmatpush1.bf16.msra.mxu0 0
        %421 = vmatprep.subr.bf16.mxu0 0
        %422 = vmatpush1.bf16.msra.mxu0 0
        %423 = vmatprep.subr.bf16.mxu0 0
        %424 = vmatpush1.bf16.msra.mxu0 0
        %425 = vmatprep.subr.bf16.mxu0 0
        %426 = vmatpush1.bf16.msra.mxu0 0
        %427 = vmatprep.subr.bf16.mxu0 0
        %428 = vmatpush1.bf16.msra.mxu0 0
        %429 = vmatprep.subr.bf16.mxu0 0
        %430 = vmatpush1.bf16.msra.mxu0 0
        %431 = vmatprep.subr.bf16.mxu0 0
        %432 = vmatpush1.bf16.msra.mxu0 0
        %433 = vmatprep.mubr.bf16.mxu0 0
        %434 = vmatmul.mubr.bf16.gmra.mrb[0].mxu0 %v399
        %v435 = vpop.f32.mrb[0].mxu0
        %v436 = vadd.f32 0.0, %v435
        %v437 = vpop.f32.mrb[0].mxu0
        %v438 = vpop.f32.mrb[0].mxu0
        %v439 = vpop.f32.mrb[0].mxu0
        %440 = vdwg.mxu0
        %441 = vrot.lane.b32.xlu0 %v332, 96
        %v442 = vpop.permute.xlu0 %441
        %443 = vrot.lane.b32.xlu0 %v224, 96
        %v444 = vpop.permute.xlu0 %443
        %v446 = vsel %vm225, %v442, 0
        %v449 = vsel %vm225, %v444, 0
        %451 = vmatprep.subr.bf16.mxu0 0
        %452 = vmatpush1.bf16.xpose.msra.mxu0 %v449
        %453 = vmatprep.subr.bf16.mxu0 0
        %454 = vmatpush1.bf16.xpose.msra.mxu0 0
        %455 = vmatprep.subr.bf16.mxu0 0
        %456 = vmatpush1.bf16.xpose.msra.mxu0 0
        %457 = vmatprep.subr.bf16.mxu0 0
        %458 = vmatpush1.bf16.xpose.msra.mxu0 0
        %459 = vmatprep.subr.bf16.mxu0 0
        %460 = vmatpush1.bf16.xpose.msra.mxu0 0
        %461 = vmatprep.subr.bf16.mxu0 0
        %462 = vmatpush1.bf16.xpose.msra.mxu0 0
        %463 = vmatprep.subr.bf16.mxu0 0
        %464 = vmatpush1.bf16.xpose.msra.mxu0 0
        %465 = vmatprep.subr.bf16.mxu0 0
        %466 = vmatpush1.bf16.xpose.msra.mxu0 0
        %467 = vmatprep.subr.bf16.mxu0 0
        %468 = vmatpush1.bf16.xpose.msra.mxu0 0
        %469 = vmatprep.subr.bf16.mxu0 0
        %470 = vmatpush1.bf16.xpose.msra.mxu0 0
        %471 = vmatprep.subr.bf16.mxu0 0
        %472 = vmatpush1.bf16.xpose.msra.mxu0 0
        %473 = vmatprep.subr.bf16.mxu0 0
        %474 = vmatpush1.bf16.xpose.msra.mxu0 0
        %475 = vmatprep.subr.bf16.mxu0 0
        %476 = vmatpush1.bf16.xpose.msra.mxu0 0
        %477 = vmatprep.subr.bf16.mxu0 0
        %478 = vmatpush1.bf16.xpose.msra.mxu0 0
        %479 = vmatprep.subr.bf16.mxu0 0
        %480 = vmatpush1.bf16.xpose.msra.mxu0 0
        %481 = vmatprep.subr.bf16.mxu0 0
        %482 = vmatpush1.bf16.xpose.msra.mxu0 0
        %483 = vmatprep.mubr.bf16.mxu0 0
        %484 = vmatmul.mubr.bf16.gmra.mrb[0].mxu0 %v446
        %v485 = vpop.f32.mrb[0].mxu0
        %v486 = vadd.f32 0.0, %v485
        %v487 = vpop.f32.mrb[0].mxu0
        %v488 = vpop.f32.mrb[0].mxu0
        %v489 = vpop.f32.mrb[0].mxu0
        %490 = vdwg.mxu0
        %v491 = vsel %vm225, %v486, -inf
        %492 = vmax.xlane.f32.xlu0 %v491
        %v493 = vpop.xlane.xlu0 %492
        %v494 = vsub.f32 %v486, %v493
        %v495 = vmul.f32 %v494, 1.442695
        %v496 = vpow.pop %v495
        %v497 = vsel %vm225, %v496, 0.0
        %498 = vadd.xlane.f32.xlu0 %v497
        %v499 = vpop.xlane.xlu0 %498
        %v500 = vrcp.pop %v499
        %v501 = vmul.f32 %v496, %v500
        %v502 = vpack.c.bf16 %v501, %v501
        %503 = vrot.lane.b32.xlu0 %v224, 32
        %v504 = vpop.permute.xlu0 %503
        %v507 = vsel %vm225, %v502, 0
        %509 = vmatprep.subr.bf16.mxu0 0
        %510 = vmatpush1.bf16.msra.mxu0 %v504
        %511 = vmatprep.subr.bf16.mxu0 0
        %512 = vmatpush1.bf16.msra.mxu0 0
        %513 = vmatprep.subr.bf16.mxu0 0
        %514 = vmatpush1.bf16.msra.mxu0 0
        %515 = vmatprep.subr.bf16.mxu0 0
        %516 = vmatpush1.bf16.msra.mxu0 0
        %517 = vmatprep.subr.bf16.mxu0 0
        %518 = vmatpush1.bf16.msra.mxu0 0
        %519 = vmatprep.subr.bf16.mxu0 0
        %520 = vmatpush1.bf16.msra.mxu0 0
        %521 = vmatprep.subr.bf16.mxu0 0
        %522 = vmatpush1.bf16.msra.mxu0 0
        %523 = vmatprep.subr.bf16.mxu0 0
        %524 = vmatpush1.bf16.msra.mxu0 0
        %525 = vmatprep.subr.bf16.mxu0 0
        %526 = vmatpush1.bf16.msra.mxu0 0
        %527 = vmatprep.subr.bf16.mxu0 0
        %528 = vmatpush1.bf16.msra.mxu0 0
        %529 = vmatprep.subr.bf16.mxu0 0
        %530 = vmatpush1.bf16.msra.mxu0 0
        %531 = vmatprep.subr.bf16.mxu0 0
        %532 = vmatpush1.bf16.msra.mxu0 0
        %533 = vmatprep.subr.bf16.mxu0 0
        %534 = vmatpush1.bf16.msra.mxu0 0
        %535 = vmatprep.subr.bf16.mxu0 0
        %536 = vmatpush1.bf16.msra.mxu0 0
        %537 = vmatprep.subr.bf16.mxu0 0
        %538 = vmatpush1.bf16.msra.mxu0 0
        %539 = vmatprep.subr.bf16.mxu0 0
        %540 = vmatpush1.bf16.msra.mxu0 0
        %541 = vmatprep.mubr.bf16.mxu0 0
        %542 = vmatmul.mubr.bf16.gmra.mrb[0].mxu0 %v507
        %v543 = vpop.f32.mrb[0].mxu0
        %v544 = vadd.f32 0.0, %v543
        %v545 = vpop.f32.mrb[0].mxu0
        %v546 = vpop.f32.mrb[0].mxu0
        %v547 = vpop.f32.mrb[0].mxu0
        %548 = vdwg.mxu0
        %549 = vrot.lane.b32.xlu0 %v332, 80
        %v550 = vpop.permute.xlu0 %549
        %551 = vrot.lane.b32.xlu0 %v224, 80
        %v552 = vpop.permute.xlu0 %551
        %v554 = vsel %vm225, %v550, 0
        %v557 = vsel %vm225, %v552, 0
        %559 = vmatprep.subr.bf16.mxu0 0
        %560 = vmatpush1.bf16.xpose.msra.mxu0 %v557
        %561 = vmatprep.subr.bf16.mxu0 0
        %562 = vmatpush1.bf16.xpose.msra.mxu0 0
        %563 = vmatprep.subr.bf16.mxu0 0
        %564 = vmatpush1.bf16.xpose.msra.mxu0 0
        %565 = vmatprep.subr.bf16.mxu0 0
        %566 = vmatpush1.bf16.xpose.msra.mxu0 0
        %567 = vmatprep.subr.bf16.mxu0 0
        %568 = vmatpush1.bf16.xpose.msra.mxu0 0
        %569 = vmatprep.subr.bf16.mxu0 0
        %570 = vmatpush1.bf16.xpose.msra.mxu0 0
        %571 = vmatprep.subr.bf16.mxu0 0
        %572 = vmatpush1.bf16.xpose.msra.mxu0 0
        %573 = vmatprep.subr.bf16.mxu0 0
        %574 = vmatpush1.bf16.xpose.msra.mxu0 0
        %575 = vmatprep.subr.bf16.mxu0 0
        %576 = vmatpush1.bf16.xpose.msra.mxu0 0
        %577 = vmatprep.subr.bf16.mxu0 0
        %578 = vmatpush1.bf16.xpose.msra.mxu0 0
        %579 = vmatprep.subr.bf16.mxu0 0
        %580 = vmatpush1.bf16.xpose.msra.mxu0 0
        %581 = vmatprep.subr.bf16.mxu0 0
        %582 = vmatpush1.bf16.xpose.msra.mxu0 0
        %583 = vmatprep.subr.bf16.mxu0 0
        %584 = vmatpush1.bf16.xpose.msra.mxu0 0
        %585 = vmatprep.subr.bf16.mxu0 0
        %586 = vmatpush1.bf16.xpose.msra.mxu0 0
        %587 = vmatprep.subr.bf16.mxu0 0
        %588 = vmatpush1.bf16.xpose.msra.mxu0 0
        %589 = vmatprep.subr.bf16.mxu0 0
        %590 = vmatpush1.bf16.xpose.msra.mxu0 0
        %591 = vmatprep.mubr.bf16.mxu0 0
        %592 = vmatmul.mubr.bf16.gmra.mrb[0].mxu0 %v554
        %v593 = vpop.f32.mrb[0].mxu0
        %v594 = vadd.f32 0.0, %v593
        %v595 = vpop.f32.mrb[0].mxu0
        %v596 = vpop.f32.mrb[0].mxu0
        %v597 = vpop.f32.mrb[0].mxu0
        %598 = vdwg.mxu0
        %v599 = vsel %vm225, %v594, -inf
        %600 = vmax.xlane.f32.xlu0 %v599
        %v601 = vpop.xlane.xlu0 %600
        %v602 = vsub.f32 %v594, %v601
        %v603 = vmul.f32 %v602, 1.442695
        %v604 = vpow.pop %v603
        %v605 = vsel %vm225, %v604, 0.0
        %606 = vadd.xlane.f32.xlu0 %v605
        %v607 = vpop.xlane.xlu0 %606
        %v608 = vrcp.pop %v607
        %v609 = vmul.f32 %v604, %v608
        %v610 = vpack.c.bf16 %v609, %v609
        %611 = vrot.lane.b32.xlu0 %v224, 16
        %v612 = vpop.permute.xlu0 %611
        %v615 = vsel %vm225, %v610, 0
        %617 = vmatprep.subr.bf16.mxu0 0
        %618 = vmatpush1.bf16.msra.mxu0 %v612
        %619 = vmatprep.subr.bf16.mxu0 0
        %620 = vmatpush1.bf16.msra.mxu0 0
        %621 = vmatprep.subr.bf16.mxu0 0
        %622 = vmatpush1.bf16.msra.mxu0 0
        %623 = vmatprep.subr.bf16.mxu0 0
        %624 = vmatpush1.bf16.msra.mxu0 0
        %625 = vmatprep.subr.bf16.mxu0 0
        %626 = vmatpush1.bf16.msra.mxu0 0
        %627 = vmatprep.subr.bf16.mxu0 0
        %628 = vmatpush1.bf16.msra.mxu0 0
        %629 = vmatprep.subr.bf16.mxu0 0
        %630 = vmatpush1.bf16.msra.mxu0 0
        %631 = vmatprep.subr.bf16.mxu0 0
        %632 = vmatpush1.bf16.msra.mxu0 0
        %633 = vmatprep.subr.bf16.mxu0 0
        %634 = vmatpush1.bf16.msra.mxu0 0
        %635 = vmatprep.subr.bf16.mxu0 0
        %636 = vmatpush1.bf16.msra.mxu0 0
        %637 = vmatprep.subr.bf16.mxu0 0
        %638 = vmatpush1.bf16.msra.mxu0 0
        %639 = vmatprep.subr.bf16.mxu0 0
        %640 = vmatpush1.bf16.msra.mxu0 0
        %641 = vmatprep.subr.bf16.mxu0 0
        %642 = vmatpush1.bf16.msra.mxu0 0
        %643 = vmatprep.subr.bf16.mxu0 0
        %644 = vmatpush1.bf16.msra.mxu0 0
        %645 = vmatprep.subr.bf16.mxu0 0
        %646 = vmatpush1.bf16.msra.mxu0 0
        %647 = vmatprep.subr.bf16.mxu0 0
        %648 = vmatpush1.bf16.msra.mxu0 0
        %649 = vmatprep.mubr.bf16.mxu0 0
        %650 = vmatmul.mubr.bf16.gmra.mrb[0].mxu0 %v615
        %v651 = vpop.f32.mrb[0].mxu0
        %v652 = vadd.f32 0.0, %v651
        %v653 = vpop.f32.mrb[0].mxu0
        %v654 = vpop.f32.mrb[0].mxu0
        %v655 = vpop.f32.mrb[0].mxu0
        %656 = vdwg.mxu0
        %658 = vrot.lane.b32.xlu0 %v436, 16
        %v659 = vpop.permute.xlu0 %658
        %662 = vrot.lane.b32.xlu0 %v544, 32
        %v663 = vpop.permute.xlu0 %662
        %666 = vrot.lane.b32.xlu0 %v652, 48
        %v667 = vpop.permute.xlu0 %666
        %v669 = vsel %vm225, %v325, %v659
        %vm670 = vcmask 261120
        %v671 = vsel %vm670, %v669, %v663
        %vm672 = vcmask 392192
        %v673 = vsel %vm672, %v671, %v667
        %v674 = vpack.c.bf16 %v673, %v673
        %vm675 = vcmask 519168
        %676 = vst.msk [vmem:[%s215] sm:$0xf] %vm675, %v674
        %s677 = sand.u32 %s98, 1
        %s678 = scalar_lea.sflag [#allocation4], %s677
        %s679 = sand.u32 %s98, 1
        %s680 = smul.addr %s679, 4
        %s681 = scalar_lea.vmem [#allocation7], %s680
        // Predicated region
        $region37: #{decoder_layer.13} parent=27 // pred_check
          %p682 = pneg %p108
        $region38: #{decoder_layer.13} parent=27 // pred_check_branch
          %684 = sbr.rel (%p682) target = $region40
        $region39: #{decoder_layer.13} parent=27 // pred_region
          %s686 = ssub.s32 64, 64
          %687 = vsyncadd %s678, %s686
          %s688 = sadd.s32 %s27, %s26
          %s689 = smul.addr %s688, 64
          %s690 = scalar_lea.hbm %s2, %s689
          %s692 = sshll.u32 %s681, 4
          %s693 = int_to_ptr.vmem [resolvable:$true] %s692
          %695 = dma.vmem_to_hbm [thread:$0]  %s693, 64, %s690, %s678
        $region40: #{decoder_layer.13} parent=27 // pred_fallthru
          _
      $region28: #{decoder_layer.13} parent=5 // pred_fallthru
        _
      %p696 = scmp.le.s32.totalorder 2, %s17
      // Predicated region
      $region41: #{decoder_layer.13} parent=5 // pred_check
        %p697 = pneg %p696
      $region42: #{decoder_layer.13} parent=5 // pred_check_branch
        %699 = sbr.rel (%p697) target = $region44
      $region43: #{decoder_layer.13} parent=5 // pred_region
        %s700 = ssub.s32 %s17, 2
        // Predicated region
        $region45: #{decoder_layer.13} parent=43 // pred_check
          %p701 = pneg %p114
        $region46: #{decoder_layer.13} parent=43 // pred_check_branch
          %703 = sbr.rel (%p701) target = $region48
        $region47: #{decoder_layer.13} parent=43 // pred_region
          %s704 = sand.u32 %s99, 1
          %s705 = scalar_lea.sflag [#allocation4], %s704
          %s706 = sand.u32 %s99, 1
          %s707 = smul.addr %s706, 4
          %s708 = scalar_lea.vmem [#allocation7], %s707
          %709 = dma.done %s705, 64
        $region48: #{decoder_layer.13} parent=43 // pred_fallthru
          _
      $region44: #{decoder_layer.13} parent=5 // pred_fallthru
        _
    $region6: #{decoder_layer.13} parent=1 // loop_footer
      %s21 = sadd.s32 1, %s17
    $region7: #{decoder_layer.13} parent=1 // loop_footer_branch
      %16 = sbr.rel target = $region3
    $region8: #{decoder_layer.13} parent=1 // loop_exit
      _
    %710 = vsyncpa [#allocation3], 1
    %s711 = scalar_lea.sflag [#allocation3], 1
    %712 = vsyncpa %s711, 1
    %713 = vsyncpa [#allocation6], 1
    %s714 = scalar_lea.sflag [#allocation6], 1
    %715 = vsyncpa %s714, 1
    %716 = vsyncpa [#allocation4], 1
    %s717 = scalar_lea.sflag [#allocation4], 1
    %718 = vsyncpa %s717, 1

// kernel: decoder_layer.15
$region0: #{decoder_layer.15}
  #allocation0 [shape = 'u32[]', space=smem, size = 0x4, offset = 0x4, fixed_abs, tag = 'smem constant byte address 0x4 - core index']
  #allocation1 [shape = 'u32[144,128]{1,0:T(1,128)}', space=vmem, size = 0x12000, scoped, tag = 'internal scratch']
  #allocation2 [shape = 'f32[8,64]{1,0:T(8,128)}', space=vmem, size = 0x1000, scoped, tag = 'scratch operand']
  %s0 = inlined_call_operand.hbm [shape: f32[16,64], index: 0, kind: input, shape index: {}]
  %s1 = inlined_call_operand.hbm [shape: bf16[64,128], index: 1, kind: input, shape index: {}]
  %s2 = inlined_call_operand.hbm [shape: f32[1,128], index: 2, kind: input, shape index: {}]
  %s3 = inlined_call_operand.hbm [shape: bf16[128,64], index: 3, kind: input, shape index: {}]
  %s4 = inlined_call_operand.hbm [shape: f32[1,64], index: 4, kind: input, shape index: {}]
  %s5 = inlined_call_operand.hbm [shape: f32[1,64], index: 5, kind: input, shape index: {}]
  %s6 = inlined_call_operand.hbm [shape: f32[1,64], index: 6, kind: input, shape index: {}]
  %s7 = inlined_call_operand.hbm [shape: f32[16,64], index: 7, kind: output, shape index: {}]
  %s8 = sld [smem:[#allocation0]]
  $region97: #{decoder_layer.15} parent=0
    _
  %s10 = ssub.s32 1, %s8
  %s11 = scalar_select 0, %s10, %s8
  $region1: #{decoder_layer.15} parent=0
    #allocation3 [shape = 'u8[8192]{0}', space=vmem, size = 0x2000, scoped, tag = 'input window, operand 0']
    #allocation4 [shape = 's32[2]{0}', space=sflag, size = 0x8, scoped, tag = 'scoped memory for decoder_layer.15']
    #allocation5 [shape = 's32[2]{0}', space=sflag, size = 0x8, scoped, tag = 'scoped memory for decoder_layer.15']
    #allocation6 [shape = 'u8[16384]{0}', space=vmem, size = 0x4000, scoped, tag = 'input window, operand 1, single buffered']
    #allocation7 [shape = 's32[1]{0}', space=sflag, size = 0x4, scoped, tag = 'scoped memory for decoder_layer.15']
    #allocation8 [shape = 'u8[512]{0}', space=vmem, size = 0x400, scoped, tag = 'input window, operand 2, single buffered']
    #allocation9 [shape = 'u8[32768]{0}', space=vmem, size = 0x8000, scoped, tag = 'input window, operand 3, single buffered']
    #allocation10 [shape = 's32[1]{0}', space=sflag, size = 0x4, scoped, tag = 'scoped memory for decoder_layer.15']
    #allocation11 [shape = 'u8[512]{0}', space=vmem, size = 0x400, scoped, tag = 'input window, operand 4, single buffered']
    #allocation12 [shape = 'u8[512]{0}', space=vmem, size = 0x400, scoped, tag = 'input window, operand 5, single buffered']
    #allocation13 [shape = 's32[1]{0}', space=sflag, size = 0x4, scoped, tag = 'scoped memory for decoder_layer.15']
    #allocation14 [shape = 'u8[512]{0}', space=vmem, size = 0x400, scoped, tag = 'input window, operand 6, single buffered']
    #allocation15 [shape = 'u8[8192]{0}', space=vmem, size = 0x2000, scoped, tag = 'output window, operand 0']
    %12 = vsyncpa [#allocation4], 0
    %s13 = scalar_lea.sflag [#allocation4], 1
    %14 = vsyncpa %s13, 0
    %15 = vsyncpa [#allocation7], 0
    %16 = vsyncpa [#allocation10], 0
    %17 = vsyncpa [#allocation13], 0
    %18 = vsyncpa [#allocation5], 0
    %s19 = scalar_lea.sflag [#allocation5], 1
    %20 = vsyncpa %s19, 0
    loop: start=0, step=1, limit=4
    $region2: #{decoder_layer.15} parent=1 // loop_pre_header
      _
    $region3: #{decoder_layer.15} parent=1 // loop_header
      %s22 = sphi 0, %s26
      %p23 = scmp.ge.s32.totalorder %s22, 4
      %s29 = sphi 0, %s41
      %s30 = sphi 0, %s37
      %s31 = sphi 0, %s29
      %s32 = sphi 0, %s30
      %s33 = sphi 0, %s31
      %s34 = sphi 0, %s32
      %s44 = sphi 0, %s46
      %s47 = sphi 0, %s44
      %s48 = sphi 0, %s47
      %s64 = sphi 0, %s48
      %s70 = sphi 0, %s72
      %s73 = sphi 0, %s70
      %s74 = sphi 0, %s73
      %s90 = sphi 0, %s74
      %s96 = sphi 0, %s98
      %s99 = sphi 0, %s96
      %s100 = sphi 0, %s99
      %s116 = sphi 0, %s100
      %s122 = sphi 0, %s124
      %s125 = sphi 0, %s122
      %s126 = sphi 0, %s125
      %s142 = sphi 0, %s126
      %s146 = sphi 0, %s146
      %s148 = sphi 0, %s146
      %s149 = sphi 0, %s148
      %s163 = sphi 0, %s149
      %s167 = sphi 0, %s167
      %s169 = sphi 0, %s167
      %s170 = sphi 0, %s169
      %s184 = sphi 0, %s170
      %s188 = sphi 0, %s188
      %s190 = sphi 0, %s188
      %s191 = sphi 0, %s190
      %s205 = sphi 0, %s191
      %s211 = sphi 0, %s213
      %s214 = sphi 0, %s211
      %s215 = sphi 0, %s214
      %s231 = sphi 0, %s215
    $region4: #{decoder_layer.15} parent=1 // loop_header_branch
      %25 = sbr.rel (%p23) target = $region8
    $region5: #{decoder_layer.15} parent=1 // loop_body
      %s27 = ssub.s32 %s22, 1
      %s28 = ssub.s32 %s22, 2
      %s35 = sadd.s32 1, %s30
      %p36 = scmp.ge.s32.totalorder %s35, 1
      %s37 = scalar_select %p36, 0, %s35
      %s38 = sadd.s32 1, %s29
      %s39 = scalar_select %p36, %s38, %s29
      %p40 = scmp.ge.s32.totalorder %s39, 2
      %s41 = scalar_select %p40, 0, %s39
      %s42 = ssub.s32 %s29, %s41
      %p43 = scmp.eq.s32.totalorder %s42, 0
      %s45 = sadd.s32 %s44, 1
      %s46 = scalar_select %p43, %s44, %s45
      %p49 = pneg %p43
      %p50 = scmp.eq.s32.totalorder %s22, 1
      %p51 = por %p49, %p50
      %p52 = scmp.ne.s32.totalorder %s44, %s47
      %p53 = scmp.eq.s32.totalorder %s22, 0
      %p54 = por %p52, %p53
      %p55 = scmp.ne.s32.totalorder %s44, %s47
      %p56 = scmp.eq.s32.totalorder %s27, 1
      %p57 = por %p55, %p56
      %p58 = scmp.ne.s32.totalorder %s47, %s48
      %p59 = scmp.eq.s32.totalorder %s27, 0
      %p60 = por %p58, %p59
      %p61 = scmp.ne.s32.totalorder %s47, %s48
      %p62 = scmp.eq.s32.totalorder %s28, 1
      %p63 = por %p61, %p62
      %p65 = scmp.ne.s32.totalorder %s48, %s64
      %p66 = scmp.eq.s32.totalorder %s28, 0
      %p67 = por %p65, %p66
      %s68 = ssub.s32 %s30, %s37
      %p69 = scmp.eq.s32.totalorder %s68, 0
      %s71 = sadd.s32 %s70, 1
      %s72 = scalar_select %p69, %s70, %s71
      %p75 = pneg %p69
      %p76 = scmp.eq.s32.totalorder %s22, 1
      %p77 = por %p75, %p76
      %p78 = scmp.ne.s32.totalorder %s70, %s73
      %p79 = scmp.eq.s32.totalorder %s22, 0
      %p80 = por %p78, %p79
      %p81 = scmp.ne.s32.totalorder %s70, %s73
      %p82 = scmp.eq.s32.totalorder %s27, 1
      %p83 = por %p81, %p82
      %p84 = scmp.ne.s32.totalorder %s73, %s74
      %p85 = scmp.eq.s32.totalorder %s27, 0
      %p86 = por %p84, %p85
      %p87 = scmp.ne.s32.totalorder %s73, %s74
      %p88 = scmp.eq.s32.totalorder %s28, 1
      %p89 = por %p87, %p88
      %p91 = scmp.ne.s32.totalorder %s74, %s90
      %p92 = scmp.eq.s32.totalorder %s28, 0
      %p93 = por %p91, %p92
      %s94 = ssub.s32 %s30, %s37
      %p95 = scmp.eq.s32.totalorder %s94, 0
      %s97 = sadd.s32 %s96, 1
      %s98 = scalar_select %p95, %s96, %s97
      %p101 = pneg %p95
      %p102 = scmp.eq.s32.totalorder %s22, 1
      %p103 = por %p101, %p102
      %p104 = scmp.ne.s32.totalorder %s96, %s99
      %p105 = scmp.eq.s32.totalorder %s22, 0
      %p106 = por %p104, %p105
      %p107 = scmp.ne.s32.totalorder %s96, %s99
      %p108 = scmp.eq.s32.totalorder %s27, 1
      %p109 = por %p107, %p108
      %p110 = scmp.ne.s32.totalorder %s99, %s100
      %p111 = scmp.eq.s32.totalorder %s27, 0
      %p112 = por %p110, %p111
      %p113 = scmp.ne.s32.totalorder %s99, %s100
      %p114 = scmp.eq.s32.totalorder %s28, 1
      %p115 = por %p113, %p114
      %p117 = scmp.ne.s32.totalorder %s100, %s116
      %p118 = scmp.eq.s32.totalorder %s28, 0
      %p119 = por %p117, %p118
      %s120 = ssub.s32 %s30, %s37
      %p121 = scmp.eq.s32.totalorder %s120, 0
      %s123 = sadd.s32 %s122, 1
      %s124 = scalar_select %p121, %s122, %s123
      %p127 = pneg %p121
      %p128 = scmp.eq.s32.totalorder %s22, 1
      %p129 = por %p127, %p128
      %p130 = scmp.ne.s32.totalorder %s122, %s125
      %p131 = scmp.eq.s32.totalorder %s22, 0
      %p132 = por %p130, %p131
      %p133 = scmp.ne.s32.totalorder %s122, %s125
      %p134 = scmp.eq.s32.totalorder %s27, 1
      %p135 = por %p133, %p134
      %p136 = scmp.ne.s32.totalorder %s125, %s126
      %p137 = scmp.eq.s32.totalorder %s27, 0
      %p138 = por %p136, %p137
      %p139 = scmp.ne.s32.totalorder %s125, %s126
      %p140 = scmp.eq.s32.totalorder %s28, 1
      %p141 = por %p139, %p140
      %p143 = scmp.ne.s32.totalorder %s126, %s142
      %p144 = scmp.eq.s32.totalorder %s28, 0
      %p145 = por %p143, %p144
      %s147 = sadd.s32 %s146, 1
      %p150 = scmp.eq.s32.totalorder %s22, 1
      %p151 = scmp.ne.s32.totalorder %s146, %s148
      %p152 = scmp.eq.s32.totalorder %s22, 0
      %p153 = por %p151, %p152
      %p154 = scmp.ne.s32.totalorder %s146, %s148
      %p155 = scmp.eq.s32.totalorder %s27, 1
      %p156 = por %p154, %p155
      %p157 = scmp.ne.s32.totalorder %s148, %s149
      %p158 = scmp.eq.s32.totalorder %s27, 0
      %p159 = por %p157, %p158
      %p160 = scmp.ne.s32.totalorder %s148, %s149
      %p161 = scmp.eq.s32.totalorder %s28, 1
      %p162 = por %p160, %p161
      %p164 = scmp.ne.s32.totalorder %s149, %s163
      %p165 = scmp.eq.s32.totalorder %s28, 0
      %p166 = por %p164, %p165
      %s168 = sadd.s32 %s167, 1
      %p171 = scmp.eq.s32.totalorder %s22, 1
      %p172 = scmp.ne.s32.totalorder %s167, %s169
      %p173 = scmp.eq.s32.totalorder %s22, 0
      %p174 = por %p172, %p173
      %p175 = scmp.ne.s32.totalorder %s167, %s169
      %p176 = scmp.eq.s32.totalorder %s27, 1
      %p177 = por %p175, %p176
      %p178 = scmp.ne.s32.totalorder %s169, %s170
      %p179 = scmp.eq.s32.totalorder %s27, 0
      %p180 = por %p178, %p179
      %p181 = scmp.ne.s32.totalorder %s169, %s170
      %p182 = scmp.eq.s32.totalorder %s28, 1
      %p183 = por %p181, %p182
      %p185 = scmp.ne.s32.totalorder %s170, %s184
      %p186 = scmp.eq.s32.totalorder %s28, 0
      %p187 = por %p185, %p186
      %s189 = sadd.s32 %s188, 1
      %p192 = scmp.eq.s32.totalorder %s22, 1
      %p193 = scmp.ne.s32.totalorder %s188, %s190
      %p194 = scmp.eq.s32.totalorder %s22, 0
      %p195 = por %p193, %p194
      %p196 = scmp.ne.s32.totalorder %s188, %s190
      %p197 = scmp.eq.s32.totalorder %s27, 1
      %p198 = por %p196, %p197
      %p199 = scmp.ne.s32.totalorder %s190, %s191
      %p200 = scmp.eq.s32.totalorder %s27, 0
      %p201 = por %p199, %p200
      %p202 = scmp.ne.s32.totalorder %s190, %s191
      %p203 = scmp.eq.s32.totalorder %s28, 1
      %p204 = por %p202, %p203
      %p206 = scmp.ne.s32.totalorder %s191, %s205
      %p207 = scmp.eq.s32.totalorder %s28, 0
      %p208 = por %p206, %p207
      %s209 = ssub.s32 %s29, %s41
      %p210 = scmp.eq.s32.totalorder %s209, 0
      %s212 = sadd.s32 %s211, 1
      %s213 = scalar_select %p210, %s211, %s212
      %p216 = pneg %p210
      %p217 = scmp.eq.s32.totalorder %s22, 1
      %p218 = por %p216, %p217
      %p219 = scmp.ne.s32.totalorder %s211, %s214
      %p220 = scmp.eq.s32.totalorder %s22, 0
      %p221 = por %p219, %p220
      %p222 = scmp.ne.s32.totalorder %s211, %s214
      %p223 = scmp.eq.s32.totalorder %s27, 1
      %p224 = por %p222, %p223
      %p225 = scmp.ne.s32.totalorder %s214, %s215
      %p226 = scmp.eq.s32.totalorder %s27, 0
      %p227 = por %p225, %p226
      %p228 = scmp.ne.s32.totalorder %s214, %s215
      %p229 = scmp.eq.s32.totalorder %s28, 1
      %p230 = por %p228, %p229
      %p232 = scmp.ne.s32.totalorder %s215, %s231
      %p233 = scmp.eq.s32.totalorder %s28, 0
      %p234 = por %p232, %p233
      %p235 = scmp.le.s32.totalorder 1, %s22
      %p236 = scmp.lt.s32.totalorder %s22, 3
      %p237 = pnand %p235, %p236
      %p238 = pneg %p237
      // Predicated region
      $region9: #{decoder_layer.15} parent=5 // pred_check
        _
      $region10: #{decoder_layer.15} parent=5 // pred_check_branch
        %240 = sbr.rel (%p237) target = $region12
      $region11: #{decoder_layer.15} parent=5 // pred_region
        %s241 = ssub.s32 %s22, 1
        // Predicated region
        $region13: #{decoder_layer.15} parent=11 // pred_check
          %p242 = pneg %p86
        $region14: #{decoder_layer.15} parent=11 // pred_check_branch
          %244 = sbr.rel (%p242) target = $region16
        $region15: #{decoder_layer.15} parent=11 // pred_region
          %s246 = ssub.s32 512, 512
          %247 = vsyncadd [#allocation7], %s246
          %s248 = smul.addr %s32, 64
          %s249 = scalar_lea.hbm %s1, %s248
          %s250 = sshll.u32 [#allocation6], 4
          %s251 = int_to_ptr.vmem [resolvable:$true] %s250
          %256 = dma.hbm_to_vmem [thread:$0]  %s249, 512, %s251, [#allocation7], 64, 64, 4
        $region16: #{decoder_layer.15} parent=11 // pred_fallthru
          _
        // Predicated region
        $region17: #{decoder_layer.15} parent=11 // pred_check
          %p257 = pneg %p112
        $region18: #{decoder_layer.15} parent=11 // pred_check_branch
          %259 = sbr.rel (%p257) target = $region20
        $region19: #{decoder_layer.15} parent=11 // pred_region
          %s261 = ssub.s32 16, 16
          %262 = vsyncadd [#allocation7], %s261
          %s263 = smul.addr %s32, 16
          %s264 = scalar_lea.hbm %s2, %s263
          %s266 = sshll.u32 [#allocation8], 4
          %s267 = int_to_ptr.vmem [resolvable:$true] %s266
          %269 = dma.hbm_to_vmem [thread:$0]  %s264, 16, %s267, [#allocation7]
        $region20: #{decoder_layer.15} parent=11 // pred_fallthru
          _
        // Predicated region
        $region21: #{decoder_layer.15} parent=11 // pred_check
          %p270 = pneg %p138
        $region22: #{decoder_layer.15} parent=11 // pred_check_branch
          %272 = sbr.rel (%p270) target = $region24
        $region23: #{decoder_layer.15} parent=11 // pred_region
          %s273 = smul.u32 16, %s32
          %s275 = ssub.s32 1024, 1024
          %276 = vsyncadd [#allocation10], %s275
          %s277 = smul.addr %s273, 64
          %s278 = scalar_lea.hbm %s3, %s277
          %s279 = sshll.u32 [#allocation9], 4
          %s280 = int_to_ptr.vmem [resolvable:$true] %s279
          %285 = dma.hbm_to_vmem [thread:$0]  %s278, 1024, %s280, [#allocation10], 64, 64, 4
        $region24: #{decoder_layer.15} parent=11 // pred_fallthru
          _
        // Predicated region
        $region25: #{decoder_layer.15} parent=11 // pred_check
          %p286 = pneg %p159
        $region26: #{decoder_layer.15} parent=11 // pred_check_branch
          %288 = sbr.rel (%p286) target = $region28
        $region27: #{decoder_layer.15} parent=11 // pred_region
          %s290 = ssub.s32 16, 16
          %291 = vsyncadd [#allocation10], %s290
          %s293 = sshll.u32 [#allocation11], 4
          %s294 = int_to_ptr.vmem [resolvable:$true] %s293
          %296 = dma.hbm_to_vmem [thread:$0]  %s4, 16, %s294, [#allocation10]
        $region28: #{decoder_layer.15} parent=11 // pred_fallthru
          _
        // Predicated region
        $region29: #{decoder_layer.15} parent=11 // pred_check
          %p297 = pneg %p180
        $region30: #{decoder_layer.15} parent=11 // pred_check_branch
          %299 = sbr.rel (%p297) target = $region32
        $region31: #{decoder_layer.15} parent=11 // pred_region
          %s301 = ssub.s32 16, 16
          %302 = vsyncadd [#allocation13], %s301
          %s304 = sshll.u32 [#allocation12], 4
          %s305 = int_to_ptr.vmem [resolvable:$true] %s304
          %307 = dma.hbm_to_vmem [thread:$0]  %s5, 16, %s305, [#allocation13]
        $region32: #{decoder_layer.15} parent=11 // pred_fallthru
          _
        // Predicated region
        $region33: #{decoder_layer.15} parent=11 // pred_check
          %p308 = pneg %p201
        $region34: #{decoder_layer.15} parent=11 // pred_check_branch
          %310 = sbr.rel (%p308) target = $region36
        $region35: #{decoder_layer.15} parent=11 // pred_region
          %s312 = ssub.s32 16, 16
          %313 = vsyncadd [#allocation13], %s312
          %s315 = sshll.u32 [#allocation14], 4
          %s316 = int_to_ptr.vmem [resolvable:$true] %s315
          %318 = dma.hbm_to_vmem [thread:$0]  %s6, 16, %s316, [#allocation13]
        $region36: #{decoder_layer.15} parent=11 // pred_fallthru
          _
      $region12: #{decoder_layer.15} parent=5 // pred_fallthru
        _
      %p319 = scmp.lt.s32.totalorder %s22, 2
      // Predicated region
      $region37: #{decoder_layer.15} parent=5 // pred_check
        %p320 = pneg %p319
      $region38: #{decoder_layer.15} parent=5 // pred_check_branch
        %322 = sbr.rel (%p320) target = $region40
      $region39: #{decoder_layer.15} parent=5 // pred_region
        // Predicated region
        $region41: #{decoder_layer.15} parent=39 // pred_check
          %p323 = pneg %p54
        $region42: #{decoder_layer.15} parent=39 // pred_check_branch
          %325 = sbr.rel (%p323) target = $region44
        $region43: #{decoder_layer.15} parent=39 // pred_region
          %s326 = sand.u32 %s44, 1
          %s327 = scalar_lea.sflag [#allocation4], %s326
          %s328 = sand.u32 %s44, 1
          %s329 = smul.addr %s328, 8
          %s330 = scalar_lea.vmem [#allocation3], %s329
          %s332 = ssub.s32 128, 128
          %333 = vsyncadd %s327, %s332
          %s334 = smul.addr %s29, 128
          %s335 = scalar_lea.hbm %s0, %s334
          %s337 = sshll.u32 %s330, 4
          %s338 = int_to_ptr.vmem [resolvable:$true] %s337
          %340 = dma.hbm_to_vmem [thread:$0]  %s335, 128, %s338, %s327
        $region44: #{decoder_layer.15} parent=39 // pred_fallthru
          _
      $region40: #{decoder_layer.15} parent=5 // pred_fallthru
        _
      %p341 = scmp.le.s32.totalorder 1, %s22
      %p342 = scmp.lt.s32.totalorder %s22, 3
      %p343 = pnand %p341, %p342
      %p344 = pneg %p343
      // Predicated region
      $region45: #{decoder_layer.15} parent=5 // pred_check
        _
      $region46: #{decoder_layer.15} parent=5 // pred_check_branch
        %346 = sbr.rel (%p343) target = $region48
      $region47: #{decoder_layer.15} parent=5 // pred_region
        %s347 = ssub.s32 %s22, 1
        %s348 = sand.u32 %s47, 1
        %s349 = scalar_lea.sflag [#allocation4], %s348
        %s350 = sand.u32 %s47, 1
        %s351 = smul.addr %s350, 8
        %s352 = scalar_lea.vmem [#allocation3], %s351
        // Predicated region
        $region49: #{decoder_layer.15} parent=47 // pred_check
          %p353 = pneg %p60
        $region50: #{decoder_layer.15} parent=47 // pred_check_branch
          %355 = sbr.rel (%p353) target = $region52
        $region51: #{decoder_layer.15} parent=47 // pred_region
          %356 = dma.done %s349, 128
        $region52: #{decoder_layer.15} parent=47 // pred_fallthru
          _
        // Predicated region
        $region53: #{decoder_layer.15} parent=47 // pred_check
          %p357 = pneg %p86
        $region54: #{decoder_layer.15} parent=47 // pred_check_branch
          %359 = sbr.rel (%p357) target = $region56
        $region55: #{decoder_layer.15} parent=47 // pred_region
          %360 = dma.done [#allocation7], 512
        $region56: #{decoder_layer.15} parent=47 // pred_fallthru
          _
        // Predicated region
        $region57: #{decoder_layer.15} parent=47 // pred_check
          %p361 = pneg %p112
        $region58: #{decoder_layer.15} parent=47 // pred_check_branch
          %363 = sbr.rel (%p361) target = $region60
        $region59: #{decoder_layer.15} parent=47 // pred_region
          %364 = dma.done [#allocation7], 16
        $region60: #{decoder_layer.15} parent=47 // pred_fallthru
          _
        // Predicated region
        $region61: #{decoder_layer.15} parent=47 // pred_check
          %p365 = pneg %p138
        $region62: #{decoder_layer.15} parent=47 // pred_check_branch
          %367 = sbr.rel (%p365) target = $region64
        $region63: #{decoder_layer.15} parent=47 // pred_region
          %368 = dma.done [#allocation10], 1024
        $region64: #{decoder_layer.15} parent=47 // pred_fallthru
          _
        // Predicated region
        $region65: #{decoder_layer.15} parent=47 // pred_check
          %p369 = pneg %p159
        $region66: #{decoder_layer.15} parent=47 // pred_check_branch
          %371 = sbr.rel (%p369) target = $region68
        $region67: #{decoder_layer.15} parent=47 // pred_region
          %372 = dma.done [#allocation10], 16
        $region68: #{decoder_layer.15} parent=47 // pred_fallthru
          _
        // Predicated region
        $region69: #{decoder_layer.15} parent=47 // pred_check
          %p373 = pneg %p180
        $region70: #{decoder_layer.15} parent=47 // pred_check_branch
          %375 = sbr.rel (%p373) target = $region72
        $region71: #{decoder_layer.15} parent=47 // pred_region
          %376 = dma.done [#allocation13], 16
        $region72: #{decoder_layer.15} parent=47 // pred_fallthru
          _
        // Predicated region
        $region73: #{decoder_layer.15} parent=47 // pred_check
          %p377 = pneg %p201
        $region74: #{decoder_layer.15} parent=47 // pred_check_branch
          %379 = sbr.rel (%p377) target = $region76
        $region75: #{decoder_layer.15} parent=47 // pred_region
          %380 = dma.done [#allocation13], 16
        $region76: #{decoder_layer.15} parent=47 // pred_fallthru
          _
        %s381 = sand.u32 %s47, 1
        %s382 = scalar_lea.sflag [#allocation4], %s381
        %s383 = sand.u32 %s47, 1
        %s384 = smul.addr %s383, 8
        %s385 = scalar_lea.vmem [#allocation3], %s384
        %p386 = pneg %p60
        %p387 = pneg %p57
        %p388 = pneg %p86
        %p389 = pneg %p83
        %p390 = pneg %p112
        %p391 = pneg %p109
        %p392 = pneg %p138
        %p393 = pneg %p135
        %p394 = pneg %p159
        %p395 = pneg %p156
        %p396 = pneg %p180
        %p397 = pneg %p177
        %p398 = pneg %p201
        %p399 = pneg %p198
        %p400 = pneg %p227
        %p401 = pneg %p224
        %s402 = sand.u32 %s214, 1
        %s403 = scalar_lea.sflag [#allocation5], %s402
        %s404 = sand.u32 %s214, 1
        %s405 = smul.addr %s404, 8
        %s406 = scalar_lea.vmem [#allocation15], %s405
        %s407 = smul.u32 16, %s32
        %p409 = scmp.eq.s32.totalorder %s32, 0
        // Predicated region
        $region77: #{decoder_layer.15} parent=47 // pred_check
          %p410 = pneg %p409
        $region78: #{decoder_layer.15} parent=47 // pred_check_branch
          %412 = sbr.rel (%p410) target = $region80
        $region79: #{decoder_layer.15} parent=47 // pred_region
          %vm413 = vcmask 523264
          %414 = vst.msk [vmem:[#allocation2] sm:$0xff] %vm413, 0.0
        $region80: #{decoder_layer.15} parent=47 // pred_fallthru
          _
        %v415 = vld [vmem:[%s352] sm:$0xff]
        %v416 = vpack.c.bf16 %v415, %v415
        %v417 = vld [vmem:[#allocation6] sm:$0xf]
        %v418 = vld [vmem:[#allocation6 + $0x4] sm:$0xf]
        %v419 = vld [vmem:[#allocation6 + $0x8] sm:$0xf]
        %v420 = vld [vmem:[#allocation6 + $0xc] sm:$0xf]
        %v421 = vld [vmem:[#allocation6 + $0x10] sm:$0xf]
        %v422 = vld [vmem:[#allocation6 + $0x14] sm:$0xf]
        %v423 = vld [vmem:[#allocation6 + $0x18] sm:$0xf]
        %v424 = vld [vmem:[#allocation6 + $0x1c] sm:$0xf]
        %v425 = vld [vmem:[#allocation8] sm:$0x1]
        %v427 = vlaneseq
        %v428 = vshrl.u32 %v427, 7
        %v429 = vsub.s32 0, %v428
        %v430 = vrot.slane %v425, %v429
        %v440 = vunpack.c.l.b16 %v417
        %v441 = vunpack.c.l.b16 %v418
        %v442 = vunpack.c.l.b16 %v419
        %v443 = vunpack.c.l.b16 %v420
        %v444 = vunpack.c.l.b16 %v421
        %v445 = vunpack.c.l.b16 %v422
        %v446 = vunpack.c.l.b16 %v423
        %v447 = vunpack.c.l.b16 %v424
        %v448 = vpack.c.b16 %v441, %v440
        %v449 = vpack.c.b16 %v443, %v442
        %v450 = vpack.c.b16 %v445, %v444
        %v451 = vpack.c.b16 %v447, %v446
        %vm456 = vcmask 523264
        %v458 = vsel %vm456, %v416, 0
        %460 = vmatprep.subr.bf16.mxu0 0
        %461 = vmatpush1.bf16.msra.mxu0 %v448
        %462 = vmatprep.subr.bf16.mxu0 0
        %463 = vmatpush1.bf16.msra.mxu0 %v449
        %464 = vmatprep.subr.bf16.mxu0 0
        %465 = vmatpush1.bf16.msra.mxu0 %v450
        %466 = vmatprep.subr.bf16.mxu0 0
        %467 = vmatpush1.bf16.msra.mxu0 %v451
        %468 = vmatprep.subr.bf16.mxu0 0
        %469 = vmatpush1.bf16.msra.mxu0 0
        %470 = vmatprep.subr.bf16.mxu0 0
        %471 = vmatpush1.bf16.msra.mxu0 0
        %472 = vmatprep.subr.bf16.mxu0 0
        %473 = vmatpush1.bf16.msra.mxu0 0
        %474 = vmatprep.subr.bf16.mxu0 0
        %475 = vmatpush1.bf16.msra.mxu0 0
        %476 = vmatprep.subr.bf16.mxu0 0
        %477 = vmatpush1.bf16.msra.mxu0 0
        %478 = vmatprep.subr.bf16.mxu0 0
        %479 = vmatpush1.bf16.msra.mxu0 0
        %480 = vmatprep.subr.bf16.mxu0 0
        %481 = vmatpush1.bf16.msra.mxu0 0
        %482 = vmatprep.subr.bf16.mxu0 0
        %483 = vmatpush1.bf16.msra.mxu0 0
        %484 = vmatprep.subr.bf16.mxu0 0
        %485 = vmatpush1.bf16.msra.mxu0 0
        %486 = vmatprep.subr.bf16.mxu0 0
        %487 = vmatpush1.bf16.msra.mxu0 0
        %488 = vmatprep.subr.bf16.mxu0 0
        %489 = vmatpush1.bf16.msra.mxu0 0
        %490 = vmatprep.subr.bf16.mxu0 0
        %491 = vmatpush1.bf16.msra.mxu0 0
        %492 = vmatprep.mubr.bf16.mxu0 0
        %493 = vmatmul.mubr.bf16.gmra.mrb[0].mxu0 %v458
        %v494 = vpop.f32.mrb[0].mxu0
        %v495 = vadd.f32 %v430, %v494
        %v496 = vpop.f32.mrb[0].mxu0
        %v497 = vpop.f32.mrb[0].mxu0
        %v498 = vpop.f32.mrb[0].mxu0
        %499 = vdwg.mxu0
        %v500 = vmax.f32 %v495, 0.0
        %v501 = vld [vmem:[#allocation2] sm:$0xff]
        %v502 = vpack.c.bf16 %v500, %v500
        %v503 = vld [vmem:[#allocation9] sm:$0xf]
        %v504 = vld [vmem:[#allocation9 + $0x4] sm:$0xf]
        %v505 = vld [vmem:[#allocation9 + $0x8] sm:$0xf]
        %v506 = vld [vmem:[#allocation9 + $0xc] sm:$0xf]
        %v507 = vld [vmem:[#allocation9 + $0x10] sm:$0xf]
        %v508 = vld [vmem:[#allocation9 + $0x14] sm:$0xf]
        %v509 = vld [vmem:[#allocation9 + $0x18] sm:$0xf]
        %v510 = vld [vmem:[#allocation9 + $0x1c] sm:$0xf]
        %v511 = vld [vmem:[#allocation9 + $0x20] sm:$0xf]
        %v512 = vld [vmem:[#allocation9 + $0x24] sm:$0xf]
        %v513 = vld [vmem:[#allocation9 + $0x28] sm:$0xf]
        %v514 = vld [vmem:[#allocation9 + $0x2c] sm:$0xf]
        %v515 = vld [vmem:[#allocation9 + $0x30] sm:$0xf]
        %v516 = vld [vmem:[#allocation9 + $0x34] sm:$0xf]
        %v517 = vld [vmem:[#allocation9 + $0x38] sm:$0xf]
        %v518 = vld [vmem:[#allocation9 + $0x3c] sm:$0xf]
        %v535 = vunpack.c.l.b16 %v503
        %v536 = vunpack.c.l.b16 %v504
        %v537 = vunpack.c.l.b16 %v505
        %v538 = vunpack.c.l.b16 %v506
        %v539 = vunpack.c.l.b16 %v507
        %v540 = vunpack.c.l.b16 %v508
        %v541 = vunpack.c.l.b16 %v509
        %v542 = vunpack.c.l.b16 %v510
        %v543 = vunpack.c.l.b16 %v511
        %v544 = vunpack.c.l.b16 %v512
        %v545 = vunpack.c.l.b16 %v513
        %v546 = vunpack.c.l.b16 %v514
        %v547 = vunpack.c.l.b16 %v515
        %v548 = vunpack.c.l.b16 %v516
        %v549 = vunpack.c.l.b16 %v517
        %v550 = vunpack.c.l.b16 %v518
        %v551 = vpack.c.b16 %v536, %v535
        %v552 = vpack.c.b16 %v538, %v537
        %v553 = vpack.c.b16 %v540, %v539
        %v554 = vpack.c.b16 %v542, %v541
        %v555 = vpack.c.b16 %v544, %v543
        %v556 = vpack.c.b16 %v546, %v545
        %v557 = vpack.c.b16 %v548, %v547
        %v558 = vpack.c.b16 %v550, %v549
        %567 = vmatprep.subr.bf16.mxu0 0
        %568 = vmatpush1.bf16.msra.mxu0 %v551
        %569 = vmatprep.subr.bf16.mxu0 0
        %570 = vmatpush1.bf16.msra.mxu0 %v552
        %571 = vmatprep.subr.bf16.mxu0 0
        %572 = vmatpush1.bf16.msra.mxu0 %v553
        %573 = vmatprep.subr.bf16.mxu0 0
        %574 = vmatpush1.bf16.msra.mxu0 %v554
        %575 = vmatprep.subr.bf16.mxu0 0
        %576 = vmatpush1.bf16.msra.mxu0 %v555
        %577 = vmatprep.subr.bf16.mxu0 0
        %578 = vmatpush1.bf16.msra.mxu0 %v556
        %579 = vmatprep.subr.bf16.mxu0 0
        %580 = vmatpush1.bf16.msra.mxu0 %v557
        %581 = vmatprep.subr.bf16.mxu0 0
        %582 = vmatpush1.bf16.msra.mxu0 %v558
        %583 = vmatprep.subr.bf16.mxu0 0
        %584 = vmatpush1.bf16.msra.mxu0 0
        %585 = vmatprep.subr.bf16.mxu0 0
        %586 = vmatpush1.bf16.msra.mxu0 0
        %587 = vmatprep.subr.bf16.mxu0 0
        %588 = vmatpush1.bf16.msra.mxu0 0
        %589 = vmatprep.subr.bf16.mxu0 0
        %590 = vmatpush1.bf16.msra.mxu0 0
        %591 = vmatprep.subr.bf16.mxu0 0
        %592 = vmatpush1.bf16.msra.mxu0 0
        %593 = vmatprep.subr.bf16.mxu0 0
        %594 = vmatpush1.bf16.msra.mxu0 0
        %595 = vmatprep.subr.bf16.mxu0 0
        %596 = vmatpush1.bf16.msra.mxu0 0
        %597 = vmatprep.subr.bf16.mxu0 0
        %598 = vmatpush1.bf16.msra.mxu0 0
        %599 = vmatprep.mubr.bf16.mxu0 0
        %600 = vmatmul.mubr.bf16.gmra.mrb[0].mxu0 %v502
        %v601 = vpop.f32.mrb[0].mxu0
        %v602 = vadd.f32 0.0, %v601
        %v603 = vpop.f32.mrb[0].mxu0
        %v604 = vpop.f32.mrb[0].mxu0
        %v605 = vpop.f32.mrb[0].mxu0
        %606 = vdwg.mxu0
        %v607 = vadd.f32 %v501, %v602
        %608 = vst.msk [vmem:[#allocation2] sm:$0xff] %vm456, %v607
        // Predicated region
        $region81: #{decoder_layer.15} parent=47 // pred_check
          %p609 = pneg %p409
        $region82: #{decoder_layer.15} parent=47 // pred_check_branch
          %611 = sbr.rel (%p609) target = $region84
        $region83: #{decoder_layer.15} parent=47 // pred_region
          %v612 = vld [vmem:[#allocation2] sm:$0xff]
          %v613 = vadd.f32 %v415, %v612
          %v614 = vld [vmem:[#allocation11] sm:$0x1]
          %v616 = vlaneseq
          %v617 = vshrl.u32 %v616, 7
          %v618 = vsub.s32 0, %v617
          %v619 = vrot.slane %v614, %v618
          %v621 = vadd.f32 %v613, %v619
          %v622 = vsel %vm456, %v621, 0.0
          %623 = vadd.xlane.f32.xlu0 %v622
          %v624 = vpop.xlane.xlu0 %623
          %v625 = vrcp.pop 64.0
          %v626 = vmul.f32 %v624, %v625
          %v627 = vsub.f32 %v621, %v626
          %v628 = vmul.f32 %v627, %v627
          %v629 = vsel %vm456, %v628, 0.0
          %630 = vadd.xlane.f32.xlu0 %v629
          %v631 = vpop.xlane.xlu0 %630
          %v632 = vmul.f32 %v631, %v625
          %v633 = vadd.f32 %v632, 1e-05
          %v634 = vrsqrt.pop %v633
          %v635 = vmul.f32 %v627, %v634
          %v636 = vld [vmem:[#allocation12] sm:$0x1]
          %v638 = vlaneseq
          %v639 = vshrl.u32 %v638, 7
          %v640 = vsub.s32 0, %v639
          %v641 = vrot.slane %v636, %v640
          %v643 = vmul.f32 %v635, %v641
          %v644 = vld [vmem:[#allocation14] sm:$0x1]
          %v646 = vlaneseq
          %v647 = vshrl.u32 %v646, 7
          %v648 = vsub.s32 0, %v647
          %v649 = vrot.slane %v644, %v648
          %v651 = vadd.f32 %v643, %v649
          %652 = vst.msk [vmem:[%s406] sm:$0xff] %vm456, %v651
        $region84: #{decoder_layer.15} parent=47 // pred_fallthru
          _
        %s653 = sand.u32 %s214, 1
        %s654 = scalar_lea.sflag [#allocation5], %s653
        %s655 = sand.u32 %s214, 1
        %s656 = smul.addr %s655, 8
        %s657 = scalar_lea.vmem [#allocation15], %s656
        // Predicated region
        $region85: #{decoder_layer.15} parent=47 // pred_check
          %p658 = pneg %p224
        $region86: #{decoder_layer.15} parent=47 // pred_check_branch
          %660 = sbr.rel (%p658) target = $region88
        $region87: #{decoder_layer.15} parent=47 // pred_region
          %s662 = ssub.s32 128, 128
          %663 = vsyncadd %s654, %s662
          %s664 = smul.addr %s31, 128
          %s665 = scalar_lea.hbm %s7, %s664
          %s667 = sshll.u32 %s657, 4
          %s668 = int_to_ptr.vmem [resolvable:$true] %s667
          %670 = dma.vmem_to_hbm [thread:$0]  %s668, 128, %s665, %s654
        $region88: #{decoder_layer.15} parent=47 // pred_fallthru
          _
      $region48: #{decoder_layer.15} parent=5 // pred_fallthru
        _
      %p671 = scmp.le.s32.totalorder 2, %s22
      // Predicated region
      $region89: #{decoder_layer.15} parent=5 // pred_check
        %p672 = pneg %p671
      $region90: #{decoder_layer.15} parent=5 // pred_check_branch
        %674 = sbr.rel (%p672) target = $region92
      $region91: #{decoder_layer.15} parent=5 // pred_region
        %s675 = ssub.s32 %s22, 2
        // Predicated region
        $region93: #{decoder_layer.15} parent=91 // pred_check
          %p676 = pneg %p230
        $region94: #{decoder_layer.15} parent=91 // pred_check_branch
          %678 = sbr.rel (%p676) target = $region96
        $region95: #{decoder_layer.15} parent=91 // pred_region
          %s679 = sand.u32 %s215, 1
          %s680 = scalar_lea.sflag [#allocation5], %s679
          %s681 = sand.u32 %s215, 1
          %s682 = smul.addr %s681, 8
          %s683 = scalar_lea.vmem [#allocation15], %s682
          %684 = dma.done %s680, 128
        $region96: #{decoder_layer.15} parent=91 // pred_fallthru
          _
      $region92: #{decoder_layer.15} parent=5 // pred_fallthru
        _
    $region6: #{decoder_layer.15} parent=1 // loop_footer
      %s26 = sadd.s32 1, %s22
    $region7: #{decoder_layer.15} parent=1 // loop_footer_branch
      %21 = sbr.rel target = $region3
    $region8: #{decoder_layer.15} parent=1 // loop_exit
      _
    %685 = vsyncpa [#allocation4], 1
    %s686 = scalar_lea.sflag [#allocation4], 1
    %687 = vsyncpa %s686, 1
    %688 = vsyncpa [#allocation7], 1
    %689 = vsyncpa [#allocation10], 1
    %690 = vsyncpa [#allocation13], 1
    %691 = vsyncpa [#allocation5], 1
    %s692 = scalar_lea.sflag [#allocation5], 1
    %693 = vsyncpa %s692, 1

</llo_original>
